<compile_context>
chip_gen: v7x
topology: tpu7x:2x2x1
jax: 0.10.0
libtpu: 0.0.40
codegen_flags: <defaults>
</compile_context>

<pallas_src>
import functools

import jax
import jax.numpy as jnp
from jax import lax
from jax.experimental import pallas as pl
from jax.experimental.pallas import tpu as pltpu

EPS = 1e-5


def _round_up(x, m):
    return ((x + m - 1) // m) * m


def _make_kernel(N, Cp, Cop, H, W, Wp, OFF, NL):
    """Fused conv3x3 -> BN1 -> ReLU -> conv3x3 (+ BN2 stats) kernel for static shapes."""
    # Lane shift of conv tap (ky, kx) on the zero-padded flat (Hp, Wp) grid.
    tap_shifts = [(ky - 1) * Wp + (kx - 1) for ky in range(3) for kx in range(3)]
    inv_cnt = 1.0 / float(N * H * W)

    def kernel(xp_ref, w1_ref, w2_ref, g1_ref, b1_ref, g2_ref, b2_ref, m_ref,
               out_ref, sc2_ref, sh2_ref, col_ref, buf_ref):
        # xp_ref : (Cp, L)  bf16  upsampled + zero-padded + flattened batch, channel-major,
        #                         with zero left/right margins (OFF lanes) for tap shifts
        # w*_ref : (Co, 9*Cp) bf16 conv weights, tap-major / in-channel-minor, zero-padded K
        # g*/b*  : (Co, 1) f32     BN gamma / beta (padded channels are zero)
        # m_ref  : (1, NL) f32     1.0 on interior (non-pad-ring, non-tail) lanes
        # out_ref: (Cop, NL) f32   raw conv2 output (BN2 affine applied in the wrapper)
        # sc2/sh2: (Cop, 1) f32    BN2 scale / shift
        # col_ref: (9*Cp, NL) bf16 im2col matrix for the whole batch
        # buf_ref: (Cp, L)   bf16  padded / shiftable activation buffer for conv2
        mask = m_ref[...]

        def im2col(src_ref):
            # One lane-shifted window per tap covers the whole batch; destination blocks
            # are 8-sublane aligned and full lane width (multiple of 128).
            for k, s in enumerate(tap_shifts):
                col_ref[k * Cp:(k + 1) * Cp, :] = src_ref[:, OFF + s:OFF + s + NL]

        def bn_stats(y):
            # Shifted two-pass mean/variance over the masked interior (per channel row);
            # avoids the sumsq - mean^2 cancellation.
            mean = jnp.sum(y * mask, axis=1, keepdims=True) * inv_cnt
            d = (y - mean) * mask
            var = jnp.sum(d * d, axis=1, keepdims=True) * inv_cnt
            return mean, var

        # ---- conv1: single MXU matmul over the whole batch -----------------------------
        im2col(xp_ref)
        y1 = jnp.dot(w1_ref[...], col_ref[...],
                     preferred_element_type=jnp.float32)          # (Cp, NL) f32
        mean1, var1 = bn_stats(y1)
        scale1 = g1_ref[...] * lax.rsqrt(var1 + EPS)
        shift1 = b1_ref[...] - mean1 * scale1

        # ---- BN1 + ReLU into the padded buffer (mask restores the zero pad ring) -------
        buf_ref[:, :OFF] = jnp.zeros((Cp, OFF), jnp.bfloat16)
        buf_ref[:, OFF + NL:] = jnp.zeros((Cp, OFF), jnp.bfloat16)
        a1 = jnp.maximum(y1 * scale1 + shift1, 0.0) * mask
        buf_ref[:, OFF:OFF + NL] = a1.astype(jnp.bfloat16)

        # ---- conv2: single MXU matmul over the whole batch -----------------------------
        im2col(buf_ref)
        y2 = jnp.dot(w2_ref[...], col_ref[...],
                     preferred_element_type=jnp.float32)          # (Cop, NL) f32
        mean2, var2 = bn_stats(y2)
        sc2 = g2_ref[...] * lax.rsqrt(var2 + EPS)
        sc2_ref[...] = sc2
        sh2_ref[...] = b2_ref[...] - mean2 * sc2
        out_ref[...] = y2        # raw conv2; BN2 affine is fused with the crop outside

    return kernel


@functools.partial(jax.jit, static_argnames=("upsample",))
def upsample_block(x_nchw, w1_oihw, g1, b1, w2_oihw, g2, b2, *, upsample=True):
    """Forward pass of UpsampleBlock (short_cut=False).

    x_nchw: (N, Cin, H0, W0) f32; w*_oihw: PyTorch OIHW conv weights (Co, Ci, 3, 3).
    Returns (N, Cout, s*H0, s*W0) f32, s = 2 if upsample else 1.
    """
    N, Cin, H0, W0 = x_nchw.shape
    Cout = w2_oihw.shape[0]
    scale = 2 if upsample else 1
    H, W = scale * H0, scale * W0
    Hp, Wp = H + 2, W + 2
    Lp = Hp * Wp
    Cp = _round_up(Cin, 8)                 # 8-sublane-aligned channel block per tap
    Cop = _round_up(Cout, 8)
    OFF = _round_up(Wp + 1, 128)           # left/right margin covering every tap shift
    Lpp = _round_up(Lp + Wp + 1, 128)      # per-image lane pitch; zero tail isolates images
    NL = N * Lpp
    L = OFF + NL + OFF

    # ---- activations: exact nearest x2 upsample + zero pad ring + channel-major flat ----
    # (Tiny XLA gather/pad; replaces the former ~1.4 MiB dense 0/1 expansion matmul.)
    x = x_nchw
    if upsample:
        x = jnp.repeat(jnp.repeat(x, 2, axis=2), 2, axis=3)          # (N, Cin, H, W)
    xpad = jnp.pad(x, ((0, 0), (0, 0), (1, 1), (1, 1)))              # (N, Cin, Hp, Wp)
    xcm = jnp.transpose(xpad.reshape(N, Cin, Lp), (1, 0, 2))         # (Cin, N, Lp)
    xcm = jnp.pad(xcm, ((0, Cp - Cin), (0, 0), (0, Lpp - Lp)))       # (Cp, N, Lpp)
    xp = jnp.pad(xcm.reshape(Cp, NL), ((0, 0), (OFF, OFF)))          # (Cp, L)
    xp = xp.astype(jnp.bfloat16)

    # ---- conv weights: OIHW -> (Co_pad, 9*Cp), tap-major / in-channel-minor, bf16 -------
    def pack_w(w, cop):
        co, ci = w.shape[0], w.shape[1]
        w = jnp.transpose(w, (0, 2, 3, 1))                           # (co, ky, kx, ci)
        w = jnp.pad(w, ((0, cop - co), (0, 0), (0, 0), (0, Cp - ci)))
        return w.reshape(cop, 9 * Cp).astype(jnp.bfloat16)

    w1f = pack_w(w1_oihw, Cp)
    w2f = pack_w(w2_oihw, Cop)

    def pack_cb(v, cpad):
        return jnp.pad(v, (0, cpad - v.shape[0])).reshape(cpad, 1).astype(jnp.float32)

    g1r, b1r = pack_cb(g1, Cp), pack_cb(b1, Cp)
    g2r, b2r = pack_cb(g2, Cop), pack_cb(b2, Cop)

    # Interior mask over the (N, Lpp) lane space (1 = real output pixel).
    p = jnp.arange(Lpp)
    ph, pw = p // Wp, p % Wp
    interior = (p < Lp) & (ph >= 1) & (ph <= H) & (pw >= 1) & (pw <= W)
    mask = jnp.tile(interior.astype(jnp.float32), (N,)).reshape(1, NL)

    kernel = _make_kernel(N, Cp, Cop, H, W, Wp, OFF, NL)
    vmem = pl.BlockSpec(memory_space=pltpu.MemorySpace.VMEM)
    # TODO(synk): for shapes that outgrow VMEM (and to shard across v7x's two TensorCores)
    # move to a pipelined grid over N / H-row tiles with per-tile BN partial sums and a
    # small finalize pass; at these shapes the whole working set (<1 MiB) is VMEM-resident.
    y2, sc2, sh2 = pl.pallas_call(
        kernel,
        out_shape=(jax.ShapeDtypeStruct((Cop, NL), jnp.float32),
                   jax.ShapeDtypeStruct((Cop, 1), jnp.float32),
                   jax.ShapeDtypeStruct((Cop, 1), jnp.float32)),
        in_specs=[vmem] * 8,
        out_specs=(vmem, vmem, vmem),
        scratch_shapes=[
            pltpu.VMEM((9 * Cp, NL), jnp.bfloat16),   # im2col matrix (whole batch)
            pltpu.VMEM((Cp, L), jnp.bfloat16),        # padded / shiftable activation buffer
        ],
        compiler_params=pltpu.CompilerParams(vmem_limit_bytes=32 * 1024 * 1024),
    )(xp, w1f, w2f, g1r, b1r, g2r, b2r, mask)

    # BN2 affine fused with the pad-ring crop / layout restore (tiny XLA ops).
    y2 = y2.reshape(Cop, N, Lpp)[:, :, :Lp].reshape(Cop, N, Hp, Wp)
    y2 = (y2[:Cout, :, 1:1 + H, 1:1 + W] * sc2[:Cout, :, None, None]
          + sh2[:Cout, :, None, None])                               # (Cout, N, H, W)
    return jnp.transpose(y2, (1, 0, 2, 3))


def _reference(x_nchw, w1_oihw, g1, b1, w2_oihw, g2, b2, *, upsample=True):
    """Pure-JAX reference matching the PyTorch forward (training-mode BN)."""
    x = x_nchw
    if upsample:
        x = jnp.repeat(jnp.repeat(x, 2, axis=2), 2, axis=3)
    dn = ("NCHW", "OIHW", "NCHW")

    def bn(y, g, b):
        m = jnp.mean(y, axis=(0, 2, 3), keepdims=True)
        v = jnp.mean((y - m) ** 2, axis=(0, 2, 3), keepdims=True)
        return ((y - m) * lax.rsqrt(v + EPS) * g.reshape(1, -1, 1, 1)
                + b.reshape(1, -1, 1, 1))

    y = lax.conv_general_dilated(x, w1_oihw, (1, 1), "SAME", dimension_numbers=dn,
                                 precision=lax.Precision.HIGHEST)
    y = jnp.maximum(bn(y, g1, b1), 0.0)
    y = lax.conv_general_dilated(y, w2_oihw, (1, 1), "SAME", dimension_numbers=dn,
                                 precision=lax.Precision.HIGHEST)
    return bn(y, g2, b2)


if __name__ == "__main__":
    N, Cin, Cout, H0, W0 = 2, 4, 8, 16, 16
    key = jax.random.PRNGKey(0)
    kx, k1, k2, kg1, kb1, kg2, kb2 = jax.random.split(key, 7)

    x = jax.random.normal(kx, (N, Cin, H0, W0), jnp.float32)
    # Conv weights in PyTorch OIHW layout, deterministic init.
    w1 = 0.2 * jax.random.normal(k1, (Cin, Cin, 3, 3), jnp.float32)
    w2 = 0.2 * jax.random.normal(k2, (Cout, Cin, 3, 3), jnp.float32)
    g1 = 1.0 + 0.1 * jax.random.normal(kg1, (Cin,), jnp.float32)
    b1 = 0.1 * jax.random.normal(kb1, (Cin,), jnp.float32)
    g2 = 1.0 + 0.1 * jax.random.normal(kg2, (Cout,), jnp.float32)
    b2 = 0.1 * jax.random.normal(kb2, (Cout,), jnp.float32)

    out = jax.block_until_ready(upsample_block(x, w1, g1, b1, w2, g2, b2, upsample=True))
    ref = jax.block_until_ready(_reference(x, w1, g1, b1, w2, g2, b2, upsample=True))

    assert out.shape == (N, Cout, 2 * H0, 2 * W0), out.shape
    err = float(jnp.max(jnp.abs(out - ref)))
    # Kernel uses bf16 MXU operands with f32 accumulation (same class as default-precision
    # f32 matmuls), so bf16-scale differences vs. the HIGHEST-precision XLA reference are
    # expected after two convs + two batch-norms of unit-std activations.
    assert err < 5e-2, err
    print("KERNEL_OK")
</pallas_src>

<mosaic_0001>
module attributes {stable_mosaic.version = 11 : i64} {
  func.func @kernel(%arg0: memref<8x2816xbf16, #tpu.memory_space<vmem>>, %arg1: memref<8x72xbf16, #tpu.memory_space<vmem>>, %arg2: memref<8x72xbf16, #tpu.memory_space<vmem>>, %arg3: memref<8x1xf32, #tpu.memory_space<vmem>>, %arg4: memref<8x1xf32, #tpu.memory_space<vmem>>, %arg5: memref<8x1xf32, #tpu.memory_space<vmem>>, %arg6: memref<8x1xf32, #tpu.memory_space<vmem>>, %arg7: memref<1x2560xf32, #tpu.memory_space<vmem>>, %arg8: memref<8x2560xf32, #tpu.memory_space<vmem>>, %arg9: memref<8x1xf32, #tpu.memory_space<vmem>>, %arg10: memref<8x1xf32, #tpu.memory_space<vmem>>, %arg11: memref<72x2560xbf16, #tpu.memory_space<vmem>>, %arg12: memref<8x2816xbf16, #tpu.memory_space<vmem>>) attributes {dimension_semantics = [], scalar_prefetch = 0 : i64, scratch_operands = 2 : i64, tpu.core_type = #tpu.core_type<tc>} {
    %c0 = arith.constant 0 : index
    %c0_0 = arith.constant 0 : index
    %0 = vector.load %arg7[%c0, %c0_0] : memref<1x2560xf32, #tpu.memory_space<vmem>>, vector<1x2560xf32>
    %c0_1 = arith.constant 0 : index
    %c93 = arith.constant 93 : index
    %1 = vector.load %arg0[%c0_1, %c93] : memref<8x2816xbf16, #tpu.memory_space<vmem>>, vector<8x2560xbf16>
    %c0_2 = arith.constant 0 : index
    %c0_3 = arith.constant 0 : index
    %2 = vector.load %arg11[%c0_2, %c0_3] : memref<72x2560xbf16, #tpu.memory_space<vmem>>, vector<8x2560xbf16>
    tpu.vector_store %arg11[%c0_2, %c0_3], %1 {strides = array<i32>} : memref<72x2560xbf16, #tpu.memory_space<vmem>>, vector<8x2560xbf16>,
    %c0_4 = arith.constant 0 : index
    %c94 = arith.constant 94 : index
    %3 = vector.load %arg0[%c0_4, %c94] : memref<8x2816xbf16, #tpu.memory_space<vmem>>, vector<8x2560xbf16>
    %c8 = arith.constant 8 : index
    %c0_5 = arith.constant 0 : index
    %4 = vector.load %arg11[%c8, %c0_5] : memref<72x2560xbf16, #tpu.memory_space<vmem>>, vector<8x2560xbf16>
    tpu.vector_store %arg11[%c8, %c0_5], %3 {strides = array<i32>} : memref<72x2560xbf16, #tpu.memory_space<vmem>>, vector<8x2560xbf16>,
    %c0_6 = arith.constant 0 : index
    %c95 = arith.constant 95 : index
    %5 = vector.load %arg0[%c0_6, %c95] : memref<8x2816xbf16, #tpu.memory_space<vmem>>, vector<8x2560xbf16>
    %c16 = arith.constant 16 : index
    %c0_7 = arith.constant 0 : index
    %6 = vector.load %arg11[%c16, %c0_7] : memref<72x2560xbf16, #tpu.memory_space<vmem>>, vector<8x2560xbf16>
    tpu.vector_store %arg11[%c16, %c0_7], %5 {strides = array<i32>} : memref<72x2560xbf16, #tpu.memory_space<vmem>>, vector<8x2560xbf16>,
    %c0_8 = arith.constant 0 : index
    %c127 = arith.constant 127 : index
    %7 = vector.load %arg0[%c0_8, %c127] : memref<8x2816xbf16, #tpu.memory_space<vmem>>, vector<8x2560xbf16>
    %c24 = arith.constant 24 : index
    %c0_9 = arith.constant 0 : index
    %8 = vector.load %arg11[%c24, %c0_9] : memref<72x2560xbf16, #tpu.memory_space<vmem>>, vector<8x2560xbf16>
    tpu.vector_store %arg11[%c24, %c0_9], %7 {strides = array<i32>} : memref<72x2560xbf16, #tpu.memory_space<vmem>>, vector<8x2560xbf16>,
    %c0_10 = arith.constant 0 : index
    %c128 = arith.constant 128 : index
    %9 = vector.load %arg0[%c0_10, %c128] : memref<8x2816xbf16, #tpu.memory_space<vmem>>, vector<8x2560xbf16>
    %c32 = arith.constant 32 : index
    %c0_11 = arith.constant 0 : index
    %10 = vector.load %arg11[%c32, %c0_11] : memref<72x2560xbf16, #tpu.memory_space<vmem>>, vector<8x2560xbf16>
    tpu.vector_store %arg11[%c32, %c0_11], %9 {strides = array<i32>} : memref<72x2560xbf16, #tpu.memory_space<vmem>>, vector<8x2560xbf16>,
    %c0_12 = arith.constant 0 : index
    %c129 = arith.constant 129 : index
    %11 = vector.load %arg0[%c0_12, %c129] : memref<8x2816xbf16, #tpu.memory_space<vmem>>, vector<8x2560xbf16>
    %c40 = arith.constant 40 : index
    %c0_13 = arith.constant 0 : index
    %12 = vector.load %arg11[%c40, %c0_13] : memref<72x2560xbf16, #tpu.memory_space<vmem>>, vector<8x2560xbf16>
    tpu.vector_store %arg11[%c40, %c0_13], %11 {strides = array<i32>} : memref<72x2560xbf16, #tpu.memory_space<vmem>>, vector<8x2560xbf16>,
    %c0_14 = arith.constant 0 : index
    %c161 = arith.constant 161 : index
    %13 = vector.load %arg0[%c0_14, %c161] : memref<8x2816xbf16, #tpu.memory_space<vmem>>, vector<8x2560xbf16>
    %c48 = arith.constant 48 : index
    %c0_15 = arith.constant 0 : index
    %14 = vector.load %arg11[%c48, %c0_15] : memref<72x2560xbf16, #tpu.memory_space<vmem>>, vector<8x2560xbf16>
    tpu.vector_store %arg11[%c48, %c0_15], %13 {strides = array<i32>} : memref<72x2560xbf16, #tpu.memory_space<vmem>>, vector<8x2560xbf16>,
    %c0_16 = arith.constant 0 : index
    %c162 = arith.constant 162 : index
    %15 = vector.load %arg0[%c0_16, %c162] : memref<8x2816xbf16, #tpu.memory_space<vmem>>, vector<8x2560xbf16>
    %c56 = arith.constant 56 : index
    %c0_17 = arith.constant 0 : index
    %16 = vector.load %arg11[%c56, %c0_17] : memref<72x2560xbf16, #tpu.memory_space<vmem>>, vector<8x2560xbf16>
    tpu.vector_store %arg11[%c56, %c0_17], %15 {strides = array<i32>} : memref<72x2560xbf16, #tpu.memory_space<vmem>>, vector<8x2560xbf16>,
    %c0_18 = arith.constant 0 : index
    %c163 = arith.constant 163 : index
    %17 = vector.load %arg0[%c0_18, %c163] : memref<8x2816xbf16, #tpu.memory_space<vmem>>, vector<8x2560xbf16>
    %c64 = arith.constant 64 : index
    %c0_19 = arith.constant 0 : index
    %18 = vector.load %arg11[%c64, %c0_19] : memref<72x2560xbf16, #tpu.memory_space<vmem>>, vector<8x2560xbf16>
    tpu.vector_store %arg11[%c64, %c0_19], %17 {strides = array<i32>} : memref<72x2560xbf16, #tpu.memory_space<vmem>>, vector<8x2560xbf16>,
    %c0_20 = arith.constant 0 : index
    %c0_21 = arith.constant 0 : index
    %19 = vector.load %arg1[%c0_20, %c0_21] : memref<8x72xbf16, #tpu.memory_space<vmem>>, vector<8x72xbf16>
    %c0_22 = arith.constant 0 : index
    %c0_23 = arith.constant 0 : index
    %20 = vector.load %arg11[%c0_22, %c0_23] : memref<72x2560xbf16, #tpu.memory_space<vmem>>, vector<72x2560xbf16>
    %cst = arith.constant dense<0.000000e+00> : vector<8x2560xf32>
    %21 = tpu.matmul %19, %20, %cst {dimension_numbers = #tpu.dot_dimension_numbers<[1], [0], [0], [1], [0, 0, 1, 1], [], []>} : vector<8x72xbf16>, vector<72x2560xbf16>, vector<8x2560xf32> -> vector<8x2560xf32>
    %22 = vector.broadcast %0 : vector<1x2560xf32> to vector<8x2560xf32>
    %23 = arith.mulf %21, %22 : vector<8x2560xf32>
    %cst_24 = arith.constant dense<0.000000e+00> : vector<8xf32>
    %24 = vector.multi_reduction <add>, %23, %cst_24 [1] : vector<8x2560xf32> to vector<8xf32>
    %25 = vector.shape_cast %24 : vector<8xf32> to vector<8x1xf32>
    %cst_25 = arith.constant 4.8828125E-4 : f32
    %26 = vector.broadcast %cst_25 : f32 to vector<8x1xf32>
    %27 = arith.mulf %25, %26 : vector<8x1xf32>
    %28 = vector.broadcast %27 : vector<8x1xf32> to vector<8x2560xf32>
    %29 = arith.subf %21, %28 : vector<8x2560xf32>
    %30 = vector.broadcast %0 : vector<1x2560xf32> to vector<8x2560xf32>
    %31 = arith.mulf %29, %30 : vector<8x2560xf32>
    %32 = arith.mulf %31, %31 : vector<8x2560xf32>
    %cst_26 = arith.constant dense<0.000000e+00> : vector<8xf32>
    %33 = vector.multi_reduction <add>, %32, %cst_26 [1] : vector<8x2560xf32> to vector<8xf32>
    %34 = vector.shape_cast %33 : vector<8xf32> to vector<8x1xf32>
    %cst_27 = arith.constant 4.8828125E-4 : f32
    %35 = vector.broadcast %cst_27 : f32 to vector<8x1xf32>
    %36 = arith.mulf %34, %35 : vector<8x1xf32>
    %c0_28 = arith.constant 0 : index
    %c0_29 = arith.constant 0 : index
    %37 = vector.load %arg3[%c0_28, %c0_29] : memref<8x1xf32, #tpu.memory_space<vmem>>, vector<8x1xf32>
    %cst_30 = arith.constant 9.99999974E-6 : f32
    %38 = vector.broadcast %cst_30 : f32 to vector<8x1xf32>
    %39 = arith.addf %36, %38 : vector<8x1xf32>
    %40 = math.rsqrt %39 : vector<8x1xf32>
    %41 = arith.mulf %37, %40 : vector<8x1xf32>
    %c0_31 = arith.constant 0 : index
    %c0_32 = arith.constant 0 : index
    %42 = vector.load %arg4[%c0_31, %c0_32] : memref<8x1xf32, #tpu.memory_space<vmem>>, vector<8x1xf32>
    %43 = arith.mulf %27, %41 : vector<8x1xf32>
    %44 = arith.subf %42, %43 : vector<8x1xf32>
    %cst_33 = arith.constant 0.000000e+00 : bf16
    %45 = vector.broadcast %cst_33 : bf16 to vector<8x128xbf16>
    %c0_34 = arith.constant 0 : index
    %c0_35 = arith.constant 0 : index
    %46 = vector.load %arg12[%c0_34, %c0_35] : memref<8x2816xbf16, #tpu.memory_space<vmem>>, vector<8x128xbf16>
    tpu.vector_store %arg12[%c0_34, %c0_35], %45 {strides = array<i32>} : memref<8x2816xbf16, #tpu.memory_space<vmem>>, vector<8x128xbf16>,
    %cst_36 = arith.constant 0.000000e+00 : bf16
    %47 = vector.broadcast %cst_36 : bf16 to vector<8x128xbf16>
    %c0_37 = arith.constant 0 : index
    %c2688 = arith.constant 2688 : index
    %48 = vector.load %arg12[%c0_37, %c2688] : memref<8x2816xbf16, #tpu.memory_space<vmem>>, vector<8x128xbf16>
    tpu.vector_store %arg12[%c0_37, %c2688], %47 {strides = array<i32>} : memref<8x2816xbf16, #tpu.memory_space<vmem>>, vector<8x128xbf16>,
    %49 = vector.broadcast %41 : vector<8x1xf32> to vector<8x2560xf32>
    %50 = arith.mulf %21, %49 : vector<8x2560xf32>
    %51 = vector.broadcast %44 : vector<8x1xf32> to vector<8x2560xf32>
    %52 = arith.addf %50, %51 : vector<8x2560xf32>
    %cst_38 = arith.constant 0.000000e+00 : f32
    %53 = vector.broadcast %cst_38 : f32 to vector<8x2560xf32>
    %54 = arith.maximumf %52, %53 : vector<8x2560xf32>
    %55 = vector.broadcast %0 : vector<1x2560xf32> to vector<8x2560xf32>
    %56 = arith.mulf %54, %55 : vector<8x2560xf32>
    %57 = arith.truncf %56 : vector<8x2560xf32> to vector<8x2560xbf16>
    %c0_39 = arith.constant 0 : index
    %c128_40 = arith.constant 128 : index
    %58 = vector.load %arg12[%c0_39, %c128_40] : memref<8x2816xbf16, #tpu.memory_space<vmem>>, vector<8x2560xbf16>
    tpu.vector_store %arg12[%c0_39, %c128_40], %57 {strides = array<i32>} : memref<8x2816xbf16, #tpu.memory_space<vmem>>, vector<8x2560xbf16>,
    %c0_41 = arith.constant 0 : index
    %c93_42 = arith.constant 93 : index
    %59 = vector.load %arg12[%c0_41, %c93_42] : memref<8x2816xbf16, #tpu.memory_space<vmem>>, vector<8x2560xbf16>
    %c0_43 = arith.constant 0 : index
    %c0_44 = arith.constant 0 : index
    %60 = vector.load %arg11[%c0_43, %c0_44] : memref<72x2560xbf16, #tpu.memory_space<vmem>>, vector<8x2560xbf16>
    tpu.vector_store %arg11[%c0_43, %c0_44], %59 {strides = array<i32>} : memref<72x2560xbf16, #tpu.memory_space<vmem>>, vector<8x2560xbf16>,
    %c0_45 = arith.constant 0 : index
    %c94_46 = arith.constant 94 : index
    %61 = vector.load %arg12[%c0_45, %c94_46] : memref<8x2816xbf16, #tpu.memory_space<vmem>>, vector<8x2560xbf16>
    %c8_47 = arith.constant 8 : index
    %c0_48 = arith.constant 0 : index
    %62 = vector.load %arg11[%c8_47, %c0_48] : memref<72x2560xbf16, #tpu.memory_space<vmem>>, vector<8x2560xbf16>
    tpu.vector_store %arg11[%c8_47, %c0_48], %61 {strides = array<i32>} : memref<72x2560xbf16, #tpu.memory_space<vmem>>, vector<8x2560xbf16>,
    %c0_49 = arith.constant 0 : index
    %c95_50 = arith.constant 95 : index
    %63 = vector.load %arg12[%c0_49, %c95_50] : memref<8x2816xbf16, #tpu.memory_space<vmem>>, vector<8x2560xbf16>
    %c16_51 = arith.constant 16 : index
    %c0_52 = arith.constant 0 : index
    %64 = vector.load %arg11[%c16_51, %c0_52] : memref<72x2560xbf16, #tpu.memory_space<vmem>>, vector<8x2560xbf16>
    tpu.vector_store %arg11[%c16_51, %c0_52], %63 {strides = array<i32>} : memref<72x2560xbf16, #tpu.memory_space<vmem>>, vector<8x2560xbf16>,
    %c0_53 = arith.constant 0 : index
    %c127_54 = arith.constant 127 : index
    %65 = vector.load %arg12[%c0_53, %c127_54] : memref<8x2816xbf16, #tpu.memory_space<vmem>>, vector<8x2560xbf16>
    %c24_55 = arith.constant 24 : index
    %c0_56 = arith.constant 0 : index
    %66 = vector.load %arg11[%c24_55, %c0_56] : memref<72x2560xbf16, #tpu.memory_space<vmem>>, vector<8x2560xbf16>
    tpu.vector_store %arg11[%c24_55, %c0_56], %65 {strides = array<i32>} : memref<72x2560xbf16, #tpu.memory_space<vmem>>, vector<8x2560xbf16>,
    %c0_57 = arith.constant 0 : index
    %c128_58 = arith.constant 128 : index
    %67 = vector.load %arg12[%c0_57, %c128_58] : memref<8x2816xbf16, #tpu.memory_space<vmem>>, vector<8x2560xbf16>
    %c32_59 = arith.constant 32 : index
    %c0_60 = arith.constant 0 : index
    %68 = vector.load %arg11[%c32_59, %c0_60] : memref<72x2560xbf16, #tpu.memory_space<vmem>>, vector<8x2560xbf16>
    tpu.vector_store %arg11[%c32_59, %c0_60], %67 {strides = array<i32>} : memref<72x2560xbf16, #tpu.memory_space<vmem>>, vector<8x2560xbf16>,
    %c0_61 = arith.constant 0 : index
    %c129_62 = arith.constant 129 : index
    %69 = vector.load %arg12[%c0_61, %c129_62] : memref<8x2816xbf16, #tpu.memory_space<vmem>>, vector<8x2560xbf16>
    %c40_63 = arith.constant 40 : index
    %c0_64 = arith.constant 0 : index
    %70 = vector.load %arg11[%c40_63, %c0_64] : memref<72x2560xbf16, #tpu.memory_space<vmem>>, vector<8x2560xbf16>
    tpu.vector_store %arg11[%c40_63, %c0_64], %69 {strides = array<i32>} : memref<72x2560xbf16, #tpu.memory_space<vmem>>, vector<8x2560xbf16>,
    %c0_65 = arith.constant 0 : index
    %c161_66 = arith.constant 161 : index
    %71 = vector.load %arg12[%c0_65, %c161_66] : memref<8x2816xbf16, #tpu.memory_space<vmem>>, vector<8x2560xbf16>
    %c48_67 = arith.constant 48 : index
    %c0_68 = arith.constant 0 : index
    %72 = vector.load %arg11[%c48_67, %c0_68] : memref<72x2560xbf16, #tpu.memory_space<vmem>>, vector<8x2560xbf16>
    tpu.vector_store %arg11[%c48_67, %c0_68], %71 {strides = array<i32>} : memref<72x2560xbf16, #tpu.memory_space<vmem>>, vector<8x2560xbf16>,
    %c0_69 = arith.constant 0 : index
    %c162_70 = arith.constant 162 : index
    %73 = vector.load %arg12[%c0_69, %c162_70] : memref<8x2816xbf16, #tpu.memory_space<vmem>>, vector<8x2560xbf16>
    %c56_71 = arith.constant 56 : index
    %c0_72 = arith.constant 0 : index
    %74 = vector.load %arg11[%c56_71, %c0_72] : memref<72x2560xbf16, #tpu.memory_space<vmem>>, vector<8x2560xbf16>
    tpu.vector_store %arg11[%c56_71, %c0_72], %73 {strides = array<i32>} : memref<72x2560xbf16, #tpu.memory_space<vmem>>, vector<8x2560xbf16>,
    %c0_73 = arith.constant 0 : index
    %c163_74 = arith.constant 163 : index
    %75 = vector.load %arg12[%c0_73, %c163_74] : memref<8x2816xbf16, #tpu.memory_space<vmem>>, vector<8x2560xbf16>
    %c64_75 = arith.constant 64 : index
    %c0_76 = arith.constant 0 : index
    %76 = vector.load %arg11[%c64_75, %c0_76] : memref<72x2560xbf16, #tpu.memory_space<vmem>>, vector<8x2560xbf16>
    tpu.vector_store %arg11[%c64_75, %c0_76], %75 {strides = array<i32>} : memref<72x2560xbf16, #tpu.memory_space<vmem>>, vector<8x2560xbf16>,
    %c0_77 = arith.constant 0 : index
    %c0_78 = arith.constant 0 : index
    %77 = vector.load %arg2[%c0_77, %c0_78] : memref<8x72xbf16, #tpu.memory_space<vmem>>, vector<8x72xbf16>
    %c0_79 = arith.constant 0 : index
    %c0_80 = arith.constant 0 : index
    %78 = vector.load %arg11[%c0_79, %c0_80] : memref<72x2560xbf16, #tpu.memory_space<vmem>>, vector<72x2560xbf16>
    %cst_81 = arith.constant dense<0.000000e+00> : vector<8x2560xf32>
    %79 = tpu.matmul %77, %78, %cst_81 {dimension_numbers = #tpu.dot_dimension_numbers<[1], [0], [0], [1], [0, 0, 1, 1], [], []>} : vector<8x72xbf16>, vector<72x2560xbf16>, vector<8x2560xf32> -> vector<8x2560xf32>
    %80 = vector.broadcast %0 : vector<1x2560xf32> to vector<8x2560xf32>
    %81 = arith.mulf %79, %80 : vector<8x2560xf32>
    %cst_82 = arith.constant dense<0.000000e+00> : vector<8xf32>
    %82 = vector.multi_reduction <add>, %81, %cst_82 [1] : vector<8x2560xf32> to vector<8xf32>
    %83 = vector.shape_cast %82 : vector<8xf32> to vector<8x1xf32>
    %cst_83 = arith.constant 4.8828125E-4 : f32
    %84 = vector.broadcast %cst_83 : f32 to vector<8x1xf32>
    %85 = arith.mulf %83, %84 : vector<8x1xf32>
    %86 = vector.broadcast %85 : vector<8x1xf32> to vector<8x2560xf32>
    %87 = arith.subf %79, %86 : vector<8x2560xf32>
    %88 = vector.broadcast %0 : vector<1x2560xf32> to vector<8x2560xf32>
    %89 = arith.mulf %87, %88 : vector<8x2560xf32>
    %90 = arith.mulf %89, %89 : vector<8x2560xf32>
    %cst_84 = arith.constant dense<0.000000e+00> : vector<8xf32>
    %91 = vector.multi_reduction <add>, %90, %cst_84 [1] : vector<8x2560xf32> to vector<8xf32>
    %92 = vector.shape_cast %91 : vector<8xf32> to vector<8x1xf32>
    %cst_85 = arith.constant 4.8828125E-4 : f32
    %93 = vector.broadcast %cst_85 : f32 to vector<8x1xf32>
    %94 = arith.mulf %92, %93 : vector<8x1xf32>
    %c0_86 = arith.constant 0 : index
    %c0_87 = arith.constant 0 : index
    %95 = vector.load %arg5[%c0_86, %c0_87] : memref<8x1xf32, #tpu.memory_space<vmem>>, vector<8x1xf32>
    %cst_88 = arith.constant 9.99999974E-6 : f32
    %96 = vector.broadcast %cst_88 : f32 to vector<8x1xf32>
    %97 = arith.addf %94, %96 : vector<8x1xf32>
    %98 = math.rsqrt %97 : vector<8x1xf32>
    %99 = arith.mulf %95, %98 : vector<8x1xf32>
    %c0_89 = arith.constant 0 : index
    %c0_90 = arith.constant 0 : index
    %100 = vector.load %arg9[%c0_89, %c0_90] : memref<8x1xf32, #tpu.memory_space<vmem>>, vector<8x1xf32>
    tpu.vector_store %arg9[%c0_89, %c0_90], %99 {strides = array<i32>} : memref<8x1xf32, #tpu.memory_space<vmem>>, vector<8x1xf32>,
    %c0_91 = arith.constant 0 : index
    %c0_92 = arith.constant 0 : index
    %101 = vector.load %arg6[%c0_91, %c0_92] : memref<8x1xf32, #tpu.memory_space<vmem>>, vector<8x1xf32>
    %102 = arith.mulf %85, %99 : vector<8x1xf32>
    %103 = arith.subf %101, %102 : vector<8x1xf32>
    %c0_93 = arith.constant 0 : index
    %c0_94 = arith.constant 0 : index
    %104 = vector.load %arg10[%c0_93, %c0_94] : memref<8x1xf32, #tpu.memory_space<vmem>>, vector<8x1xf32>
    tpu.vector_store %arg10[%c0_93, %c0_94], %103 {strides = array<i32>} : memref<8x1xf32, #tpu.memory_space<vmem>>, vector<8x1xf32>,
    %c0_95 = arith.constant 0 : index
    %c0_96 = arith.constant 0 : index
    %105 = vector.load %arg8[%c0_95, %c0_96] : memref<8x2560xf32, #tpu.memory_space<vmem>>, vector<8x2560xf32>
    tpu.vector_store %arg8[%c0_95, %c0_96], %79 {strides = array<i32>} : memref<8x2560xf32, #tpu.memory_space<vmem>>, vector<8x2560xf32>,
    return
  }
}

</mosaic_0001>

<llo_original>
// kernel: upsample_block.1
$region0: #{upsample_block.1}
  #allocation0 [shape = 'u32[]', space=smem, size = 0x4, offset = 0x4, fixed_abs, tag = 'smem constant byte address 0x4 - core index']
  #allocation1 [shape = 'u32[144,128]{1,0:T(1,128)}', space=vmem, size = 0x12000, scoped, tag = 'internal scratch']
  #allocation2 [shape = 'bf16[72,2560]{1,0:T(8,128)(2,1)}', space=vmem, size = 0x5a000, scoped, tag = 'scratch operand']
  #allocation3 [shape = 'bf16[8,2816]{1,0:T(8,128)(2,1)}', space=vmem, size = 0xb000, scoped, tag = 'scratch operand']
  %s0 = inlined_call_operand.vmem [shape: bf16[8,2816], index: 0, kind: input, shape index: {}]
  %s1 = inlined_call_operand.vmem [shape: bf16[8,72], index: 1, kind: input, shape index: {}]
  %s2 = inlined_call_operand.vmem [shape: bf16[8,72], index: 2, kind: input, shape index: {}]
  %s3 = inlined_call_operand.vmem [shape: f32[8,1], index: 3, kind: input, shape index: {}]
  %s4 = inlined_call_operand.vmem [shape: f32[8,1], index: 4, kind: input, shape index: {}]
  %s5 = inlined_call_operand.vmem [shape: f32[8,1], index: 5, kind: input, shape index: {}]
  %s6 = inlined_call_operand.vmem [shape: f32[8,1], index: 6, kind: input, shape index: {}]
  %s7 = inlined_call_operand.vmem [shape: f32[1,2560], index: 7, kind: input, shape index: {}]
  %s8 = inlined_call_operand.vmem [shape: f32[8,2560], index: 8, kind: output, shape index: {0}]
  %s9 = inlined_call_operand.vmem [shape: f32[8,1], index: 9, kind: output, shape index: {1}]
  %s10 = inlined_call_operand.vmem [shape: f32[8,1], index: 10, kind: output, shape index: {2}]
  %11 = xla_tuple %s8, %s9, %s10
  %s12 = sld [smem:[#allocation0]]
  $region58: #{upsample_block.1} parent=0
    _
  %s14 = ssub.s32 1, %s12
  %s15 = scalar_select 0, %s14, %s12
  // Predicated region
  $region2: #{upsample_block.1} parent=0 // pred_check
    _
  $region3: #{upsample_block.1} parent=0 // pred_check_branch
    %17 = sbr.rel (0) target = $region5
  $region4: #{upsample_block.1} parent=0 // pred_region
    _
  $region5: #{upsample_block.1} parent=0 // pred_fallthru
    _
  // Predicated region
  $region6: #{upsample_block.1} parent=0 // pred_check
    _
  $region7: #{upsample_block.1} parent=0 // pred_check_branch
    %19 = sbr.rel (0) target = $region9
  $region8: #{upsample_block.1} parent=0 // pred_region
    _
  $region9: #{upsample_block.1} parent=0 // pred_fallthru
    _
  // Predicated region
  $region10: #{upsample_block.1} parent=0 // pred_check
    _
  $region11: #{upsample_block.1} parent=0 // pred_check_branch
    %21 = sbr.rel (0) target = $region13
  $region12: #{upsample_block.1} parent=0 // pred_region
    _
  $region13: #{upsample_block.1} parent=0 // pred_fallthru
    _
  // Predicated region
  $region14: #{upsample_block.1} parent=0 // pred_check
    _
  $region15: #{upsample_block.1} parent=0 // pred_check_branch
    %23 = sbr.rel (0) target = $region17
  $region16: #{upsample_block.1} parent=0 // pred_region
    _
  $region17: #{upsample_block.1} parent=0 // pred_fallthru
    _
  // Predicated region
  $region18: #{upsample_block.1} parent=0 // pred_check
    _
  $region19: #{upsample_block.1} parent=0 // pred_check_branch
    %25 = sbr.rel (0) target = $region21
  $region20: #{upsample_block.1} parent=0 // pred_region
    _
  $region21: #{upsample_block.1} parent=0 // pred_fallthru
    _
  // Predicated region
  $region22: #{upsample_block.1} parent=0 // pred_check
    _
  $region23: #{upsample_block.1} parent=0 // pred_check_branch
    %27 = sbr.rel (0) target = $region25
  $region24: #{upsample_block.1} parent=0 // pred_region
    _
  $region25: #{upsample_block.1} parent=0 // pred_fallthru
    _
  // Predicated region
  $region26: #{upsample_block.1} parent=0 // pred_check
    _
  $region27: #{upsample_block.1} parent=0 // pred_check_branch
    %29 = sbr.rel (0) target = $region29
  $region28: #{upsample_block.1} parent=0 // pred_region
    _
  $region29: #{upsample_block.1} parent=0 // pred_fallthru
    _
  // Predicated region
  $region30: #{upsample_block.1} parent=0 // pred_check
    _
  $region31: #{upsample_block.1} parent=0 // pred_check_branch
    %31 = sbr.rel (0) target = $region33
  $region32: #{upsample_block.1} parent=0 // pred_region
    _
  $region33: #{upsample_block.1} parent=0 // pred_fallthru
    _
  %v33 = vld [vmem:[%s7] sm:$0xff]
  %v34 = vld [vmem:[%s7 + $0x8] sm:$0xff]
  %v35 = vld [vmem:[%s7 + $0x10] sm:$0xf]
  %v36 = vld [vmem:[%s0] sm:$0xff]
  %v37 = vld [vmem:[%s0 + $0x8] sm:$0xff]
  %v38 = vld [vmem:[%s0 + $0x10] sm:$0xff]
  %v39 = vld [vmem:[%s0 + $0x18] sm:$0xff]
  %v40 = vld [vmem:[%s0 + $0x20] sm:$0xff]
  %v41 = vld [vmem:[%s0 + $0x28] sm:$0xff]
  %v42 = vld [vmem:[%s0 + $0x30] sm:$0xff]
  %v43 = vld [vmem:[%s0 + $0x38] sm:$0xff]
  %v44 = vld [vmem:[%s0 + $0x40] sm:$0xff]
  %v45 = vld [vmem:[%s0 + $0x48] sm:$0xff]
  %v46 = vld [vmem:[%s0 + $0x50] sm:$0xf]
  %58 = vrot.lane.b32.xlu0 %v36, 35
  %v59 = vpop.permute.xlu0 %58
  %60 = vrot.lane.b32.xlu0 %v37, 35
  %v61 = vpop.permute.xlu0 %60
  %62 = vrot.lane.b32.xlu0 %v38, 35
  %v63 = vpop.permute.xlu0 %62
  %64 = vrot.lane.b32.xlu0 %v39, 35
  %v65 = vpop.permute.xlu0 %64
  %66 = vrot.lane.b32.xlu0 %v40, 35
  %v67 = vpop.permute.xlu0 %66
  %68 = vrot.lane.b32.xlu0 %v41, 35
  %v69 = vpop.permute.xlu0 %68
  %70 = vrot.lane.b32.xlu0 %v42, 35
  %v71 = vpop.permute.xlu0 %70
  %72 = vrot.lane.b32.xlu0 %v43, 35
  %v73 = vpop.permute.xlu0 %72
  %74 = vrot.lane.b32.xlu0 %v44, 35
  %v75 = vpop.permute.xlu0 %74
  %76 = vrot.lane.b32.xlu0 %v45, 35
  %v77 = vpop.permute.xlu0 %76
  %78 = vrot.lane.b32.xlu0 %v46, 35
  %v79 = vpop.permute.xlu0 %78
  %v80 = vrot.slane %v59, 4
  %v81 = vrot.slane %v61, 4
  %v82 = vrot.slane %v63, 4
  %v83 = vrot.slane %v65, 4
  %v84 = vrot.slane %v67, 4
  %v85 = vrot.slane %v69, 4
  %v86 = vrot.slane %v71, 4
  %v87 = vrot.slane %v73, 4
  %v88 = vrot.slane %v75, 4
  %v89 = vrot.slane %v77, 4
  %v90 = vrot.slane %v79, 4
  %vm91 = vcmask 1043456
  %v92 = vsel %vm91, %v80, %v81
  %vm93 = vcmask 285696
  %v94 = vsel %vm93, %v59, %v92
  %v95 = vsel %vm91, %v81, %v82
  %v96 = vsel %vm93, %v61, %v95
  %v97 = vsel %vm91, %v82, %v83
  %v98 = vsel %vm93, %v63, %v97
  %v99 = vsel %vm91, %v83, %v84
  %v100 = vsel %vm93, %v65, %v99
  %v101 = vsel %vm91, %v84, %v85
  %v102 = vsel %vm93, %v67, %v101
  %v103 = vsel %vm91, %v85, %v86
  %v104 = vsel %vm93, %v69, %v103
  %v105 = vsel %vm91, %v86, %v87
  %v106 = vsel %vm93, %v71, %v105
  %v107 = vsel %vm91, %v87, %v88
  %v108 = vsel %vm93, %v73, %v107
  %v109 = vsel %vm91, %v88, %v89
  %v110 = vsel %vm93, %v75, %v109
  %v111 = vsel %vm91, %v89, %v90
  %v112 = vsel %vm93, %v77, %v111
  %123 = vst [vmem:[#allocation2] sm:$0xff] %v94
  %124 = vst [vmem:[#allocation2 + $0x8] sm:$0xff] %v96
  %125 = vst [vmem:[#allocation2 + $0x10] sm:$0xff] %v98
  %126 = vst [vmem:[#allocation2 + $0x18] sm:$0xff] %v100
  %127 = vst [vmem:[#allocation2 + $0x20] sm:$0xff] %v102
  %128 = vst [vmem:[#allocation2 + $0x28] sm:$0xff] %v104
  %129 = vst [vmem:[#allocation2 + $0x30] sm:$0xff] %v106
  %130 = vst [vmem:[#allocation2 + $0x38] sm:$0xff] %v108
  %131 = vst [vmem:[#allocation2 + $0x40] sm:$0xff] %v110
  %132 = vst [vmem:[#allocation2 + $0x48] sm:$0xff] %v112
  %v133 = vld [vmem:[%s0] sm:$0xff]
  %v134 = vld [vmem:[%s0 + $0x8] sm:$0xff]
  %v135 = vld [vmem:[%s0 + $0x10] sm:$0xff]
  %v136 = vld [vmem:[%s0 + $0x18] sm:$0xff]
  %v137 = vld [vmem:[%s0 + $0x20] sm:$0xff]
  %v138 = vld [vmem:[%s0 + $0x28] sm:$0xff]
  %v139 = vld [vmem:[%s0 + $0x30] sm:$0xff]
  %v140 = vld [vmem:[%s0 + $0x38] sm:$0xff]
  %v141 = vld [vmem:[%s0 + $0x40] sm:$0xff]
  %v142 = vld [vmem:[%s0 + $0x48] sm:$0xff]
  %v143 = vld [vmem:[%s0 + $0x50] sm:$0xf]
  %155 = vrot.lane.b32.xlu0 %v133, 34
  %v156 = vpop.permute.xlu0 %155
  %157 = vrot.lane.b32.xlu0 %v134, 34
  %v158 = vpop.permute.xlu0 %157
  %159 = vrot.lane.b32.xlu0 %v135, 34
  %v160 = vpop.permute.xlu0 %159
  %161 = vrot.lane.b32.xlu0 %v136, 34
  %v162 = vpop.permute.xlu0 %161
  %163 = vrot.lane.b32.xlu0 %v137, 34
  %v164 = vpop.permute.xlu0 %163
  %165 = vrot.lane.b32.xlu0 %v138, 34
  %v166 = vpop.permute.xlu0 %165
  %167 = vrot.lane.b32.xlu0 %v139, 34
  %v168 = vpop.permute.xlu0 %167
  %169 = vrot.lane.b32.xlu0 %v140, 34
  %v170 = vpop.permute.xlu0 %169
  %171 = vrot.lane.b32.xlu0 %v141, 34
  %v172 = vpop.permute.xlu0 %171
  %173 = vrot.lane.b32.xlu0 %v142, 34
  %v174 = vpop.permute.xlu0 %173
  %175 = vrot.lane.b32.xlu0 %v143, 34
  %v176 = vpop.permute.xlu0 %175
  %v177 = vrot.slane %v156, 4
  %v178 = vrot.slane %v158, 4
  %v179 = vrot.slane %v160, 4
  %v180 = vrot.slane %v162, 4
  %v181 = vrot.slane %v164, 4
  %v182 = vrot.slane %v166, 4
  %v183 = vrot.slane %v168, 4
  %v184 = vrot.slane %v170, 4
  %v185 = vrot.slane %v172, 4
  %v186 = vrot.slane %v174, 4
  %v187 = vrot.slane %v176, 4
  %v188 = vsel %vm91, %v177, %v178
  %vm189 = vcmask 277504
  %v190 = vsel %vm189, %v156, %v188
  %v191 = vsel %vm91, %v178, %v179
  %v192 = vsel %vm189, %v158, %v191
  %v193 = vsel %vm91, %v179, %v180
  %v194 = vsel %vm189, %v160, %v193
  %v195 = vsel %vm91, %v180, %v181
  %v196 = vsel %vm189, %v162, %v195
  %v197 = vsel %vm91, %v181, %v182
  %v198 = vsel %vm189, %v164, %v197
  %v199 = vsel %vm91, %v182, %v183
  %v200 = vsel %vm189, %v166, %v199
  %v201 = vsel %vm91, %v183, %v184
  %v202 = vsel %vm189, %v168, %v201
  %v203 = vsel %vm91, %v184, %v185
  %v204 = vsel %vm189, %v170, %v203
  %v205 = vsel %vm91, %v185, %v186
  %v206 = vsel %vm189, %v172, %v205
  %v207 = vsel %vm91, %v186, %v187
  %v208 = vsel %vm189, %v174, %v207
  %219 = vst [vmem:[#allocation2 + $0x50] sm:$0xff] %v190
  %220 = vst [vmem:[#allocation2 + $0x58] sm:$0xff] %v192
  %221 = vst [vmem:[#allocation2 + $0x60] sm:$0xff] %v194
  %222 = vst [vmem:[#allocation2 + $0x68] sm:$0xff] %v196
  %223 = vst [vmem:[#allocation2 + $0x70] sm:$0xff] %v198
  %224 = vst [vmem:[#allocation2 + $0x78] sm:$0xff] %v200
  %225 = vst [vmem:[#allocation2 + $0x80] sm:$0xff] %v202
  %226 = vst [vmem:[#allocation2 + $0x88] sm:$0xff] %v204
  %227 = vst [vmem:[#allocation2 + $0x90] sm:$0xff] %v206
  %228 = vst [vmem:[#allocation2 + $0x98] sm:$0xff] %v208
  %v229 = vld [vmem:[%s0] sm:$0xff]
  %v230 = vld [vmem:[%s0 + $0x8] sm:$0xff]
  %v231 = vld [vmem:[%s0 + $0x10] sm:$0xff]
  %v232 = vld [vmem:[%s0 + $0x18] sm:$0xff]
  %v233 = vld [vmem:[%s0 + $0x20] sm:$0xff]
  %v234 = vld [vmem:[%s0 + $0x28] sm:$0xff]
  %v235 = vld [vmem:[%s0 + $0x30] sm:$0xff]
  %v236 = vld [vmem:[%s0 + $0x38] sm:$0xff]
  %v237 = vld [vmem:[%s0 + $0x40] sm:$0xff]
  %v238 = vld [vmem:[%s0 + $0x48] sm:$0xff]
  %v239 = vld [vmem:[%s0 + $0x50] sm:$0xf]
  %251 = vrot.lane.b32.xlu0 %v229, 33
  %v252 = vpop.permute.xlu0 %251
  %253 = vrot.lane.b32.xlu0 %v230, 33
  %v254 = vpop.permute.xlu0 %253
  %255 = vrot.lane.b32.xlu0 %v231, 33
  %v256 = vpop.permute.xlu0 %255
  %257 = vrot.lane.b32.xlu0 %v232, 33
  %v258 = vpop.permute.xlu0 %257
  %259 = vrot.lane.b32.xlu0 %v233, 33
  %v260 = vpop.permute.xlu0 %259
  %261 = vrot.lane.b32.xlu0 %v234, 33
  %v262 = vpop.permute.xlu0 %261
  %263 = vrot.lane.b32.xlu0 %v235, 33
  %v264 = vpop.permute.xlu0 %263
  %265 = vrot.lane.b32.xlu0 %v236, 33
  %v266 = vpop.permute.xlu0 %265
  %267 = vrot.lane.b32.xlu0 %v237, 33
  %v268 = vpop.permute.xlu0 %267
  %269 = vrot.lane.b32.xlu0 %v238, 33
  %v270 = vpop.permute.xlu0 %269
  %271 = vrot.lane.b32.xlu0 %v239, 33
  %v272 = vpop.permute.xlu0 %271
  %v273 = vrot.slane %v252, 4
  %v274 = vrot.slane %v254, 4
  %v275 = vrot.slane %v256, 4
  %v276 = vrot.slane %v258, 4
  %v277 = vrot.slane %v260, 4
  %v278 = vrot.slane %v262, 4
  %v279 = vrot.slane %v264, 4
  %v280 = vrot.slane %v266, 4
  %v281 = vrot.slane %v268, 4
  %v282 = vrot.slane %v270, 4
  %v283 = vrot.slane %v272, 4
  %v284 = vsel %vm91, %v273, %v274
  %vm285 = vcmask 269312
  %v286 = vsel %vm285, %v252, %v284
  %v287 = vsel %vm91, %v274, %v275
  %v288 = vsel %vm285, %v254, %v287
  %v289 = vsel %vm91, %v275, %v276
  %v290 = vsel %vm285, %v256, %v289
  %v291 = vsel %vm91, %v276, %v277
  %v292 = vsel %vm285, %v258, %v291
  %v293 = vsel %vm91, %v277, %v278
  %v294 = vsel %vm285, %v260, %v293
  %v295 = vsel %vm91, %v278, %v279
  %v296 = vsel %vm285, %v262, %v295
  %v297 = vsel %vm91, %v279, %v280
  %v298 = vsel %vm285, %v264, %v297
  %v299 = vsel %vm91, %v280, %v281
  %v300 = vsel %vm285, %v266, %v299
  %v301 = vsel %vm91, %v281, %v282
  %v302 = vsel %vm285, %v268, %v301
  %v303 = vsel %vm91, %v282, %v283
  %v304 = vsel %vm285, %v270, %v303
  %315 = vst [vmem:[#allocation2 + $0xa0] sm:$0xff] %v286
  %316 = vst [vmem:[#allocation2 + $0xa8] sm:$0xff] %v288
  %317 = vst [vmem:[#allocation2 + $0xb0] sm:$0xff] %v290
  %318 = vst [vmem:[#allocation2 + $0xb8] sm:$0xff] %v292
  %319 = vst [vmem:[#allocation2 + $0xc0] sm:$0xff] %v294
  %320 = vst [vmem:[#allocation2 + $0xc8] sm:$0xff] %v296
  %321 = vst [vmem:[#allocation2 + $0xd0] sm:$0xff] %v298
  %322 = vst [vmem:[#allocation2 + $0xd8] sm:$0xff] %v300
  %323 = vst [vmem:[#allocation2 + $0xe0] sm:$0xff] %v302
  %324 = vst [vmem:[#allocation2 + $0xe8] sm:$0xff] %v304
  %v325 = vld [vmem:[%s0] sm:$0xff]
  %v326 = vld [vmem:[%s0 + $0x8] sm:$0xff]
  %v327 = vld [vmem:[%s0 + $0x10] sm:$0xff]
  %v328 = vld [vmem:[%s0 + $0x18] sm:$0xff]
  %v329 = vld [vmem:[%s0 + $0x20] sm:$0xff]
  %v330 = vld [vmem:[%s0 + $0x28] sm:$0xff]
  %v331 = vld [vmem:[%s0 + $0x30] sm:$0xff]
  %v332 = vld [vmem:[%s0 + $0x38] sm:$0xff]
  %v333 = vld [vmem:[%s0 + $0x40] sm:$0xff]
  %v334 = vld [vmem:[%s0 + $0x48] sm:$0xff]
  %v335 = vld [vmem:[%s0 + $0x50] sm:$0xf]
  %347 = vrot.lane.b32.xlu0 %v325, 1
  %v348 = vpop.permute.xlu0 %347
  %349 = vrot.lane.b32.xlu0 %v326, 1
  %v350 = vpop.permute.xlu0 %349
  %351 = vrot.lane.b32.xlu0 %v327, 1
  %v352 = vpop.permute.xlu0 %351
  %353 = vrot.lane.b32.xlu0 %v328, 1
  %v354 = vpop.permute.xlu0 %353
  %355 = vrot.lane.b32.xlu0 %v329, 1
  %v356 = vpop.permute.xlu0 %355
  %357 = vrot.lane.b32.xlu0 %v330, 1
  %v358 = vpop.permute.xlu0 %357
  %359 = vrot.lane.b32.xlu0 %v331, 1
  %v360 = vpop.permute.xlu0 %359
  %361 = vrot.lane.b32.xlu0 %v332, 1
  %v362 = vpop.permute.xlu0 %361
  %363 = vrot.lane.b32.xlu0 %v333, 1
  %v364 = vpop.permute.xlu0 %363
  %365 = vrot.lane.b32.xlu0 %v334, 1
  %v366 = vpop.permute.xlu0 %365
  %367 = vrot.lane.b32.xlu0 %v335, 1
  %v368 = vpop.permute.xlu0 %367
  %v369 = vrot.slane %v348, 4
  %v370 = vrot.slane %v350, 4
  %v371 = vrot.slane %v352, 4
  %v372 = vrot.slane %v354, 4
  %v373 = vrot.slane %v356, 4
  %v374 = vrot.slane %v358, 4
  %v375 = vrot.slane %v360, 4
  %v376 = vrot.slane %v362, 4
  %v377 = vrot.slane %v364, 4
  %v378 = vrot.slane %v366, 4
  %v379 = vrot.slane %v368, 4
  %v380 = vsel %vm91, %v369, %v370
  %vm381 = vcmask 7168
  %v382 = vsel %vm381, %v348, %v380
  %v383 = vsel %vm91, %v370, %v371
  %v384 = vsel %vm381, %v350, %v383
  %v385 = vsel %vm91, %v371, %v372
  %v386 = vsel %vm381, %v352, %v385
  %v387 = vsel %vm91, %v372, %v373
  %v388 = vsel %vm381, %v354, %v387
  %v389 = vsel %vm91, %v373, %v374
  %v390 = vsel %vm381, %v356, %v389
  %v391 = vsel %vm91, %v374, %v375
  %v392 = vsel %vm381, %v358, %v391
  %v393 = vsel %vm91, %v375, %v376
  %v394 = vsel %vm381, %v360, %v393
  %v395 = vsel %vm91, %v376, %v377
  %v396 = vsel %vm381, %v362, %v395
  %v397 = vsel %vm91, %v377, %v378
  %v398 = vsel %vm381, %v364, %v397
  %v399 = vsel %vm91, %v378, %v379
  %v400 = vsel %vm381, %v366, %v399
  %411 = vst [vmem:[#allocation2 + $0xf0] sm:$0xff] %v382
  %412 = vst [vmem:[#allocation2 + $0xf8] sm:$0xff] %v384
  %413 = vst [vmem:[#allocation2 + $0x100] sm:$0xff] %v386
  %414 = vst [vmem:[#allocation2 + $0x108] sm:$0xff] %v388
  %415 = vst [vmem:[#allocation2 + $0x110] sm:$0xff] %v390
  %416 = vst [vmem:[#allocation2 + $0x118] sm:$0xff] %v392
  %417 = vst [vmem:[#allocation2 + $0x120] sm:$0xff] %v394
  %418 = vst [vmem:[#allocation2 + $0x128] sm:$0xff] %v396
  %419 = vst [vmem:[#allocation2 + $0x130] sm:$0xff] %v398
  %420 = vst [vmem:[#allocation2 + $0x138] sm:$0xff] %v400
  %v421 = vld [vmem:[%s0 + $0x4] sm:$0xff]
  %v422 = vld [vmem:[%s0 + $0xc] sm:$0xff]
  %v423 = vld [vmem:[%s0 + $0x14] sm:$0xff]
  %v424 = vld [vmem:[%s0 + $0x1c] sm:$0xff]
  %v425 = vld [vmem:[%s0 + $0x24] sm:$0xff]
  %v426 = vld [vmem:[%s0 + $0x2c] sm:$0xff]
  %v427 = vld [vmem:[%s0 + $0x34] sm:$0xff]
  %v428 = vld [vmem:[%s0 + $0x3c] sm:$0xff]
  %v429 = vld [vmem:[%s0 + $0x44] sm:$0xff]
  %v430 = vld [vmem:[%s0 + $0x4c] sm:$0xff]
  %431 = vst [vmem:[#allocation2 + $0x140] sm:$0xff] %v421
  %432 = vst [vmem:[#allocation2 + $0x148] sm:$0xff] %v422
  %433 = vst [vmem:[#allocation2 + $0x150] sm:$0xff] %v423
  %434 = vst [vmem:[#allocation2 + $0x158] sm:$0xff] %v424
  %435 = vst [vmem:[#allocation2 + $0x160] sm:$0xff] %v425
  %436 = vst [vmem:[#allocation2 + $0x168] sm:$0xff] %v426
  %437 = vst [vmem:[#allocation2 + $0x170] sm:$0xff] %v427
  %438 = vst [vmem:[#allocation2 + $0x178] sm:$0xff] %v428
  %439 = vst [vmem:[#allocation2 + $0x180] sm:$0xff] %v429
  %440 = vst [vmem:[#allocation2 + $0x188] sm:$0xff] %v430
  %v441 = vld [vmem:[%s0 + $0x4] sm:$0xff]
  %v442 = vld [vmem:[%s0 + $0xc] sm:$0xff]
  %v443 = vld [vmem:[%s0 + $0x14] sm:$0xff]
  %v444 = vld [vmem:[%s0 + $0x1c] sm:$0xff]
  %v445 = vld [vmem:[%s0 + $0x24] sm:$0xff]
  %v446 = vld [vmem:[%s0 + $0x2c] sm:$0xff]
  %v447 = vld [vmem:[%s0 + $0x34] sm:$0xff]
  %v448 = vld [vmem:[%s0 + $0x3c] sm:$0xff]
  %v449 = vld [vmem:[%s0 + $0x44] sm:$0xff]
  %v450 = vld [vmem:[%s0 + $0x4c] sm:$0xff]
  %v451 = vld [vmem:[%s0 + $0x54] sm:$0xf]
  %463 = vrot.lane.b32.xlu0 %v441, 127
  %v464 = vpop.permute.xlu0 %463
  %465 = vrot.lane.b32.xlu0 %v442, 127
  %v466 = vpop.permute.xlu0 %465
  %467 = vrot.lane.b32.xlu0 %v443, 127
  %v468 = vpop.permute.xlu0 %467
  %469 = vrot.lane.b32.xlu0 %v444, 127
  %v470 = vpop.permute.xlu0 %469
  %471 = vrot.lane.b32.xlu0 %v445, 127
  %v472 = vpop.permute.xlu0 %471
  %473 = vrot.lane.b32.xlu0 %v446, 127
  %v474 = vpop.permute.xlu0 %473
  %475 = vrot.lane.b32.xlu0 %v447, 127
  %v476 = vpop.permute.xlu0 %475
  %477 = vrot.lane.b32.xlu0 %v448, 127
  %v478 = vpop.permute.xlu0 %477
  %479 = vrot.lane.b32.xlu0 %v449, 127
  %v480 = vpop.permute.xlu0 %479
  %481 = vrot.lane.b32.xlu0 %v450, 127
  %v482 = vpop.permute.xlu0 %481
  %483 = vrot.lane.b32.xlu0 %v451, 127
  %v484 = vpop.permute.xlu0 %483
  %v485 = vrot.slane %v464, 4
  %v486 = vrot.slane %v466, 4
  %v487 = vrot.slane %v468, 4
  %v488 = vrot.slane %v470, 4
  %v489 = vrot.slane %v472, 4
  %v490 = vrot.slane %v474, 4
  %v491 = vrot.slane %v476, 4
  %v492 = vrot.slane %v478, 4
  %v493 = vrot.slane %v480, 4
  %v494 = vrot.slane %v482, 4
  %v495 = vrot.slane %v484, 4
  %v496 = vsel %vm91, %v485, %v486
  %vm497 = vcmask 1039360
  %v498 = vsel %vm497, %v464, %v496
  %v499 = vsel %vm91, %v486, %v487
  %v500 = vsel %vm497, %v466, %v499
  %v501 = vsel %vm91, %v487, %v488
  %v502 = vsel %vm497, %v468, %v501
  %v503 = vsel %vm91, %v488, %v489
  %v504 = vsel %vm497, %v470, %v503
  %v505 = vsel %vm91, %v489, %v490
  %v506 = vsel %vm497, %v472, %v505
  %v507 = vsel %vm91, %v490, %v491
  %v508 = vsel %vm497, %v474, %v507
  %v509 = vsel %vm91, %v491, %v492
  %v510 = vsel %vm497, %v476, %v509
  %v511 = vsel %vm91, %v492, %v493
  %v512 = vsel %vm497, %v478, %v511
  %v513 = vsel %vm91, %v493, %v494
  %v514 = vsel %vm497, %v480, %v513
  %v515 = vsel %vm91, %v494, %v495
  %v516 = vsel %vm497, %v482, %v515
  %527 = vst [vmem:[#allocation2 + $0x190] sm:$0xff] %v498
  %528 = vst [vmem:[#allocation2 + $0x198] sm:$0xff] %v500
  %529 = vst [vmem:[#allocation2 + $0x1a0] sm:$0xff] %v502
  %530 = vst [vmem:[#allocation2 + $0x1a8] sm:$0xff] %v504
  %531 = vst [vmem:[#allocation2 + $0x1b0] sm:$0xff] %v506
  %532 = vst [vmem:[#allocation2 + $0x1b8] sm:$0xff] %v508
  %533 = vst [vmem:[#allocation2 + $0x1c0] sm:$0xff] %v510
  %534 = vst [vmem:[#allocation2 + $0x1c8] sm:$0xff] %v512
  %535 = vst [vmem:[#allocation2 + $0x1d0] sm:$0xff] %v514
  %536 = vst [vmem:[#allocation2 + $0x1d8] sm:$0xff] %v516
  %v537 = vld [vmem:[%s0 + $0x4] sm:$0xff]
  %v538 = vld [vmem:[%s0 + $0xc] sm:$0xff]
  %v539 = vld [vmem:[%s0 + $0x14] sm:$0xff]
  %v540 = vld [vmem:[%s0 + $0x1c] sm:$0xff]
  %v541 = vld [vmem:[%s0 + $0x24] sm:$0xff]
  %v542 = vld [vmem:[%s0 + $0x2c] sm:$0xff]
  %v543 = vld [vmem:[%s0 + $0x34] sm:$0xff]
  %v544 = vld [vmem:[%s0 + $0x3c] sm:$0xff]
  %v545 = vld [vmem:[%s0 + $0x44] sm:$0xff]
  %v546 = vld [vmem:[%s0 + $0x4c] sm:$0xff]
  %v547 = vld [vmem:[%s0 + $0x54] sm:$0xf]
  %559 = vrot.lane.b32.xlu0 %v537, 95
  %v560 = vpop.permute.xlu0 %559
  %561 = vrot.lane.b32.xlu0 %v538, 95
  %v562 = vpop.permute.xlu0 %561
  %563 = vrot.lane.b32.xlu0 %v539, 95
  %v564 = vpop.permute.xlu0 %563
  %565 = vrot.lane.b32.xlu0 %v540, 95
  %v566 = vpop.permute.xlu0 %565
  %567 = vrot.lane.b32.xlu0 %v541, 95
  %v568 = vpop.permute.xlu0 %567
  %569 = vrot.lane.b32.xlu0 %v542, 95
  %v570 = vpop.permute.xlu0 %569
  %571 = vrot.lane.b32.xlu0 %v543, 95
  %v572 = vpop.permute.xlu0 %571
  %573 = vrot.lane.b32.xlu0 %v544, 95
  %v574 = vpop.permute.xlu0 %573
  %575 = vrot.lane.b32.xlu0 %v545, 95
  %v576 = vpop.permute.xlu0 %575
  %577 = vrot.lane.b32.xlu0 %v546, 95
  %v578 = vpop.permute.xlu0 %577
  %579 = vrot.lane.b32.xlu0 %v547, 95
  %v580 = vpop.permute.xlu0 %579
  %v581 = vrot.slane %v560, 4
  %v582 = vrot.slane %v562, 4
  %v583 = vrot.slane %v564, 4
  %v584 = vrot.slane %v566, 4
  %v585 = vrot.slane %v568, 4
  %v586 = vrot.slane %v570, 4
  %v587 = vrot.slane %v572, 4
  %v588 = vrot.slane %v574, 4
  %v589 = vrot.slane %v576, 4
  %v590 = vrot.slane %v578, 4
  %v591 = vrot.slane %v580, 4
  %v592 = vsel %vm91, %v581, %v582
  %vm593 = vcmask 777216
  %v594 = vsel %vm593, %v560, %v592
  %v595 = vsel %vm91, %v582, %v583
  %v596 = vsel %vm593, %v562, %v595
  %v597 = vsel %vm91, %v583, %v584
  %v598 = vsel %vm593, %v564, %v597
  %v599 = vsel %vm91, %v584, %v585
  %v600 = vsel %vm593, %v566, %v599
  %v601 = vsel %vm91, %v585, %v586
  %v602 = vsel %vm593, %v568, %v601
  %v603 = vsel %vm91, %v586, %v587
  %v604 = vsel %vm593, %v570, %v603
  %v605 = vsel %vm91, %v587, %v588
  %v606 = vsel %vm593, %v572, %v605
  %v607 = vsel %vm91, %v588, %v589
  %v608 = vsel %vm593, %v574, %v607
  %v609 = vsel %vm91, %v589, %v590
  %v610 = vsel %vm593, %v576, %v609
  %v611 = vsel %vm91, %v590, %v591
  %v612 = vsel %vm593, %v578, %v611
  %623 = vst [vmem:[#allocation2 + $0x1e0] sm:$0xff] %v594
  %624 = vst [vmem:[#allocation2 + $0x1e8] sm:$0xff] %v596
  %625 = vst [vmem:[#allocation2 + $0x1f0] sm:$0xff] %v598
  %626 = vst [vmem:[#allocation2 + $0x1f8] sm:$0xff] %v600
  %627 = vst [vmem:[#allocation2 + $0x200] sm:$0xff] %v602
  %628 = vst [vmem:[#allocation2 + $0x208] sm:$0xff] %v604
  %629 = vst [vmem:[#allocation2 + $0x210] sm:$0xff] %v606
  %630 = vst [vmem:[#allocation2 + $0x218] sm:$0xff] %v608
  %631 = vst [vmem:[#allocation2 + $0x220] sm:$0xff] %v610
  %632 = vst [vmem:[#allocation2 + $0x228] sm:$0xff] %v612
  %v633 = vld [vmem:[%s0 + $0x4] sm:$0xff]
  %v634 = vld [vmem:[%s0 + $0xc] sm:$0xff]
  %v635 = vld [vmem:[%s0 + $0x14] sm:$0xff]
  %v636 = vld [vmem:[%s0 + $0x1c] sm:$0xff]
  %v637 = vld [vmem:[%s0 + $0x24] sm:$0xff]
  %v638 = vld [vmem:[%s0 + $0x2c] sm:$0xff]
  %v639 = vld [vmem:[%s0 + $0x34] sm:$0xff]
  %v640 = vld [vmem:[%s0 + $0x3c] sm:$0xff]
  %v641 = vld [vmem:[%s0 + $0x44] sm:$0xff]
  %v642 = vld [vmem:[%s0 + $0x4c] sm:$0xff]
  %v643 = vld [vmem:[%s0 + $0x54] sm:$0xf]
  %655 = vrot.lane.b32.xlu0 %v633, 94
  %v656 = vpop.permute.xlu0 %655
  %657 = vrot.lane.b32.xlu0 %v634, 94
  %v658 = vpop.permute.xlu0 %657
  %659 = vrot.lane.b32.xlu0 %v635, 94
  %v660 = vpop.permute.xlu0 %659
  %661 = vrot.lane.b32.xlu0 %v636, 94
  %v662 = vpop.permute.xlu0 %661
  %663 = vrot.lane.b32.xlu0 %v637, 94
  %v664 = vpop.permute.xlu0 %663
  %665 = vrot.lane.b32.xlu0 %v638, 94
  %v666 = vpop.permute.xlu0 %665
  %667 = vrot.lane.b32.xlu0 %v639, 94
  %v668 = vpop.permute.xlu0 %667
  %669 = vrot.lane.b32.xlu0 %v640, 94
  %v670 = vpop.permute.xlu0 %669
  %671 = vrot.lane.b32.xlu0 %v641, 94
  %v672 = vpop.permute.xlu0 %671
  %673 = vrot.lane.b32.xlu0 %v642, 94
  %v674 = vpop.permute.xlu0 %673
  %675 = vrot.lane.b32.xlu0 %v643, 94
  %v676 = vpop.permute.xlu0 %675
  %v677 = vrot.slane %v656, 4
  %v678 = vrot.slane %v658, 4
  %v679 = vrot.slane %v660, 4
  %v680 = vrot.slane %v662, 4
  %v681 = vrot.slane %v664, 4
  %v682 = vrot.slane %v666, 4
  %v683 = vrot.slane %v668, 4
  %v684 = vrot.slane %v670, 4
  %v685 = vrot.slane %v672, 4
  %v686 = vrot.slane %v674, 4
  %v687 = vrot.slane %v676, 4
  %v688 = vsel %vm91, %v677, %v678
  %vm689 = vcmask 769024
  %v690 = vsel %vm689, %v656, %v688
  %v691 = vsel %vm91, %v678, %v679
  %v692 = vsel %vm689, %v658, %v691
  %v693 = vsel %vm91, %v679, %v680
  %v694 = vsel %vm689, %v660, %v693
  %v695 = vsel %vm91, %v680, %v681
  %v696 = vsel %vm689, %v662, %v695
  %v697 = vsel %vm91, %v681, %v682
  %v698 = vsel %vm689, %v664, %v697
  %v699 = vsel %vm91, %v682, %v683
  %v700 = vsel %vm689, %v666, %v699
  %v701 = vsel %vm91, %v683, %v684
  %v702 = vsel %vm689, %v668, %v701
  %v703 = vsel %vm91, %v684, %v685
  %v704 = vsel %vm689, %v670, %v703
  %v705 = vsel %vm91, %v685, %v686
  %v706 = vsel %vm689, %v672, %v705
  %v707 = vsel %vm91, %v686, %v687
  %v708 = vsel %vm689, %v674, %v707
  %719 = vst [vmem:[#allocation2 + $0x230] sm:$0xff] %v690
  %720 = vst [vmem:[#allocation2 + $0x238] sm:$0xff] %v692
  %721 = vst [vmem:[#allocation2 + $0x240] sm:$0xff] %v694
  %722 = vst [vmem:[#allocation2 + $0x248] sm:$0xff] %v696
  %723 = vst [vmem:[#allocation2 + $0x250] sm:$0xff] %v698
  %724 = vst [vmem:[#allocation2 + $0x258] sm:$0xff] %v700
  %725 = vst [vmem:[#allocation2 + $0x260] sm:$0xff] %v702
  %726 = vst [vmem:[#allocation2 + $0x268] sm:$0xff] %v704
  %727 = vst [vmem:[#allocation2 + $0x270] sm:$0xff] %v706
  %728 = vst [vmem:[#allocation2 + $0x278] sm:$0xff] %v708
  %v729 = vld [vmem:[%s0 + $0x4] sm:$0xff]
  %v730 = vld [vmem:[%s0 + $0xc] sm:$0xff]
  %v731 = vld [vmem:[%s0 + $0x14] sm:$0xff]
  %v732 = vld [vmem:[%s0 + $0x1c] sm:$0xff]
  %v733 = vld [vmem:[%s0 + $0x24] sm:$0xff]
  %v734 = vld [vmem:[%s0 + $0x2c] sm:$0xff]
  %v735 = vld [vmem:[%s0 + $0x34] sm:$0xff]
  %v736 = vld [vmem:[%s0 + $0x3c] sm:$0xff]
  %v737 = vld [vmem:[%s0 + $0x44] sm:$0xff]
  %v738 = vld [vmem:[%s0 + $0x4c] sm:$0xff]
  %v739 = vld [vmem:[%s0 + $0x54] sm:$0xf]
  %751 = vrot.lane.b32.xlu0 %v729, 93
  %v752 = vpop.permute.xlu0 %751
  %753 = vrot.lane.b32.xlu0 %v730, 93
  %v754 = vpop.permute.xlu0 %753
  %755 = vrot.lane.b32.xlu0 %v731, 93
  %v756 = vpop.permute.xlu0 %755
  %757 = vrot.lane.b32.xlu0 %v732, 93
  %v758 = vpop.permute.xlu0 %757
  %759 = vrot.lane.b32.xlu0 %v733, 93
  %v760 = vpop.permute.xlu0 %759
  %761 = vrot.lane.b32.xlu0 %v734, 93
  %v762 = vpop.permute.xlu0 %761
  %763 = vrot.lane.b32.xlu0 %v735, 93
  %v764 = vpop.permute.xlu0 %763
  %765 = vrot.lane.b32.xlu0 %v736, 93
  %v766 = vpop.permute.xlu0 %765
  %767 = vrot.lane.b32.xlu0 %v737, 93
  %v768 = vpop.permute.xlu0 %767
  %769 = vrot.lane.b32.xlu0 %v738, 93
  %v770 = vpop.permute.xlu0 %769
  %771 = vrot.lane.b32.xlu0 %v739, 93
  %v772 = vpop.permute.xlu0 %771
  %v773 = vrot.slane %v752, 4
  %v774 = vrot.slane %v754, 4
  %v775 = vrot.slane %v756, 4
  %v776 = vrot.slane %v758, 4
  %v777 = vrot.slane %v760, 4
  %v778 = vrot.slane %v762, 4
  %v779 = vrot.slane %v764, 4
  %v780 = vrot.slane %v766, 4
  %v781 = vrot.slane %v768, 4
  %v782 = vrot.slane %v770, 4
  %v783 = vrot.slane %v772, 4
  %v784 = vsel %vm91, %v773, %v774
  %vm785 = vcmask 760832
  %v786 = vsel %vm785, %v752, %v784
  %v787 = vsel %vm91, %v774, %v775
  %v788 = vsel %vm785, %v754, %v787
  %v789 = vsel %vm91, %v775, %v776
  %v790 = vsel %vm785, %v756, %v789
  %v791 = vsel %vm91, %v776, %v777
  %v792 = vsel %vm785, %v758, %v791
  %v793 = vsel %vm91, %v777, %v778
  %v794 = vsel %vm785, %v760, %v793
  %v795 = vsel %vm91, %v778, %v779
  %v796 = vsel %vm785, %v762, %v795
  %v797 = vsel %vm91, %v779, %v780
  %v798 = vsel %vm785, %v764, %v797
  %v799 = vsel %vm91, %v780, %v781
  %v800 = vsel %vm785, %v766, %v799
  %v801 = vsel %vm91, %v781, %v782
  %v802 = vsel %vm785, %v768, %v801
  %v803 = vsel %vm91, %v782, %v783
  %v804 = vsel %vm785, %v770, %v803
  %815 = vst [vmem:[#allocation2 + $0x280] sm:$0xff] %v786
  %816 = vst [vmem:[#allocation2 + $0x288] sm:$0xff] %v788
  %817 = vst [vmem:[#allocation2 + $0x290] sm:$0xff] %v790
  %818 = vst [vmem:[#allocation2 + $0x298] sm:$0xff] %v792
  %819 = vst [vmem:[#allocation2 + $0x2a0] sm:$0xff] %v794
  %820 = vst [vmem:[#allocation2 + $0x2a8] sm:$0xff] %v796
  %821 = vst [vmem:[#allocation2 + $0x2b0] sm:$0xff] %v798
  %822 = vst [vmem:[#allocation2 + $0x2b8] sm:$0xff] %v800
  %823 = vst [vmem:[#allocation2 + $0x2c0] sm:$0xff] %v802
  %824 = vst [vmem:[#allocation2 + $0x2c8] sm:$0xff] %v804
  %v825 = vld [vmem:[%s1] sm:$0xf]
  %v826 = vld [vmem:[#allocation2] sm:$0xff]
  %v827 = vld [vmem:[#allocation2 + $0x8] sm:$0xff]
  %v828 = vld [vmem:[#allocation2 + $0x10] sm:$0xff]
  %v829 = vld [vmem:[#allocation2 + $0x18] sm:$0xff]
  %v830 = vld [vmem:[#allocation2 + $0x20] sm:$0xff]
  %v831 = vld [vmem:[#allocation2 + $0x28] sm:$0xff]
  %v832 = vld [vmem:[#allocation2 + $0x30] sm:$0xff]
  %v833 = vld [vmem:[#allocation2 + $0x38] sm:$0xff]
  %v834 = vld [vmem:[#allocation2 + $0x40] sm:$0xff]
  %v835 = vld [vmem:[#allocation2 + $0x48] sm:$0xff]
  %v836 = vld [vmem:[#allocation2 + $0x50] sm:$0xff]
  %v837 = vld [vmem:[#allocation2 + $0x58] sm:$0xff]
  %v838 = vld [vmem:[#allocation2 + $0x60] sm:$0xff]
  %v839 = vld [vmem:[#allocation2 + $0x68] sm:$0xff]
  %v840 = vld [vmem:[#allocation2 + $0x70] sm:$0xff]
  %v841 = vld [vmem:[#allocation2 + $0x78] sm:$0xff]
  %v842 = vld [vmem:[#allocation2 + $0x80] sm:$0xff]
  %v843 = vld [vmem:[#allocation2 + $0x88] sm:$0xff]
  %v844 = vld [vmem:[#allocation2 + $0x90] sm:$0xff]
  %v845 = vld [vmem:[#allocation2 + $0x98] sm:$0xff]
  %v846 = vld [vmem:[#allocation2 + $0xa0] sm:$0xff]
  %v847 = vld [vmem:[#allocation2 + $0xa8] sm:$0xff]
  %v848 = vld [vmem:[#allocation2 + $0xb0] sm:$0xff]
  %v849 = vld [vmem:[#allocation2 + $0xb8] sm:$0xff]
  %v850 = vld [vmem:[#allocation2 + $0xc0] sm:$0xff]
  %v851 = vld [vmem:[#allocation2 + $0xc8] sm:$0xff]
  %v852 = vld [vmem:[#allocation2 + $0xd0] sm:$0xff]
  %v853 = vld [vmem:[#allocation2 + $0xd8] sm:$0xff]
  %v854 = vld [vmem:[#allocation2 + $0xe0] sm:$0xff]
  %v855 = vld [vmem:[#allocation2 + $0xe8] sm:$0xff]
  %v856 = vld [vmem:[#allocation2 + $0xf0] sm:$0xff]
  %v857 = vld [vmem:[#allocation2 + $0xf8] sm:$0xff]
  %v858 = vld [vmem:[#allocation2 + $0x100] sm:$0xff]
  %v859 = vld [vmem:[#allocation2 + $0x108] sm:$0xff]
  %v860 = vld [vmem:[#allocation2 + $0x110] sm:$0xff]
  %v861 = vld [vmem:[#allocation2 + $0x118] sm:$0xff]
  %v862 = vld [vmem:[#allocation2 + $0x120] sm:$0xff]
  %v863 = vld [vmem:[#allocation2 + $0x128] sm:$0xff]
  %v864 = vld [vmem:[#allocation2 + $0x130] sm:$0xff]
  %v865 = vld [vmem:[#allocation2 + $0x138] sm:$0xff]
  %v866 = vld [vmem:[#allocation2 + $0x140] sm:$0xff]
  %v867 = vld [vmem:[#allocation2 + $0x148] sm:$0xff]
  %v868 = vld [vmem:[#allocation2 + $0x150] sm:$0xff]
  %v869 = vld [vmem:[#allocation2 + $0x158] sm:$0xff]
  %v870 = vld [vmem:[#allocation2 + $0x160] sm:$0xff]
  %v871 = vld [vmem:[#allocation2 + $0x168] sm:$0xff]
  %v872 = vld [vmem:[#allocation2 + $0x170] sm:$0xff]
  %v873 = vld [vmem:[#allocation2 + $0x178] sm:$0xff]
  %v874 = vld [vmem:[#allocation2 + $0x180] sm:$0xff]
  %v875 = vld [vmem:[#allocation2 + $0x188] sm:$0xff]
  %v876 = vld [vmem:[#allocation2 + $0x190] sm:$0xff]
  %v877 = vld [vmem:[#allocation2 + $0x198] sm:$0xff]
  %v878 = vld [vmem:[#allocation2 + $0x1a0] sm:$0xff]
  %v879 = vld [vmem:[#allocation2 + $0x1a8] sm:$0xff]
  %v880 = vld [vmem:[#allocation2 + $0x1b0] sm:$0xff]
  %v881 = vld [vmem:[#allocation2 + $0x1b8] sm:$0xff]
  %v882 = vld [vmem:[#allocation2 + $0x1c0] sm:$0xff]
  %v883 = vld [vmem:[#allocation2 + $0x1c8] sm:$0xff]
  %v884 = vld [vmem:[#allocation2 + $0x1d0] sm:$0xff]
  %v885 = vld [vmem:[#allocation2 + $0x1d8] sm:$0xff]
  %v886 = vld [vmem:[#allocation2 + $0x1e0] sm:$0xff]
  %v887 = vld [vmem:[#allocation2 + $0x1e8] sm:$0xff]
  %v888 = vld [vmem:[#allocation2 + $0x1f0] sm:$0xff]
  %v889 = vld [vmem:[#allocation2 + $0x1f8] sm:$0xff]
  %v890 = vld [vmem:[#allocation2 + $0x200] sm:$0xff]
  %v891 = vld [vmem:[#allocation2 + $0x208] sm:$0xff]
  %v892 = vld [vmem:[#allocation2 + $0x210] sm:$0xff]
  %v893 = vld [vmem:[#allocation2 + $0x218] sm:$0xff]
  %v894 = vld [vmem:[#allocation2 + $0x220] sm:$0xff]
  %v895 = vld [vmem:[#allocation2 + $0x228] sm:$0xff]
  %v896 = vld [vmem:[#allocation2 + $0x230] sm:$0xff]
  %v897 = vld [vmem:[#allocation2 + $0x238] sm:$0xff]
  %v898 = vld [vmem:[#allocation2 + $0x240] sm:$0xff]
  %v899 = vld [vmem:[#allocation2 + $0x248] sm:$0xff]
  %v900 = vld [vmem:[#allocation2 + $0x250] sm:$0xff]
  %v901 = vld [vmem:[#allocation2 + $0x258] sm:$0xff]
  %v902 = vld [vmem:[#allocation2 + $0x260] sm:$0xff]
  %v903 = vld [vmem:[#allocation2 + $0x268] sm:$0xff]
  %v904 = vld [vmem:[#allocation2 + $0x270] sm:$0xff]
  %v905 = vld [vmem:[#allocation2 + $0x278] sm:$0xff]
  %v906 = vld [vmem:[#allocation2 + $0x280] sm:$0xff]
  %v907 = vld [vmem:[#allocation2 + $0x288] sm:$0xff]
  %v908 = vld [vmem:[#allocation2 + $0x290] sm:$0xff]
  %v909 = vld [vmem:[#allocation2 + $0x298] sm:$0xff]
  %v910 = vld [vmem:[#allocation2 + $0x2a0] sm:$0xff]
  %v911 = vld [vmem:[#allocation2 + $0x2a8] sm:$0xff]
  %v912 = vld [vmem:[#allocation2 + $0x2b0] sm:$0xff]
  %v913 = vld [vmem:[#allocation2 + $0x2b8] sm:$0xff]
  %v914 = vld [vmem:[#allocation2 + $0x2c0] sm:$0xff]
  %v915 = vld [vmem:[#allocation2 + $0x2c8] sm:$0xff]
  %v1006 = vunpack.c.l.b16 %v826
  %v1007 = vunpack.c.h.b16 %v826
  %v1008 = vunpack.c.l.b16 %v827
  %v1009 = vunpack.c.h.b16 %v827
  %v1010 = vunpack.c.l.b16 %v828
  %v1011 = vunpack.c.h.b16 %v828
  %v1012 = vunpack.c.l.b16 %v829
  %v1013 = vunpack.c.h.b16 %v829
  %v1014 = vunpack.c.l.b16 %v830
  %v1015 = vunpack.c.h.b16 %v830
  %v1016 = vunpack.c.l.b16 %v831
  %v1017 = vunpack.c.h.b16 %v831
  %v1018 = vunpack.c.l.b16 %v832
  %v1019 = vunpack.c.h.b16 %v832
  %v1020 = vunpack.c.l.b16 %v833
  %v1021 = vunpack.c.h.b16 %v833
  %v1022 = vunpack.c.l.b16 %v834
  %v1023 = vunpack.c.h.b16 %v834
  %v1024 = vunpack.c.l.b16 %v835
  %v1025 = vunpack.c.h.b16 %v835
  %v1026 = vunpack.c.l.b16 %v836
  %v1027 = vunpack.c.h.b16 %v836
  %v1028 = vunpack.c.l.b16 %v837
  %v1029 = vunpack.c.h.b16 %v837
  %v1030 = vunpack.c.l.b16 %v838
  %v1031 = vunpack.c.h.b16 %v838
  %v1032 = vunpack.c.l.b16 %v839
  %v1033 = vunpack.c.h.b16 %v839
  %v1034 = vunpack.c.l.b16 %v840
  %v1035 = vunpack.c.h.b16 %v840
  %v1036 = vunpack.c.l.b16 %v841
  %v1037 = vunpack.c.h.b16 %v841
  %v1038 = vunpack.c.l.b16 %v842
  %v1039 = vunpack.c.h.b16 %v842
  %v1040 = vunpack.c.l.b16 %v843
  %v1041 = vunpack.c.h.b16 %v843
  %v1042 = vunpack.c.l.b16 %v844
  %v1043 = vunpack.c.h.b16 %v844
  %v1044 = vunpack.c.l.b16 %v845
  %v1045 = vunpack.c.h.b16 %v845
  %v1046 = vunpack.c.l.b16 %v846
  %v1047 = vunpack.c.h.b16 %v846
  %v1048 = vunpack.c.l.b16 %v847
  %v1049 = vunpack.c.h.b16 %v847
  %v1050 = vunpack.c.l.b16 %v848
  %v1051 = vunpack.c.h.b16 %v848
  %v1052 = vunpack.c.l.b16 %v849
  %v1053 = vunpack.c.h.b16 %v849
  %v1054 = vunpack.c.l.b16 %v850
  %v1055 = vunpack.c.h.b16 %v850
  %v1056 = vunpack.c.l.b16 %v851
  %v1057 = vunpack.c.h.b16 %v851
  %v1058 = vunpack.c.l.b16 %v852
  %v1059 = vunpack.c.h.b16 %v852
  %v1060 = vunpack.c.l.b16 %v853
  %v1061 = vunpack.c.h.b16 %v853
  %v1062 = vunpack.c.l.b16 %v854
  %v1063 = vunpack.c.h.b16 %v854
  %v1064 = vunpack.c.l.b16 %v855
  %v1065 = vunpack.c.h.b16 %v855
  %v1066 = vunpack.c.l.b16 %v856
  %v1067 = vunpack.c.h.b16 %v856
  %v1068 = vunpack.c.l.b16 %v857
  %v1069 = vunpack.c.h.b16 %v857
  %v1070 = vunpack.c.l.b16 %v858
  %v1071 = vunpack.c.h.b16 %v858
  %v1072 = vunpack.c.l.b16 %v859
  %v1073 = vunpack.c.h.b16 %v859
  %v1074 = vunpack.c.l.b16 %v860
  %v1075 = vunpack.c.h.b16 %v860
  %v1076 = vunpack.c.l.b16 %v861
  %v1077 = vunpack.c.h.b16 %v861
  %v1078 = vunpack.c.l.b16 %v862
  %v1079 = vunpack.c.h.b16 %v862
  %v1080 = vunpack.c.l.b16 %v863
  %v1081 = vunpack.c.h.b16 %v863
  %v1082 = vunpack.c.l.b16 %v864
  %v1083 = vunpack.c.h.b16 %v864
  %v1084 = vunpack.c.l.b16 %v865
  %v1085 = vunpack.c.h.b16 %v865
  %v1086 = vunpack.c.l.b16 %v866
  %v1087 = vunpack.c.h.b16 %v866
  %v1088 = vunpack.c.l.b16 %v867
  %v1089 = vunpack.c.h.b16 %v867
  %v1090 = vunpack.c.l.b16 %v868
  %v1091 = vunpack.c.h.b16 %v868
  %v1092 = vunpack.c.l.b16 %v869
  %v1093 = vunpack.c.h.b16 %v869
  %v1094 = vunpack.c.l.b16 %v870
  %v1095 = vunpack.c.h.b16 %v870
  %v1096 = vunpack.c.l.b16 %v871
  %v1097 = vunpack.c.h.b16 %v871
  %v1098 = vunpack.c.l.b16 %v872
  %v1099 = vunpack.c.h.b16 %v872
  %v1100 = vunpack.c.l.b16 %v873
  %v1101 = vunpack.c.h.b16 %v873
  %v1102 = vunpack.c.l.b16 %v874
  %v1103 = vunpack.c.h.b16 %v874
  %v1104 = vunpack.c.l.b16 %v875
  %v1105 = vunpack.c.h.b16 %v875
  %v1106 = vunpack.c.l.b16 %v876
  %v1107 = vunpack.c.h.b16 %v876
  %v1108 = vunpack.c.l.b16 %v877
  %v1109 = vunpack.c.h.b16 %v877
  %v1110 = vunpack.c.l.b16 %v878
  %v1111 = vunpack.c.h.b16 %v878
  %v1112 = vunpack.c.l.b16 %v879
  %v1113 = vunpack.c.h.b16 %v879
  %v1114 = vunpack.c.l.b16 %v880
  %v1115 = vunpack.c.h.b16 %v880
  %v1116 = vunpack.c.l.b16 %v881
  %v1117 = vunpack.c.h.b16 %v881
  %v1118 = vunpack.c.l.b16 %v882
  %v1119 = vunpack.c.h.b16 %v882
  %v1120 = vunpack.c.l.b16 %v883
  %v1121 = vunpack.c.h.b16 %v883
  %v1122 = vunpack.c.l.b16 %v884
  %v1123 = vunpack.c.h.b16 %v884
  %v1124 = vunpack.c.l.b16 %v885
  %v1125 = vunpack.c.h.b16 %v885
  %v1126 = vunpack.c.l.b16 %v886
  %v1127 = vunpack.c.h.b16 %v886
  %v1128 = vunpack.c.l.b16 %v887
  %v1129 = vunpack.c.h.b16 %v887
  %v1130 = vunpack.c.l.b16 %v888
  %v1131 = vunpack.c.h.b16 %v888
  %v1132 = vunpack.c.l.b16 %v889
  %v1133 = vunpack.c.h.b16 %v889
  %v1134 = vunpack.c.l.b16 %v890
  %v1135 = vunpack.c.h.b16 %v890
  %v1136 = vunpack.c.l.b16 %v891
  %v1137 = vunpack.c.h.b16 %v891
  %v1138 = vunpack.c.l.b16 %v892
  %v1139 = vunpack.c.h.b16 %v892
  %v1140 = vunpack.c.l.b16 %v893
  %v1141 = vunpack.c.h.b16 %v893
  %v1142 = vunpack.c.l.b16 %v894
  %v1143 = vunpack.c.h.b16 %v894
  %v1144 = vunpack.c.l.b16 %v895
  %v1145 = vunpack.c.h.b16 %v895
  %v1146 = vunpack.c.l.b16 %v896
  %v1147 = vunpack.c.h.b16 %v896
  %v1148 = vunpack.c.l.b16 %v897
  %v1149 = vunpack.c.h.b16 %v897
  %v1150 = vunpack.c.l.b16 %v898
  %v1151 = vunpack.c.h.b16 %v898
  %v1152 = vunpack.c.l.b16 %v899
  %v1153 = vunpack.c.h.b16 %v899
  %v1154 = vunpack.c.l.b16 %v900
  %v1155 = vunpack.c.h.b16 %v900
  %v1156 = vunpack.c.l.b16 %v901
  %v1157 = vunpack.c.h.b16 %v901
  %v1158 = vunpack.c.l.b16 %v902
  %v1159 = vunpack.c.h.b16 %v902
  %v1160 = vunpack.c.l.b16 %v903
  %v1161 = vunpack.c.h.b16 %v903
  %v1162 = vunpack.c.l.b16 %v904
  %v1163 = vunpack.c.h.b16 %v904
  %v1164 = vunpack.c.l.b16 %v905
  %v1165 = vunpack.c.h.b16 %v905
  %v1166 = vunpack.c.l.b16 %v906
  %v1167 = vunpack.c.h.b16 %v906
  %v1168 = vunpack.c.l.b16 %v907
  %v1169 = vunpack.c.h.b16 %v907
  %v1170 = vunpack.c.l.b16 %v908
  %v1171 = vunpack.c.h.b16 %v908
  %v1172 = vunpack.c.l.b16 %v909
  %v1173 = vunpack.c.h.b16 %v909
  %v1174 = vunpack.c.l.b16 %v910
  %v1175 = vunpack.c.h.b16 %v910
  %v1176 = vunpack.c.l.b16 %v911
  %v1177 = vunpack.c.h.b16 %v911
  %v1178 = vunpack.c.l.b16 %v912
  %v1179 = vunpack.c.h.b16 %v912
  %v1180 = vunpack.c.l.b16 %v913
  %v1181 = vunpack.c.h.b16 %v913
  %v1182 = vunpack.c.l.b16 %v914
  %v1183 = vunpack.c.h.b16 %v914
  %v1184 = vunpack.c.l.b16 %v915
  %v1185 = vunpack.c.h.b16 %v915
  %v1186 = vpack.c.b16 %v1026, %v1006
  %v1187 = vpack.c.b16 %v1027, %v1007
  %v1188 = vpack.c.b16 %v1028, %v1008
  %v1189 = vpack.c.b16 %v1029, %v1009
  %v1190 = vpack.c.b16 %v1030, %v1010
  %v1191 = vpack.c.b16 %v1031, %v1011
  %v1192 = vpack.c.b16 %v1032, %v1012
  %v1193 = vpack.c.b16 %v1033, %v1013
  %v1194 = vpack.c.b16 %v1034, %v1014
  %v1195 = vpack.c.b16 %v1035, %v1015
  %v1196 = vpack.c.b16 %v1036, %v1016
  %v1197 = vpack.c.b16 %v1037, %v1017
  %v1198 = vpack.c.b16 %v1038, %v1018
  %v1199 = vpack.c.b16 %v1039, %v1019
  %v1200 = vpack.c.b16 %v1040, %v1020
  %v1201 = vpack.c.b16 %v1041, %v1021
  %v1202 = vpack.c.b16 %v1042, %v1022
  %v1203 = vpack.c.b16 %v1043, %v1023
  %v1204 = vpack.c.b16 %v1044, %v1024
  %v1205 = vpack.c.b16 %v1045, %v1025
  %v1206 = vpack.c.b16 %v1066, %v1046
  %v1207 = vpack.c.b16 %v1067, %v1047
  %v1208 = vpack.c.b16 %v1068, %v1048
  %v1209 = vpack.c.b16 %v1069, %v1049
  %v1210 = vpack.c.b16 %v1070, %v1050
  %v1211 = vpack.c.b16 %v1071, %v1051
  %v1212 = vpack.c.b16 %v1072, %v1052
  %v1213 = vpack.c.b16 %v1073, %v1053
  %v1214 = vpack.c.b16 %v1074, %v1054
  %v1215 = vpack.c.b16 %v1075, %v1055
  %v1216 = vpack.c.b16 %v1076, %v1056
  %v1217 = vpack.c.b16 %v1077, %v1057
  %v1218 = vpack.c.b16 %v1078, %v1058
  %v1219 = vpack.c.b16 %v1079, %v1059
  %v1220 = vpack.c.b16 %v1080, %v1060
  %v1221 = vpack.c.b16 %v1081, %v1061
  %v1222 = vpack.c.b16 %v1082, %v1062
  %v1223 = vpack.c.b16 %v1083, %v1063
  %v1224 = vpack.c.b16 %v1084, %v1064
  %v1225 = vpack.c.b16 %v1085, %v1065
  %v1226 = vpack.c.b16 %v1106, %v1086
  %v1227 = vpack.c.b16 %v1107, %v1087
  %v1228 = vpack.c.b16 %v1108, %v1088
  %v1229 = vpack.c.b16 %v1109, %v1089
  %v1230 = vpack.c.b16 %v1110, %v1090
  %v1231 = vpack.c.b16 %v1111, %v1091
  %v1232 = vpack.c.b16 %v1112, %v1092
  %v1233 = vpack.c.b16 %v1113, %v1093
  %v1234 = vpack.c.b16 %v1114, %v1094
  %v1235 = vpack.c.b16 %v1115, %v1095
  %v1236 = vpack.c.b16 %v1116, %v1096
  %v1237 = vpack.c.b16 %v1117, %v1097
  %v1238 = vpack.c.b16 %v1118, %v1098
  %v1239 = vpack.c.b16 %v1119, %v1099
  %v1240 = vpack.c.b16 %v1120, %v1100
  %v1241 = vpack.c.b16 %v1121, %v1101
  %v1242 = vpack.c.b16 %v1122, %v1102
  %v1243 = vpack.c.b16 %v1123, %v1103
  %v1244 = vpack.c.b16 %v1124, %v1104
  %v1245 = vpack.c.b16 %v1125, %v1105
  %v1246 = vpack.c.b16 %v1146, %v1126
  %v1247 = vpack.c.b16 %v1147, %v1127
  %v1248 = vpack.c.b16 %v1148, %v1128
  %v1249 = vpack.c.b16 %v1149, %v1129
  %v1250 = vpack.c.b16 %v1150, %v1130
  %v1251 = vpack.c.b16 %v1151, %v1131
  %v1252 = vpack.c.b16 %v1152, %v1132
  %v1253 = vpack.c.b16 %v1153, %v1133
  %v1254 = vpack.c.b16 %v1154, %v1134
  %v1255 = vpack.c.b16 %v1155, %v1135
  %v1256 = vpack.c.b16 %v1156, %v1136
  %v1257 = vpack.c.b16 %v1157, %v1137
  %v1258 = vpack.c.b16 %v1158, %v1138
  %v1259 = vpack.c.b16 %v1159, %v1139
  %v1260 = vpack.c.b16 %v1160, %v1140
  %v1261 = vpack.c.b16 %v1161, %v1141
  %v1262 = vpack.c.b16 %v1162, %v1142
  %v1263 = vpack.c.b16 %v1163, %v1143
  %v1264 = vpack.c.b16 %v1164, %v1144
  %v1265 = vpack.c.b16 %v1165, %v1145
  %v1266 = vpack.c.b16 %v1166, %v1166
  %v1267 = vpack.c.b16 %v1167, %v1167
  %v1268 = vpack.c.b16 %v1168, %v1168
  %v1269 = vpack.c.b16 %v1169, %v1169
  %v1270 = vpack.c.b16 %v1170, %v1170
  %v1271 = vpack.c.b16 %v1171, %v1171
  %v1272 = vpack.c.b16 %v1172, %v1172
  %v1273 = vpack.c.b16 %v1173, %v1173
  %v1274 = vpack.c.b16 %v1174, %v1174
  %v1275 = vpack.c.b16 %v1175, %v1175
  %v1276 = vpack.c.b16 %v1176, %v1176
  %v1277 = vpack.c.b16 %v1177, %v1177
  %v1278 = vpack.c.b16 %v1178, %v1178
  %v1279 = vpack.c.b16 %v1179, %v1179
  %v1280 = vpack.c.b16 %v1180, %v1180
  %v1281 = vpack.c.b16 %v1181, %v1181
  %v1282 = vpack.c.b16 %v1182, %v1182
  %v1283 = vpack.c.b16 %v1183, %v1183
  %v1284 = vpack.c.b16 %v1184, %v1184
  %v1285 = vpack.c.b16 %v1185, %v1185
  %vm1366 = vcmask 588800
  %v1368 = vsel %vm1366, %v825, 0
  %vm1370 = vcmask 1043456
  %v1372 = vsel %vm1370, %v1266, 0
  %v1375 = vsel %vm1370, %v1267, 0
  %v1378 = vsel %vm1370, %v1268, 0
  %v1381 = vsel %vm1370, %v1269, 0
  %v1384 = vsel %vm1370, %v1270, 0
  %v1387 = vsel %vm1370, %v1271, 0
  %v1390 = vsel %vm1370, %v1272, 0
  %v1393 = vsel %vm1370, %v1273, 0
  %v1396 = vsel %vm1370, %v1274, 0
  %v1399 = vsel %vm1370, %v1275, 0
  %v1402 = vsel %vm1370, %v1276, 0
  %v1405 = vsel %vm1370, %v1277, 0
  %v1408 = vsel %vm1370, %v1278, 0
  %v1411 = vsel %vm1370, %v1279, 0
  %v1414 = vsel %vm1370, %v1280, 0
  %v1417 = vsel %vm1370, %v1281, 0
  %v1420 = vsel %vm1370, %v1282, 0
  %v1423 = vsel %vm1370, %v1283, 0
  %v1426 = vsel %vm1370, %v1284, 0
  %v1429 = vsel %vm1370, %v1285, 0
  %1431 = vmatprep.subr.bf16.mxu0 %v1187
  %1432 = vmatpush1.bf16.msra.mxu0 %v1186
  %1433 = vmatprep.subr.bf16.mxu0 %v1207
  %1434 = vmatpush1.bf16.msra.mxu0 %v1206
  %1435 = vmatprep.subr.bf16.mxu0 %v1227
  %1436 = vmatpush1.bf16.msra.mxu0 %v1226
  %1437 = vmatprep.subr.bf16.mxu0 %v1247
  %1438 = vmatpush1.bf16.msra.mxu0 %v1246
  %1439 = vmatprep.subr.bf16.mxu0 %v1375
  %1440 = vmatpush1.bf16.msra.mxu0 %v1372
  %1441 = vmatprep.subr.bf16.mxu0 0
  %1442 = vmatpush1.bf16.msra.mxu0 0
  %1443 = vmatprep.subr.bf16.mxu0 0
  %1444 = vmatpush1.bf16.msra.mxu0 0
  %1445 = vmatprep.subr.bf16.mxu0 0
  %1446 = vmatpush1.bf16.msra.mxu0 0
  %1447 = vmatprep.subr.bf16.mxu0 0
  %1448 = vmatpush1.bf16.msra.mxu0 0
  %1449 = vmatprep.subr.bf16.mxu0 0
  %1450 = vmatpush1.bf16.msra.mxu0 0
  %1451 = vmatprep.subr.bf16.mxu0 0
  %1452 = vmatpush1.bf16.msra.mxu0 0
  %1453 = vmatprep.subr.bf16.mxu0 0
  %1454 = vmatpush1.bf16.msra.mxu0 0
  %1455 = vmatprep.subr.bf16.mxu0 0
  %1456 = vmatpush1.bf16.msra.mxu0 0
  %1457 = vmatprep.subr.bf16.mxu0 0
  %1458 = vmatpush1.bf16.msra.mxu0 0
  %1459 = vmatprep.subr.bf16.mxu0 0
  %1460 = vmatpush1.bf16.msra.mxu0 0
  %1461 = vmatprep.subr.bf16.mxu0 0
  %1462 = vmatpush1.bf16.msra.mxu0 0
  %1463 = vmatprep.mubr.bf16.mxu0 0
  %1464 = vmatmul.mubr.bf16.gmra.mrb[0].mxu0 %v1368
  %v1465 = vpop.f32.mrb[0].mxu0
  %v1466 = vadd.f32 0.0, %v1465
  %v1467 = vpop.f32.mrb[0].mxu0
  %v1468 = vadd.f32 0.0, %v1467
  %v1469 = vpop.f32.mrb[0].mxu0
  %v1470 = vpop.f32.mrb[0].mxu0
  %1471 = vdwg.mxu0
  %1472 = vmatprep.subr.bf16.mxu0 %v1189
  %1473 = vmatpush1.bf16.msra.mxu0 %v1188
  %1474 = vmatprep.subr.bf16.mxu0 %v1209
  %1475 = vmatpush1.bf16.msra.mxu0 %v1208
  %1476 = vmatprep.subr.bf16.mxu0 %v1229
  %1477 = vmatpush1.bf16.msra.mxu0 %v1228
  %1478 = vmatprep.subr.bf16.mxu0 %v1249
  %1479 = vmatpush1.bf16.msra.mxu0 %v1248
  %1480 = vmatprep.subr.bf16.mxu0 %v1381
  %1481 = vmatpush1.bf16.msra.mxu0 %v1378
  %1482 = vmatprep.subr.bf16.mxu0 0
  %1483 = vmatpush1.bf16.msra.mxu0 0
  %1484 = vmatprep.subr.bf16.mxu0 0
  %1485 = vmatpush1.bf16.msra.mxu0 0
  %1486 = vmatprep.subr.bf16.mxu0 0
  %1487 = vmatpush1.bf16.msra.mxu0 0
  %1488 = vmatprep.subr.bf16.mxu0 0
  %1489 = vmatpush1.bf16.msra.mxu0 0
  %1490 = vmatprep.subr.bf16.mxu0 0
  %1491 = vmatpush1.bf16.msra.mxu0 0
  %1492 = vmatprep.subr.bf16.mxu0 0
  %1493 = vmatpush1.bf16.msra.mxu0 0
  %1494 = vmatprep.subr.bf16.mxu0 0
  %1495 = vmatpush1.bf16.msra.mxu0 0
  %1496 = vmatprep.subr.bf16.mxu0 0
  %1497 = vmatpush1.bf16.msra.mxu0 0
  %1498 = vmatprep.subr.bf16.mxu0 0
  %1499 = vmatpush1.bf16.msra.mxu0 0
  %1500 = vmatprep.subr.bf16.mxu0 0
  %1501 = vmatpush1.bf16.msra.mxu0 0
  %1502 = vmatprep.subr.bf16.mxu0 0
  %1503 = vmatpush1.bf16.msra.mxu0 0
  %1504 = vmatprep.mubr.bf16.mxu0 0
  %1505 = vmatmul.mubr.bf16.gmra.mrb[0].mxu0 %v1368
  %v1506 = vpop.f32.mrb[0].mxu0
  %v1507 = vadd.f32 0.0, %v1506
  %v1508 = vpop.f32.mrb[0].mxu0
  %v1509 = vadd.f32 0.0, %v1508
  %v1510 = vpop.f32.mrb[0].mxu0
  %v1511 = vpop.f32.mrb[0].mxu0
  %1512 = vdwg.mxu0
  %1513 = vmatprep.subr.bf16.mxu0 %v1191
  %1514 = vmatpush1.bf16.msra.mxu0 %v1190
  %1515 = vmatprep.subr.bf16.mxu0 %v1211
  %1516 = vmatpush1.bf16.msra.mxu0 %v1210
  %1517 = vmatprep.subr.bf16.mxu0 %v1231
  %1518 = vmatpush1.bf16.msra.mxu0 %v1230
  %1519 = vmatprep.subr.bf16.mxu0 %v1251
  %1520 = vmatpush1.bf16.msra.mxu0 %v1250
  %1521 = vmatprep.subr.bf16.mxu0 %v1387
  %1522 = vmatpush1.bf16.msra.mxu0 %v1384
  %1523 = vmatprep.subr.bf16.mxu0 0
  %1524 = vmatpush1.bf16.msra.mxu0 0
  %1525 = vmatprep.subr.bf16.mxu0 0
  %1526 = vmatpush1.bf16.msra.mxu0 0
  %1527 = vmatprep.subr.bf16.mxu0 0
  %1528 = vmatpush1.bf16.msra.mxu0 0
  %1529 = vmatprep.subr.bf16.mxu0 0
  %1530 = vmatpush1.bf16.msra.mxu0 0
  %1531 = vmatprep.subr.bf16.mxu0 0
  %1532 = vmatpush1.bf16.msra.mxu0 0
  %1533 = vmatprep.subr.bf16.mxu0 0
  %1534 = vmatpush1.bf16.msra.mxu0 0
  %1535 = vmatprep.subr.bf16.mxu0 0
  %1536 = vmatpush1.bf16.msra.mxu0 0
  %1537 = vmatprep.subr.bf16.mxu0 0
  %1538 = vmatpush1.bf16.msra.mxu0 0
  %1539 = vmatprep.subr.bf16.mxu0 0
  %1540 = vmatpush1.bf16.msra.mxu0 0
  %1541 = vmatprep.subr.bf16.mxu0 0
  %1542 = vmatpush1.bf16.msra.mxu0 0
  %1543 = vmatprep.subr.bf16.mxu0 0
  %1544 = vmatpush1.bf16.msra.mxu0 0
  %1545 = vmatprep.mubr.bf16.mxu0 0
  %1546 = vmatmul.mubr.bf16.gmra.mrb[0].mxu0 %v1368
  %v1547 = vpop.f32.mrb[0].mxu0
  %v1548 = vadd.f32 0.0, %v1547
  %v1549 = vpop.f32.mrb[0].mxu0
  %v1550 = vadd.f32 0.0, %v1549
  %v1551 = vpop.f32.mrb[0].mxu0
  %v1552 = vpop.f32.mrb[0].mxu0
  %1553 = vdwg.mxu0
  %1554 = vmatprep.subr.bf16.mxu0 %v1193
  %1555 = vmatpush1.bf16.msra.mxu0 %v1192
  %1556 = vmatprep.subr.bf16.mxu0 %v1213
  %1557 = vmatpush1.bf16.msra.mxu0 %v1212
  %1558 = vmatprep.subr.bf16.mxu0 %v1233
  %1559 = vmatpush1.bf16.msra.mxu0 %v1232
  %1560 = vmatprep.subr.bf16.mxu0 %v1253
  %1561 = vmatpush1.bf16.msra.mxu0 %v1252
  %1562 = vmatprep.subr.bf16.mxu0 %v1393
  %1563 = vmatpush1.bf16.msra.mxu0 %v1390
  %1564 = vmatprep.subr.bf16.mxu0 0
  %1565 = vmatpush1.bf16.msra.mxu0 0
  %1566 = vmatprep.subr.bf16.mxu0 0
  %1567 = vmatpush1.bf16.msra.mxu0 0
  %1568 = vmatprep.subr.bf16.mxu0 0
  %1569 = vmatpush1.bf16.msra.mxu0 0
  %1570 = vmatprep.subr.bf16.mxu0 0
  %1571 = vmatpush1.bf16.msra.mxu0 0
  %1572 = vmatprep.subr.bf16.mxu0 0
  %1573 = vmatpush1.bf16.msra.mxu0 0
  %1574 = vmatprep.subr.bf16.mxu0 0
  %1575 = vmatpush1.bf16.msra.mxu0 0
  %1576 = vmatprep.subr.bf16.mxu0 0
  %1577 = vmatpush1.bf16.msra.mxu0 0
  %1578 = vmatprep.subr.bf16.mxu0 0
  %1579 = vmatpush1.bf16.msra.mxu0 0
  %1580 = vmatprep.subr.bf16.mxu0 0
  %1581 = vmatpush1.bf16.msra.mxu0 0
  %1582 = vmatprep.subr.bf16.mxu0 0
  %1583 = vmatpush1.bf16.msra.mxu0 0
  %1584 = vmatprep.subr.bf16.mxu0 0
  %1585 = vmatpush1.bf16.msra.mxu0 0
  %1586 = vmatprep.mubr.bf16.mxu0 0
  %1587 = vmatmul.mubr.bf16.gmra.mrb[0].mxu0 %v1368
  %v1588 = vpop.f32.mrb[0].mxu0
  %v1589 = vadd.f32 0.0, %v1588
  %v1590 = vpop.f32.mrb[0].mxu0
  %v1591 = vadd.f32 0.0, %v1590
  %v1592 = vpop.f32.mrb[0].mxu0
  %v1593 = vpop.f32.mrb[0].mxu0
  %1594 = vdwg.mxu0
  %1595 = vmatprep.subr.bf16.mxu0 %v1195
  %1596 = vmatpush1.bf16.msra.mxu0 %v1194
  %1597 = vmatprep.subr.bf16.mxu0 %v1215
  %1598 = vmatpush1.bf16.msra.mxu0 %v1214
  %1599 = vmatprep.subr.bf16.mxu0 %v1235
  %1600 = vmatpush1.bf16.msra.mxu0 %v1234
  %1601 = vmatprep.subr.bf16.mxu0 %v1255
  %1602 = vmatpush1.bf16.msra.mxu0 %v1254
  %1603 = vmatprep.subr.bf16.mxu0 %v1399
  %1604 = vmatpush1.bf16.msra.mxu0 %v1396
  %1605 = vmatprep.subr.bf16.mxu0 0
  %1606 = vmatpush1.bf16.msra.mxu0 0
  %1607 = vmatprep.subr.bf16.mxu0 0
  %1608 = vmatpush1.bf16.msra.mxu0 0
  %1609 = vmatprep.subr.bf16.mxu0 0
  %1610 = vmatpush1.bf16.msra.mxu0 0
  %1611 = vmatprep.subr.bf16.mxu0 0
  %1612 = vmatpush1.bf16.msra.mxu0 0
  %1613 = vmatprep.subr.bf16.mxu0 0
  %1614 = vmatpush1.bf16.msra.mxu0 0
  %1615 = vmatprep.subr.bf16.mxu0 0
  %1616 = vmatpush1.bf16.msra.mxu0 0
  %1617 = vmatprep.subr.bf16.mxu0 0
  %1618 = vmatpush1.bf16.msra.mxu0 0
  %1619 = vmatprep.subr.bf16.mxu0 0
  %1620 = vmatpush1.bf16.msra.mxu0 0
  %1621 = vmatprep.subr.bf16.mxu0 0
  %1622 = vmatpush1.bf16.msra.mxu0 0
  %1623 = vmatprep.subr.bf16.mxu0 0
  %1624 = vmatpush1.bf16.msra.mxu0 0
  %1625 = vmatprep.subr.bf16.mxu0 0
  %1626 = vmatpush1.bf16.msra.mxu0 0
  %1627 = vmatprep.mubr.bf16.mxu0 0
  %1628 = vmatmul.mubr.bf16.gmra.mrb[0].mxu0 %v1368
  %v1629 = vpop.f32.mrb[0].mxu0
  %v1630 = vadd.f32 0.0, %v1629
  %v1631 = vpop.f32.mrb[0].mxu0
  %v1632 = vadd.f32 0.0, %v1631
  %v1633 = vpop.f32.mrb[0].mxu0
  %v1634 = vpop.f32.mrb[0].mxu0
  %1635 = vdwg.mxu0
  %1636 = vmatprep.subr.bf16.mxu0 %v1197
  %1637 = vmatpush1.bf16.msra.mxu0 %v1196
  %1638 = vmatprep.subr.bf16.mxu0 %v1217
  %1639 = vmatpush1.bf16.msra.mxu0 %v1216
  %1640 = vmatprep.subr.bf16.mxu0 %v1237
  %1641 = vmatpush1.bf16.msra.mxu0 %v1236
  %1642 = vmatprep.subr.bf16.mxu0 %v1257
  %1643 = vmatpush1.bf16.msra.mxu0 %v1256
  %1644 = vmatprep.subr.bf16.mxu0 %v1405
  %1645 = vmatpush1.bf16.msra.mxu0 %v1402
  %1646 = vmatprep.subr.bf16.mxu0 0
  %1647 = vmatpush1.bf16.msra.mxu0 0
  %1648 = vmatprep.subr.bf16.mxu0 0
  %1649 = vmatpush1.bf16.msra.mxu0 0
  %1650 = vmatprep.subr.bf16.mxu0 0
  %1651 = vmatpush1.bf16.msra.mxu0 0
  %1652 = vmatprep.subr.bf16.mxu0 0
  %1653 = vmatpush1.bf16.msra.mxu0 0
  %1654 = vmatprep.subr.bf16.mxu0 0
  %1655 = vmatpush1.bf16.msra.mxu0 0
  %1656 = vmatprep.subr.bf16.mxu0 0
  %1657 = vmatpush1.bf16.msra.mxu0 0
  %1658 = vmatprep.subr.bf16.mxu0 0
  %1659 = vmatpush1.bf16.msra.mxu0 0
  %1660 = vmatprep.subr.bf16.mxu0 0
  %1661 = vmatpush1.bf16.msra.mxu0 0
  %1662 = vmatprep.subr.bf16.mxu0 0
  %1663 = vmatpush1.bf16.msra.mxu0 0
  %1664 = vmatprep.subr.bf16.mxu0 0
  %1665 = vmatpush1.bf16.msra.mxu0 0
  %1666 = vmatprep.subr.bf16.mxu0 0
  %1667 = vmatpush1.bf16.msra.mxu0 0
  %1668 = vmatprep.mubr.bf16.mxu0 0
  %1669 = vmatmul.mubr.bf16.gmra.mrb[0].mxu0 %v1368
  %v1670 = vpop.f32.mrb[0].mxu0
  %v1671 = vadd.f32 0.0, %v1670
  %v1672 = vpop.f32.mrb[0].mxu0
  %v1673 = vadd.f32 0.0, %v1672
  %v1674 = vpop.f32.mrb[0].mxu0
  %v1675 = vpop.f32.mrb[0].mxu0
  %1676 = vdwg.mxu0
  %1677 = vmatprep.subr.bf16.mxu0 %v1199
  %1678 = vmatpush1.bf16.msra.mxu0 %v1198
  %1679 = vmatprep.subr.bf16.mxu0 %v1219
  %1680 = vmatpush1.bf16.msra.mxu0 %v1218
  %1681 = vmatprep.subr.bf16.mxu0 %v1239
  %1682 = vmatpush1.bf16.msra.mxu0 %v1238
  %1683 = vmatprep.subr.bf16.mxu0 %v1259
  %1684 = vmatpush1.bf16.msra.mxu0 %v1258
  %1685 = vmatprep.subr.bf16.mxu0 %v1411
  %1686 = vmatpush1.bf16.msra.mxu0 %v1408
  %1687 = vmatprep.subr.bf16.mxu0 0
  %1688 = vmatpush1.bf16.msra.mxu0 0
  %1689 = vmatprep.subr.bf16.mxu0 0
  %1690 = vmatpush1.bf16.msra.mxu0 0
  %1691 = vmatprep.subr.bf16.mxu0 0
  %1692 = vmatpush1.bf16.msra.mxu0 0
  %1693 = vmatprep.subr.bf16.mxu0 0
  %1694 = vmatpush1.bf16.msra.mxu0 0
  %1695 = vmatprep.subr.bf16.mxu0 0
  %1696 = vmatpush1.bf16.msra.mxu0 0
  %1697 = vmatprep.subr.bf16.mxu0 0
  %1698 = vmatpush1.bf16.msra.mxu0 0
  %1699 = vmatprep.subr.bf16.mxu0 0
  %1700 = vmatpush1.bf16.msra.mxu0 0
  %1701 = vmatprep.subr.bf16.mxu0 0
  %1702 = vmatpush1.bf16.msra.mxu0 0
  %1703 = vmatprep.subr.bf16.mxu0 0
  %1704 = vmatpush1.bf16.msra.mxu0 0
  %1705 = vmatprep.subr.bf16.mxu0 0
  %1706 = vmatpush1.bf16.msra.mxu0 0
  %1707 = vmatprep.subr.bf16.mxu0 0
  %1708 = vmatpush1.bf16.msra.mxu0 0
  %1709 = vmatprep.mubr.bf16.mxu0 0
  %1710 = vmatmul.mubr.bf16.gmra.mrb[0].mxu0 %v1368
  %v1711 = vpop.f32.mrb[0].mxu0
  %v1712 = vadd.f32 0.0, %v1711
  %v1713 = vpop.f32.mrb[0].mxu0
  %v1714 = vadd.f32 0.0, %v1713
  %v1715 = vpop.f32.mrb[0].mxu0
  %v1716 = vpop.f32.mrb[0].mxu0
  %1717 = vdwg.mxu0
  %1718 = vmatprep.subr.bf16.mxu0 %v1201
  %1719 = vmatpush1.bf16.msra.mxu0 %v1200
  %1720 = vmatprep.subr.bf16.mxu0 %v1221
  %1721 = vmatpush1.bf16.msra.mxu0 %v1220
  %1722 = vmatprep.subr.bf16.mxu0 %v1241
  %1723 = vmatpush1.bf16.msra.mxu0 %v1240
  %1724 = vmatprep.subr.bf16.mxu0 %v1261
  %1725 = vmatpush1.bf16.msra.mxu0 %v1260
  %1726 = vmatprep.subr.bf16.mxu0 %v1417
  %1727 = vmatpush1.bf16.msra.mxu0 %v1414
  %1728 = vmatprep.subr.bf16.mxu0 0
  %1729 = vmatpush1.bf16.msra.mxu0 0
  %1730 = vmatprep.subr.bf16.mxu0 0
  %1731 = vmatpush1.bf16.msra.mxu0 0
  %1732 = vmatprep.subr.bf16.mxu0 0
  %1733 = vmatpush1.bf16.msra.mxu0 0
  %1734 = vmatprep.subr.bf16.mxu0 0
  %1735 = vmatpush1.bf16.msra.mxu0 0
  %1736 = vmatprep.subr.bf16.mxu0 0
  %1737 = vmatpush1.bf16.msra.mxu0 0
  %1738 = vmatprep.subr.bf16.mxu0 0
  %1739 = vmatpush1.bf16.msra.mxu0 0
  %1740 = vmatprep.subr.bf16.mxu0 0
  %1741 = vmatpush1.bf16.msra.mxu0 0
  %1742 = vmatprep.subr.bf16.mxu0 0
  %1743 = vmatpush1.bf16.msra.mxu0 0
  %1744 = vmatprep.subr.bf16.mxu0 0
  %1745 = vmatpush1.bf16.msra.mxu0 0
  %1746 = vmatprep.subr.bf16.mxu0 0
  %1747 = vmatpush1.bf16.msra.mxu0 0
  %1748 = vmatprep.subr.bf16.mxu0 0
  %1749 = vmatpush1.bf16.msra.mxu0 0
  %1750 = vmatprep.mubr.bf16.mxu0 0
  %1751 = vmatmul.mubr.bf16.gmra.mrb[0].mxu0 %v1368
  %v1752 = vpop.f32.mrb[0].mxu0
  %v1753 = vadd.f32 0.0, %v1752
  %v1754 = vpop.f32.mrb[0].mxu0
  %v1755 = vadd.f32 0.0, %v1754
  %v1756 = vpop.f32.mrb[0].mxu0
  %v1757 = vpop.f32.mrb[0].mxu0
  %1758 = vdwg.mxu0
  %1759 = vmatprep.subr.bf16.mxu0 %v1203
  %1760 = vmatpush1.bf16.msra.mxu0 %v1202
  %1761 = vmatprep.subr.bf16.mxu0 %v1223
  %1762 = vmatpush1.bf16.msra.mxu0 %v1222
  %1763 = vmatprep.subr.bf16.mxu0 %v1243
  %1764 = vmatpush1.bf16.msra.mxu0 %v1242
  %1765 = vmatprep.subr.bf16.mxu0 %v1263
  %1766 = vmatpush1.bf16.msra.mxu0 %v1262
  %1767 = vmatprep.subr.bf16.mxu0 %v1423
  %1768 = vmatpush1.bf16.msra.mxu0 %v1420
  %1769 = vmatprep.subr.bf16.mxu0 0
  %1770 = vmatpush1.bf16.msra.mxu0 0
  %1771 = vmatprep.subr.bf16.mxu0 0
  %1772 = vmatpush1.bf16.msra.mxu0 0
  %1773 = vmatprep.subr.bf16.mxu0 0
  %1774 = vmatpush1.bf16.msra.mxu0 0
  %1775 = vmatprep.subr.bf16.mxu0 0
  %1776 = vmatpush1.bf16.msra.mxu0 0
  %1777 = vmatprep.subr.bf16.mxu0 0
  %1778 = vmatpush1.bf16.msra.mxu0 0
  %1779 = vmatprep.subr.bf16.mxu0 0
  %1780 = vmatpush1.bf16.msra.mxu0 0
  %1781 = vmatprep.subr.bf16.mxu0 0
  %1782 = vmatpush1.bf16.msra.mxu0 0
  %1783 = vmatprep.subr.bf16.mxu0 0
  %1784 = vmatpush1.bf16.msra.mxu0 0
  %1785 = vmatprep.subr.bf16.mxu0 0
  %1786 = vmatpush1.bf16.msra.mxu0 0
  %1787 = vmatprep.subr.bf16.mxu0 0
  %1788 = vmatpush1.bf16.msra.mxu0 0
  %1789 = vmatprep.subr.bf16.mxu0 0
  %1790 = vmatpush1.bf16.msra.mxu0 0
  %1791 = vmatprep.mubr.bf16.mxu0 0
  %1792 = vmatmul.mubr.bf16.gmra.mrb[0].mxu0 %v1368
  %v1793 = vpop.f32.mrb[0].mxu0
  %v1794 = vadd.f32 0.0, %v1793
  %v1795 = vpop.f32.mrb[0].mxu0
  %v1796 = vadd.f32 0.0, %v1795
  %v1797 = vpop.f32.mrb[0].mxu0
  %v1798 = vpop.f32.mrb[0].mxu0
  %1799 = vdwg.mxu0
  %1800 = vmatprep.subr.bf16.mxu0 %v1205
  %1801 = vmatpush1.bf16.msra.mxu0 %v1204
  %1802 = vmatprep.subr.bf16.mxu0 %v1225
  %1803 = vmatpush1.bf16.msra.mxu0 %v1224
  %1804 = vmatprep.subr.bf16.mxu0 %v1245
  %1805 = vmatpush1.bf16.msra.mxu0 %v1244
  %1806 = vmatprep.subr.bf16.mxu0 %v1265
  %1807 = vmatpush1.bf16.msra.mxu0 %v1264
  %1808 = vmatprep.subr.bf16.mxu0 %v1429
  %1809 = vmatpush1.bf16.msra.mxu0 %v1426
  %1810 = vmatprep.subr.bf16.mxu0 0
  %1811 = vmatpush1.bf16.msra.mxu0 0
  %1812 = vmatprep.subr.bf16.mxu0 0
  %1813 = vmatpush1.bf16.msra.mxu0 0
  %1814 = vmatprep.subr.bf16.mxu0 0
  %1815 = vmatpush1.bf16.msra.mxu0 0
  %1816 = vmatprep.subr.bf16.mxu0 0
  %1817 = vmatpush1.bf16.msra.mxu0 0
  %1818 = vmatprep.subr.bf16.mxu0 0
  %1819 = vmatpush1.bf16.msra.mxu0 0
  %1820 = vmatprep.subr.bf16.mxu0 0
  %1821 = vmatpush1.bf16.msra.mxu0 0
  %1822 = vmatprep.subr.bf16.mxu0 0
  %1823 = vmatpush1.bf16.msra.mxu0 0
  %1824 = vmatprep.subr.bf16.mxu0 0
  %1825 = vmatpush1.bf16.msra.mxu0 0
  %1826 = vmatprep.subr.bf16.mxu0 0
  %1827 = vmatpush1.bf16.msra.mxu0 0
  %1828 = vmatprep.subr.bf16.mxu0 0
  %1829 = vmatpush1.bf16.msra.mxu0 0
  %1830 = vmatprep.subr.bf16.mxu0 0
  %1831 = vmatpush1.bf16.msra.mxu0 0
  %1832 = vmatprep.mubr.bf16.mxu0 0
  %1833 = vmatmul.mubr.bf16.gmra.mrb[0].mxu0 %v1368
  %v1834 = vpop.f32.mrb[0].mxu0
  %v1835 = vadd.f32 0.0, %v1834
  %v1836 = vpop.f32.mrb[0].mxu0
  %v1837 = vadd.f32 0.0, %v1836
  %v1838 = vpop.f32.mrb[0].mxu0
  %v1839 = vpop.f32.mrb[0].mxu0
  %1840 = vdwg.mxu0
  %v1844 = vlaneseq
  %v1845 = vshrl.u32 %v1844, 7
  %v1846 = vsub.s32 0, %v1845
  %v1847 = vrot.slane %v33, %v1846
  %v1848 = vlaneseq
  %v1849 = vshrl.u32 %v1848, 7
  %v1850 = vsub.s32 1, %v1849
  %v1851 = vrot.slane %v33, %v1850
  %v1852 = vlaneseq
  %v1853 = vshrl.u32 %v1852, 7
  %v1854 = vsub.s32 2, %v1853
  %v1855 = vrot.slane %v33, %v1854
  %v1856 = vlaneseq
  %v1857 = vshrl.u32 %v1856, 7
  %v1858 = vsub.s32 3, %v1857
  %v1859 = vrot.slane %v33, %v1858
  %v1860 = vlaneseq
  %v1861 = vshrl.u32 %v1860, 7
  %v1862 = vsub.s32 4, %v1861
  %v1863 = vrot.slane %v33, %v1862
  %v1864 = vlaneseq
  %v1865 = vshrl.u32 %v1864, 7
  %v1866 = vsub.s32 5, %v1865
  %v1867 = vrot.slane %v33, %v1866
  %v1868 = vlaneseq
  %v1869 = vshrl.u32 %v1868, 7
  %v1870 = vsub.s32 6, %v1869
  %v1871 = vrot.slane %v33, %v1870
  %v1872 = vlaneseq
  %v1873 = vshrl.u32 %v1872, 7
  %v1874 = vsub.s32 7, %v1873
  %v1875 = vrot.slane %v33, %v1874
  %v1876 = vlaneseq
  %v1877 = vshrl.u32 %v1876, 7
  %v1878 = vsub.s32 0, %v1877
  %v1879 = vrot.slane %v34, %v1878
  %v1880 = vlaneseq
  %v1881 = vshrl.u32 %v1880, 7
  %v1882 = vsub.s32 1, %v1881
  %v1883 = vrot.slane %v34, %v1882
  %v1884 = vlaneseq
  %v1885 = vshrl.u32 %v1884, 7
  %v1886 = vsub.s32 2, %v1885
  %v1887 = vrot.slane %v34, %v1886
  %v1888 = vlaneseq
  %v1889 = vshrl.u32 %v1888, 7
  %v1890 = vsub.s32 3, %v1889
  %v1891 = vrot.slane %v34, %v1890
  %v1892 = vlaneseq
  %v1893 = vshrl.u32 %v1892, 7
  %v1894 = vsub.s32 4, %v1893
  %v1895 = vrot.slane %v34, %v1894
  %v1896 = vlaneseq
  %v1897 = vshrl.u32 %v1896, 7
  %v1898 = vsub.s32 5, %v1897
  %v1899 = vrot.slane %v34, %v1898
  %v1900 = vlaneseq
  %v1901 = vshrl.u32 %v1900, 7
  %v1902 = vsub.s32 6, %v1901
  %v1903 = vrot.slane %v34, %v1902
  %v1904 = vlaneseq
  %v1905 = vshrl.u32 %v1904, 7
  %v1906 = vsub.s32 7, %v1905
  %v1907 = vrot.slane %v34, %v1906
  %v1908 = vlaneseq
  %v1909 = vshrl.u32 %v1908, 7
  %v1910 = vsub.s32 0, %v1909
  %v1911 = vrot.slane %v35, %v1910
  %v1912 = vlaneseq
  %v1913 = vshrl.u32 %v1912, 7
  %v1914 = vsub.s32 1, %v1913
  %v1915 = vrot.slane %v35, %v1914
  %v1916 = vlaneseq
  %v1917 = vshrl.u32 %v1916, 7
  %v1918 = vsub.s32 2, %v1917
  %v1919 = vrot.slane %v35, %v1918
  %v1920 = vlaneseq
  %v1921 = vshrl.u32 %v1920, 7
  %v1922 = vsub.s32 3, %v1921
  %v1923 = vrot.slane %v35, %v1922
  %v1944 = vmul.f32 %v1466, %v1847
  %v1945 = vmul.f32 %v1468, %v1851
  %v1946 = vmul.f32 %v1507, %v1855
  %v1947 = vmul.f32 %v1509, %v1859
  %v1948 = vmul.f32 %v1548, %v1863
  %v1949 = vmul.f32 %v1550, %v1867
  %v1950 = vmul.f32 %v1589, %v1871
  %v1951 = vmul.f32 %v1591, %v1875
  %v1952 = vmul.f32 %v1630, %v1879
  %v1953 = vmul.f32 %v1632, %v1883
  %v1954 = vmul.f32 %v1671, %v1887
  %v1955 = vmul.f32 %v1673, %v1891
  %v1956 = vmul.f32 %v1712, %v1895
  %v1957 = vmul.f32 %v1714, %v1899
  %v1958 = vmul.f32 %v1753, %v1903
  %v1959 = vmul.f32 %v1755, %v1907
  %v1960 = vmul.f32 %v1794, %v1911
  %v1961 = vmul.f32 %v1796, %v1915
  %v1962 = vmul.f32 %v1835, %v1919
  %v1963 = vmul.f32 %v1837, %v1923
  %v1964 = vadd.f32 %v1944, %v1945
  %v1965 = vadd.f32 %v1964, %v1946
  %v1966 = vadd.f32 %v1965, %v1947
  %v1967 = vadd.f32 %v1966, %v1948
  %v1968 = vadd.f32 %v1967, %v1949
  %v1969 = vadd.f32 %v1968, %v1950
  %v1970 = vadd.f32 %v1969, %v1951
  %v1971 = vadd.f32 %v1970, %v1952
  %v1972 = vadd.f32 %v1971, %v1953
  %v1973 = vadd.f32 %v1972, %v1954
  %v1974 = vadd.f32 %v1973, %v1955
  %v1975 = vadd.f32 %v1974, %v1956
  %v1976 = vadd.f32 %v1975, %v1957
  %v1977 = vadd.f32 %v1976, %v1958
  %v1978 = vadd.f32 %v1977, %v1959
  %v1979 = vadd.f32 %v1978, %v1960
  %v1980 = vadd.f32 %v1979, %v1961
  %v1981 = vadd.f32 %v1980, %v1962
  %v1982 = vadd.f32 %v1981, %v1963
  %1983 = vadd.xlane.f32.xlu0 %v1982
  %v1984 = vpop.xlane.xlu0 %1983
  %v1985 = vmul.f32 %v1984, 0.00048828125
  %v1986 = vsub.f32 %v1466, %v1985
  %v1987 = vsub.f32 %v1468, %v1985
  %v1988 = vsub.f32 %v1507, %v1985
  %v1989 = vsub.f32 %v1509, %v1985
  %v1990 = vsub.f32 %v1548, %v1985
  %v1991 = vsub.f32 %v1550, %v1985
  %v1992 = vsub.f32 %v1589, %v1985
  %v1993 = vsub.f32 %v1591, %v1985
  %v1994 = vsub.f32 %v1630, %v1985
  %v1995 = vsub.f32 %v1632, %v1985
  %v1996 = vsub.f32 %v1671, %v1985
  %v1997 = vsub.f32 %v1673, %v1985
  %v1998 = vsub.f32 %v1712, %v1985
  %v1999 = vsub.f32 %v1714, %v1985
  %v2000 = vsub.f32 %v1753, %v1985
  %v2001 = vsub.f32 %v1755, %v1985
  %v2002 = vsub.f32 %v1794, %v1985
  %v2003 = vsub.f32 %v1796, %v1985
  %v2004 = vsub.f32 %v1835, %v1985
  %v2005 = vsub.f32 %v1837, %v1985
  %v2006 = vmul.f32 %v1986, %v1847
  %v2007 = vmul.f32 %v1987, %v1851
  %v2008 = vmul.f32 %v1988, %v1855
  %v2009 = vmul.f32 %v1989, %v1859
  %v2010 = vmul.f32 %v1990, %v1863
  %v2011 = vmul.f32 %v1991, %v1867
  %v2012 = vmul.f32 %v1992, %v1871
  %v2013 = vmul.f32 %v1993, %v1875
  %v2014 = vmul.f32 %v1994, %v1879
  %v2015 = vmul.f32 %v1995, %v1883
  %v2016 = vmul.f32 %v1996, %v1887
  %v2017 = vmul.f32 %v1997, %v1891
  %v2018 = vmul.f32 %v1998, %v1895
  %v2019 = vmul.f32 %v1999, %v1899
  %v2020 = vmul.f32 %v2000, %v1903
  %v2021 = vmul.f32 %v2001, %v1907
  %v2022 = vmul.f32 %v2002, %v1911
  %v2023 = vmul.f32 %v2003, %v1915
  %v2024 = vmul.f32 %v2004, %v1919
  %v2025 = vmul.f32 %v2005, %v1923
  %v2026 = vmul.f32 %v2006, %v2006
  %v2027 = vmul.f32 %v2007, %v2007
  %v2028 = vmul.f32 %v2008, %v2008
  %v2029 = vmul.f32 %v2009, %v2009
  %v2030 = vmul.f32 %v2010, %v2010
  %v2031 = vmul.f32 %v2011, %v2011
  %v2032 = vmul.f32 %v2012, %v2012
  %v2033 = vmul.f32 %v2013, %v2013
  %v2034 = vmul.f32 %v2014, %v2014
  %v2035 = vmul.f32 %v2015, %v2015
  %v2036 = vmul.f32 %v2016, %v2016
  %v2037 = vmul.f32 %v2017, %v2017
  %v2038 = vmul.f32 %v2018, %v2018
  %v2039 = vmul.f32 %v2019, %v2019
  %v2040 = vmul.f32 %v2020, %v2020
  %v2041 = vmul.f32 %v2021, %v2021
  %v2042 = vmul.f32 %v2022, %v2022
  %v2043 = vmul.f32 %v2023, %v2023
  %v2044 = vmul.f32 %v2024, %v2024
  %v2045 = vmul.f32 %v2025, %v2025
  %v2046 = vadd.f32 %v2026, %v2027
  %v2047 = vadd.f32 %v2046, %v2028
  %v2048 = vadd.f32 %v2047, %v2029
  %v2049 = vadd.f32 %v2048, %v2030
  %v2050 = vadd.f32 %v2049, %v2031
  %v2051 = vadd.f32 %v2050, %v2032
  %v2052 = vadd.f32 %v2051, %v2033
  %v2053 = vadd.f32 %v2052, %v2034
  %v2054 = vadd.f32 %v2053, %v2035
  %v2055 = vadd.f32 %v2054, %v2036
  %v2056 = vadd.f32 %v2055, %v2037
  %v2057 = vadd.f32 %v2056, %v2038
  %v2058 = vadd.f32 %v2057, %v2039
  %v2059 = vadd.f32 %v2058, %v2040
  %v2060 = vadd.f32 %v2059, %v2041
  %v2061 = vadd.f32 %v2060, %v2042
  %v2062 = vadd.f32 %v2061, %v2043
  %v2063 = vadd.f32 %v2062, %v2044
  %v2064 = vadd.f32 %v2063, %v2045
  %2065 = vadd.xlane.f32.xlu0 %v2064
  %v2066 = vpop.xlane.xlu0 %2065
  %v2067 = vmul.f32 %v2066, 0.00048828125
  %v2068 = vld [vmem:[%s3] sm:$0xff]
  %v2069 = vadd.f32 %v2067, 1e-05
  %v2070 = vrsqrt.pop %v2069
  %v2071 = vmul.f32 %v2068, %v2070
  %v2072 = vld [vmem:[%s4] sm:$0xff]
  %v2073 = vmul.f32 %v1985, %v2071
  %v2074 = vsub.f32 %v2072, %v2073
  %2075 = vst [vmem:[#allocation3] sm:$0xf] 0
  %2076 = vst [vmem:[#allocation3 + $0x54] sm:$0xf] 0
  %2078 = vset.pattern.permute.xlu0 0
  %2079 = vperm.xlu0 %2078, %v2071
  %v2080 = vpop.permute.xlu0 %2079
  %v2082 = vmul.f32 %v1466, %v2080
  %v2083 = vmul.f32 %v1468, %v2080
  %v2084 = vmul.f32 %v1507, %v2080
  %v2085 = vmul.f32 %v1509, %v2080
  %v2086 = vmul.f32 %v1548, %v2080
  %v2087 = vmul.f32 %v1550, %v2080
  %v2088 = vmul.f32 %v1589, %v2080
  %v2089 = vmul.f32 %v1591, %v2080
  %v2090 = vmul.f32 %v1630, %v2080
  %v2091 = vmul.f32 %v1632, %v2080
  %v2092 = vmul.f32 %v1671, %v2080
  %v2093 = vmul.f32 %v1673, %v2080
  %v2094 = vmul.f32 %v1712, %v2080
  %v2095 = vmul.f32 %v1714, %v2080
  %v2096 = vmul.f32 %v1753, %v2080
  %v2097 = vmul.f32 %v1755, %v2080
  %v2098 = vmul.f32 %v1794, %v2080
  %v2099 = vmul.f32 %v1796, %v2080
  %v2100 = vmul.f32 %v1835, %v2080
  %v2101 = vmul.f32 %v1837, %v2080
  %2103 = vset.pattern.permute.xlu0 0
  %2104 = vperm.xlu0 %2103, %v2074
  %v2105 = vpop.permute.xlu0 %2104
  %v2107 = vadd.f32 %v2082, %v2105
  %v2108 = vadd.f32 %v2083, %v2105
  %v2109 = vadd.f32 %v2084, %v2105
  %v2110 = vadd.f32 %v2085, %v2105
  %v2111 = vadd.f32 %v2086, %v2105
  %v2112 = vadd.f32 %v2087, %v2105
  %v2113 = vadd.f32 %v2088, %v2105
  %v2114 = vadd.f32 %v2089, %v2105
  %v2115 = vadd.f32 %v2090, %v2105
  %v2116 = vadd.f32 %v2091, %v2105
  %v2117 = vadd.f32 %v2092, %v2105
  %v2118 = vadd.f32 %v2093, %v2105
  %v2119 = vadd.f32 %v2094, %v2105
  %v2120 = vadd.f32 %v2095, %v2105
  %v2121 = vadd.f32 %v2096, %v2105
  %v2122 = vadd.f32 %v2097, %v2105
  %v2123 = vadd.f32 %v2098, %v2105
  %v2124 = vadd.f32 %v2099, %v2105
  %v2125 = vadd.f32 %v2100, %v2105
  %v2126 = vadd.f32 %v2101, %v2105
  %v2127 = vmax.f32 %v2107, 0.0
  %v2128 = vmax.f32 %v2108, 0.0
  %v2129 = vmax.f32 %v2109, 0.0
  %v2130 = vmax.f32 %v2110, 0.0
  %v2131 = vmax.f32 %v2111, 0.0
  %v2132 = vmax.f32 %v2112, 0.0
  %v2133 = vmax.f32 %v2113, 0.0
  %v2134 = vmax.f32 %v2114, 0.0
  %v2135 = vmax.f32 %v2115, 0.0
  %v2136 = vmax.f32 %v2116, 0.0
  %v2137 = vmax.f32 %v2117, 0.0
  %v2138 = vmax.f32 %v2118, 0.0
  %v2139 = vmax.f32 %v2119, 0.0
  %v2140 = vmax.f32 %v2120, 0.0
  %v2141 = vmax.f32 %v2121, 0.0
  %v2142 = vmax.f32 %v2122, 0.0
  %v2143 = vmax.f32 %v2123, 0.0
  %v2144 = vmax.f32 %v2124, 0.0
  %v2145 = vmax.f32 %v2125, 0.0
  %v2146 = vmax.f32 %v2126, 0.0
  %v2147 = vmul.f32 %v2127, %v1847
  %v2148 = vmul.f32 %v2128, %v1851
  %v2149 = vmul.f32 %v2129, %v1855
  %v2150 = vmul.f32 %v2130, %v1859
  %v2151 = vmul.f32 %v2131, %v1863
  %v2152 = vmul.f32 %v2132, %v1867
  %v2153 = vmul.f32 %v2133, %v1871
  %v2154 = vmul.f32 %v2134, %v1875
  %v2155 = vmul.f32 %v2135, %v1879
  %v2156 = vmul.f32 %v2136, %v1883
  %v2157 = vmul.f32 %v2137, %v1887
  %v2158 = vmul.f32 %v2138, %v1891
  %v2159 = vmul.f32 %v2139, %v1895
  %v2160 = vmul.f32 %v2140, %v1899
  %v2161 = vmul.f32 %v2141, %v1903
  %v2162 = vmul.f32 %v2142, %v1907
  %v2163 = vmul.f32 %v2143, %v1911
  %v2164 = vmul.f32 %v2144, %v1915
  %v2165 = vmul.f32 %v2145, %v1919
  %v2166 = vmul.f32 %v2146, %v1923
  %v2167 = vpack.c.bf16 %v2147, %v2147
  %v2168 = vpack.c.bf16 %v2148, %v2148
  %v2169 = vpack.c.bf16 %v2149, %v2149
  %v2170 = vpack.c.bf16 %v2150, %v2150
  %v2171 = vpack.c.bf16 %v2151, %v2151
  %v2172 = vpack.c.bf16 %v2152, %v2152
  %v2173 = vpack.c.bf16 %v2153, %v2153
  %v2174 = vpack.c.bf16 %v2154, %v2154
  %v2175 = vpack.c.bf16 %v2155, %v2155
  %v2176 = vpack.c.bf16 %v2156, %v2156
  %v2177 = vpack.c.bf16 %v2157, %v2157
  %v2178 = vpack.c.bf16 %v2158, %v2158
  %v2179 = vpack.c.bf16 %v2159, %v2159
  %v2180 = vpack.c.bf16 %v2160, %v2160
  %v2181 = vpack.c.bf16 %v2161, %v2161
  %v2182 = vpack.c.bf16 %v2162, %v2162
  %v2183 = vpack.c.bf16 %v2163, %v2163
  %v2184 = vpack.c.bf16 %v2164, %v2164
  %v2185 = vpack.c.bf16 %v2165, %v2165
  %v2186 = vpack.c.bf16 %v2166, %v2166
  %v2207 = vunpack.c.l.b16 %v2167
  %v2208 = vunpack.c.l.b16 %v2168
  %v2209 = vunpack.c.l.b16 %v2169
  %v2210 = vunpack.c.l.b16 %v2170
  %v2211 = vunpack.c.l.b16 %v2171
  %v2212 = vunpack.c.l.b16 %v2172
  %v2213 = vunpack.c.l.b16 %v2173
  %v2214 = vunpack.c.l.b16 %v2174
  %v2215 = vunpack.c.l.b16 %v2175
  %v2216 = vunpack.c.l.b16 %v2176
  %v2217 = vunpack.c.l.b16 %v2177
  %v2218 = vunpack.c.l.b16 %v2178
  %v2219 = vunpack.c.l.b16 %v2179
  %v2220 = vunpack.c.l.b16 %v2180
  %v2221 = vunpack.c.l.b16 %v2181
  %v2222 = vunpack.c.l.b16 %v2182
  %v2223 = vunpack.c.l.b16 %v2183
  %v2224 = vunpack.c.l.b16 %v2184
  %v2225 = vunpack.c.l.b16 %v2185
  %v2226 = vunpack.c.l.b16 %v2186
  %v2227 = vpack.c.b16 %v2208, %v2207
  %v2228 = vpack.c.b16 %v2210, %v2209
  %v2229 = vpack.c.b16 %v2212, %v2211
  %v2230 = vpack.c.b16 %v2214, %v2213
  %v2231 = vpack.c.b16 %v2216, %v2215
  %v2232 = vpack.c.b16 %v2218, %v2217
  %v2233 = vpack.c.b16 %v2220, %v2219
  %v2234 = vpack.c.b16 %v2222, %v2221
  %v2235 = vpack.c.b16 %v2224, %v2223
  %v2236 = vpack.c.b16 %v2226, %v2225
  %2247 = vst [vmem:[#allocation3 + $0x4] sm:$0xff] %v2227
  %2248 = vst [vmem:[#allocation3 + $0xc] sm:$0xff] %v2228
  %2249 = vst [vmem:[#allocation3 + $0x14] sm:$0xff] %v2229
  %2250 = vst [vmem:[#allocation3 + $0x1c] sm:$0xff] %v2230
  %2251 = vst [vmem:[#allocation3 + $0x24] sm:$0xff] %v2231
  %2252 = vst [vmem:[#allocation3 + $0x2c] sm:$0xff] %v2232
  %2253 = vst [vmem:[#allocation3 + $0x34] sm:$0xff] %v2233
  %2254 = vst [vmem:[#allocation3 + $0x3c] sm:$0xff] %v2234
  %2255 = vst [vmem:[#allocation3 + $0x44] sm:$0xff] %v2235
  %2256 = vst [vmem:[#allocation3 + $0x4c] sm:$0xff] %v2236
  %v2257 = vld [vmem:[#allocation3] sm:$0xff]
  %v2258 = vld [vmem:[#allocation3 + $0x8] sm:$0xff]
  %v2259 = vld [vmem:[#allocation3 + $0x10] sm:$0xff]
  %v2260 = vld [vmem:[#allocation3 + $0x18] sm:$0xff]
  %v2261 = vld [vmem:[#allocation3 + $0x20] sm:$0xff]
  %v2262 = vld [vmem:[#allocation3 + $0x28] sm:$0xff]
  %v2263 = vld [vmem:[#allocation3 + $0x30] sm:$0xff]
  %v2264 = vld [vmem:[#allocation3 + $0x38] sm:$0xff]
  %v2265 = vld [vmem:[#allocation3 + $0x40] sm:$0xff]
  %v2266 = vld [vmem:[#allocation3 + $0x48] sm:$0xff]
  %v2267 = vld [vmem:[#allocation3 + $0x50] sm:$0xf]
  %2279 = vrot.lane.b32.xlu0 %v2257, 35
  %v2280 = vpop.permute.xlu0 %2279
  %2281 = vrot.lane.b32.xlu0 %v2258, 35
  %v2282 = vpop.permute.xlu0 %2281
  %2283 = vrot.lane.b32.xlu0 %v2259, 35
  %v2284 = vpop.permute.xlu0 %2283
  %2285 = vrot.lane.b32.xlu0 %v2260, 35
  %v2286 = vpop.permute.xlu0 %2285
  %2287 = vrot.lane.b32.xlu0 %v2261, 35
  %v2288 = vpop.permute.xlu0 %2287
  %2289 = vrot.lane.b32.xlu0 %v2262, 35
  %v2290 = vpop.permute.xlu0 %2289
  %2291 = vrot.lane.b32.xlu0 %v2263, 35
  %v2292 = vpop.permute.xlu0 %2291
  %2293 = vrot.lane.b32.xlu0 %v2264, 35
  %v2294 = vpop.permute.xlu0 %2293
  %2295 = vrot.lane.b32.xlu0 %v2265, 35
  %v2296 = vpop.permute.xlu0 %2295
  %2297 = vrot.lane.b32.xlu0 %v2266, 35
  %v2298 = vpop.permute.xlu0 %2297
  %2299 = vrot.lane.b32.xlu0 %v2267, 35
  %v2300 = vpop.permute.xlu0 %2299
  %v2301 = vrot.slane %v2280, 4
  %v2302 = vrot.slane %v2282, 4
  %v2303 = vrot.slane %v2284, 4
  %v2304 = vrot.slane %v2286, 4
  %v2305 = vrot.slane %v2288, 4
  %v2306 = vrot.slane %v2290, 4
  %v2307 = vrot.slane %v2292, 4
  %v2308 = vrot.slane %v2294, 4
  %v2309 = vrot.slane %v2296, 4
  %v2310 = vrot.slane %v2298, 4
  %v2311 = vrot.slane %v2300, 4
  %v2312 = vsel %vm91, %v2301, %v2302
  %v2313 = vsel %vm93, %v2280, %v2312
  %v2314 = vsel %vm91, %v2302, %v2303
  %v2315 = vsel %vm93, %v2282, %v2314
  %v2316 = vsel %vm91, %v2303, %v2304
  %v2317 = vsel %vm93, %v2284, %v2316
  %v2318 = vsel %vm91, %v2304, %v2305
  %v2319 = vsel %vm93, %v2286, %v2318
  %v2320 = vsel %vm91, %v2305, %v2306
  %v2321 = vsel %vm93, %v2288, %v2320
  %v2322 = vsel %vm91, %v2306, %v2307
  %v2323 = vsel %vm93, %v2290, %v2322
  %v2324 = vsel %vm91, %v2307, %v2308
  %v2325 = vsel %vm93, %v2292, %v2324
  %v2326 = vsel %vm91, %v2308, %v2309
  %v2327 = vsel %vm93, %v2294, %v2326
  %v2328 = vsel %vm91, %v2309, %v2310
  %v2329 = vsel %vm93, %v2296, %v2328
  %v2330 = vsel %vm91, %v2310, %v2311
  %v2331 = vsel %vm93, %v2298, %v2330
  %2342 = vst [vmem:[#allocation2] sm:$0xff] %v2313
  %2343 = vst [vmem:[#allocation2 + $0x8] sm:$0xff] %v2315
  %2344 = vst [vmem:[#allocation2 + $0x10] sm:$0xff] %v2317
  %2345 = vst [vmem:[#allocation2 + $0x18] sm:$0xff] %v2319
  %2346 = vst [vmem:[#allocation2 + $0x20] sm:$0xff] %v2321
  %2347 = vst [vmem:[#allocation2 + $0x28] sm:$0xff] %v2323
  %2348 = vst [vmem:[#allocation2 + $0x30] sm:$0xff] %v2325
  %2349 = vst [vmem:[#allocation2 + $0x38] sm:$0xff] %v2327
  %2350 = vst [vmem:[#allocation2 + $0x40] sm:$0xff] %v2329
  %2351 = vst [vmem:[#allocation2 + $0x48] sm:$0xff] %v2331
  %v2352 = vld [vmem:[#allocation3] sm:$0xff]
  %v2353 = vld [vmem:[#allocation3 + $0x8] sm:$0xff]
  %v2354 = vld [vmem:[#allocation3 + $0x10] sm:$0xff]
  %v2355 = vld [vmem:[#allocation3 + $0x18] sm:$0xff]
  %v2356 = vld [vmem:[#allocation3 + $0x20] sm:$0xff]
  %v2357 = vld [vmem:[#allocation3 + $0x28] sm:$0xff]
  %v2358 = vld [vmem:[#allocation3 + $0x30] sm:$0xff]
  %v2359 = vld [vmem:[#allocation3 + $0x38] sm:$0xff]
  %v2360 = vld [vmem:[#allocation3 + $0x40] sm:$0xff]
  %v2361 = vld [vmem:[#allocation3 + $0x48] sm:$0xff]
  %v2362 = vld [vmem:[#allocation3 + $0x50] sm:$0xf]
  %2374 = vrot.lane.b32.xlu0 %v2352, 34
  %v2375 = vpop.permute.xlu0 %2374
  %2376 = vrot.lane.b32.xlu0 %v2353, 34
  %v2377 = vpop.permute.xlu0 %2376
  %2378 = vrot.lane.b32.xlu0 %v2354, 34
  %v2379 = vpop.permute.xlu0 %2378
  %2380 = vrot.lane.b32.xlu0 %v2355, 34
  %v2381 = vpop.permute.xlu0 %2380
  %2382 = vrot.lane.b32.xlu0 %v2356, 34
  %v2383 = vpop.permute.xlu0 %2382
  %2384 = vrot.lane.b32.xlu0 %v2357, 34
  %v2385 = vpop.permute.xlu0 %2384
  %2386 = vrot.lane.b32.xlu0 %v2358, 34
  %v2387 = vpop.permute.xlu0 %2386
  %2388 = vrot.lane.b32.xlu0 %v2359, 34
  %v2389 = vpop.permute.xlu0 %2388
  %2390 = vrot.lane.b32.xlu0 %v2360, 34
  %v2391 = vpop.permute.xlu0 %2390
  %2392 = vrot.lane.b32.xlu0 %v2361, 34
  %v2393 = vpop.permute.xlu0 %2392
  %2394 = vrot.lane.b32.xlu0 %v2362, 34
  %v2395 = vpop.permute.xlu0 %2394
  %v2396 = vrot.slane %v2375, 4
  %v2397 = vrot.slane %v2377, 4
  %v2398 = vrot.slane %v2379, 4
  %v2399 = vrot.slane %v2381, 4
  %v2400 = vrot.slane %v2383, 4
  %v2401 = vrot.slane %v2385, 4
  %v2402 = vrot.slane %v2387, 4
  %v2403 = vrot.slane %v2389, 4
  %v2404 = vrot.slane %v2391, 4
  %v2405 = vrot.slane %v2393, 4
  %v2406 = vrot.slane %v2395, 4
  %v2407 = vsel %vm91, %v2396, %v2397
  %v2408 = vsel %vm189, %v2375, %v2407
  %v2409 = vsel %vm91, %v2397, %v2398
  %v2410 = vsel %vm189, %v2377, %v2409
  %v2411 = vsel %vm91, %v2398, %v2399
  %v2412 = vsel %vm189, %v2379, %v2411
  %v2413 = vsel %vm91, %v2399, %v2400
  %v2414 = vsel %vm189, %v2381, %v2413
  %v2415 = vsel %vm91, %v2400, %v2401
  %v2416 = vsel %vm189, %v2383, %v2415
  %v2417 = vsel %vm91, %v2401, %v2402
  %v2418 = vsel %vm189, %v2385, %v2417
  %v2419 = vsel %vm91, %v2402, %v2403
  %v2420 = vsel %vm189, %v2387, %v2419
  %v2421 = vsel %vm91, %v2403, %v2404
  %v2422 = vsel %vm189, %v2389, %v2421
  %v2423 = vsel %vm91, %v2404, %v2405
  %v2424 = vsel %vm189, %v2391, %v2423
  %v2425 = vsel %vm91, %v2405, %v2406
  %v2426 = vsel %vm189, %v2393, %v2425
  %2437 = vst [vmem:[#allocation2 + $0x50] sm:$0xff] %v2408
  %2438 = vst [vmem:[#allocation2 + $0x58] sm:$0xff] %v2410
  %2439 = vst [vmem:[#allocation2 + $0x60] sm:$0xff] %v2412
  %2440 = vst [vmem:[#allocation2 + $0x68] sm:$0xff] %v2414
  %2441 = vst [vmem:[#allocation2 + $0x70] sm:$0xff] %v2416
  %2442 = vst [vmem:[#allocation2 + $0x78] sm:$0xff] %v2418
  %2443 = vst [vmem:[#allocation2 + $0x80] sm:$0xff] %v2420
  %2444 = vst [vmem:[#allocation2 + $0x88] sm:$0xff] %v2422
  %2445 = vst [vmem:[#allocation2 + $0x90] sm:$0xff] %v2424
  %2446 = vst [vmem:[#allocation2 + $0x98] sm:$0xff] %v2426
  %v2447 = vld [vmem:[#allocation3] sm:$0xff]
  %v2448 = vld [vmem:[#allocation3 + $0x8] sm:$0xff]
  %v2449 = vld [vmem:[#allocation3 + $0x10] sm:$0xff]
  %v2450 = vld [vmem:[#allocation3 + $0x18] sm:$0xff]
  %v2451 = vld [vmem:[#allocation3 + $0x20] sm:$0xff]
  %v2452 = vld [vmem:[#allocation3 + $0x28] sm:$0xff]
  %v2453 = vld [vmem:[#allocation3 + $0x30] sm:$0xff]
  %v2454 = vld [vmem:[#allocation3 + $0x38] sm:$0xff]
  %v2455 = vld [vmem:[#allocation3 + $0x40] sm:$0xff]
  %v2456 = vld [vmem:[#allocation3 + $0x48] sm:$0xff]
  %v2457 = vld [vmem:[#allocation3 + $0x50] sm:$0xf]
  %2469 = vrot.lane.b32.xlu0 %v2447, 33
  %v2470 = vpop.permute.xlu0 %2469
  %2471 = vrot.lane.b32.xlu0 %v2448, 33
  %v2472 = vpop.permute.xlu0 %2471
  %2473 = vrot.lane.b32.xlu0 %v2449, 33
  %v2474 = vpop.permute.xlu0 %2473
  %2475 = vrot.lane.b32.xlu0 %v2450, 33
  %v2476 = vpop.permute.xlu0 %2475
  %2477 = vrot.lane.b32.xlu0 %v2451, 33
  %v2478 = vpop.permute.xlu0 %2477
  %2479 = vrot.lane.b32.xlu0 %v2452, 33
  %v2480 = vpop.permute.xlu0 %2479
  %2481 = vrot.lane.b32.xlu0 %v2453, 33
  %v2482 = vpop.permute.xlu0 %2481
  %2483 = vrot.lane.b32.xlu0 %v2454, 33
  %v2484 = vpop.permute.xlu0 %2483
  %2485 = vrot.lane.b32.xlu0 %v2455, 33
  %v2486 = vpop.permute.xlu0 %2485
  %2487 = vrot.lane.b32.xlu0 %v2456, 33
  %v2488 = vpop.permute.xlu0 %2487
  %2489 = vrot.lane.b32.xlu0 %v2457, 33
  %v2490 = vpop.permute.xlu0 %2489
  %v2491 = vrot.slane %v2470, 4
  %v2492 = vrot.slane %v2472, 4
  %v2493 = vrot.slane %v2474, 4
  %v2494 = vrot.slane %v2476, 4
  %v2495 = vrot.slane %v2478, 4
  %v2496 = vrot.slane %v2480, 4
  %v2497 = vrot.slane %v2482, 4
  %v2498 = vrot.slane %v2484, 4
  %v2499 = vrot.slane %v2486, 4
  %v2500 = vrot.slane %v2488, 4
  %v2501 = vrot.slane %v2490, 4
  %v2502 = vsel %vm91, %v2491, %v2492
  %v2503 = vsel %vm285, %v2470, %v2502
  %v2504 = vsel %vm91, %v2492, %v2493
  %v2505 = vsel %vm285, %v2472, %v2504
  %v2506 = vsel %vm91, %v2493, %v2494
  %v2507 = vsel %vm285, %v2474, %v2506
  %v2508 = vsel %vm91, %v2494, %v2495
  %v2509 = vsel %vm285, %v2476, %v2508
  %v2510 = vsel %vm91, %v2495, %v2496
  %v2511 = vsel %vm285, %v2478, %v2510
  %v2512 = vsel %vm91, %v2496, %v2497
  %v2513 = vsel %vm285, %v2480, %v2512
  %v2514 = vsel %vm91, %v2497, %v2498
  %v2515 = vsel %vm285, %v2482, %v2514
  %v2516 = vsel %vm91, %v2498, %v2499
  %v2517 = vsel %vm285, %v2484, %v2516
  %v2518 = vsel %vm91, %v2499, %v2500
  %v2519 = vsel %vm285, %v2486, %v2518
  %v2520 = vsel %vm91, %v2500, %v2501
  %v2521 = vsel %vm285, %v2488, %v2520
  %2532 = vst [vmem:[#allocation2 + $0xa0] sm:$0xff] %v2503
  %2533 = vst [vmem:[#allocation2 + $0xa8] sm:$0xff] %v2505
  %2534 = vst [vmem:[#allocation2 + $0xb0] sm:$0xff] %v2507
  %2535 = vst [vmem:[#allocation2 + $0xb8] sm:$0xff] %v2509
  %2536 = vst [vmem:[#allocation2 + $0xc0] sm:$0xff] %v2511
  %2537 = vst [vmem:[#allocation2 + $0xc8] sm:$0xff] %v2513
  %2538 = vst [vmem:[#allocation2 + $0xd0] sm:$0xff] %v2515
  %2539 = vst [vmem:[#allocation2 + $0xd8] sm:$0xff] %v2517
  %2540 = vst [vmem:[#allocation2 + $0xe0] sm:$0xff] %v2519
  %2541 = vst [vmem:[#allocation2 + $0xe8] sm:$0xff] %v2521
  %v2542 = vld [vmem:[#allocation3] sm:$0xff]
  %v2543 = vld [vmem:[#allocation3 + $0x8] sm:$0xff]
  %v2544 = vld [vmem:[#allocation3 + $0x10] sm:$0xff]
  %v2545 = vld [vmem:[#allocation3 + $0x18] sm:$0xff]
  %v2546 = vld [vmem:[#allocation3 + $0x20] sm:$0xff]
  %v2547 = vld [vmem:[#allocation3 + $0x28] sm:$0xff]
  %v2548 = vld [vmem:[#allocation3 + $0x30] sm:$0xff]
  %v2549 = vld [vmem:[#allocation3 + $0x38] sm:$0xff]
  %v2550 = vld [vmem:[#allocation3 + $0x40] sm:$0xff]
  %v2551 = vld [vmem:[#allocation3 + $0x48] sm:$0xff]
  %v2552 = vld [vmem:[#allocation3 + $0x50] sm:$0xf]
  %2564 = vrot.lane.b32.xlu0 %v2542, 1
  %v2565 = vpop.permute.xlu0 %2564
  %2566 = vrot.lane.b32.xlu0 %v2543, 1
  %v2567 = vpop.permute.xlu0 %2566
  %2568 = vrot.lane.b32.xlu0 %v2544, 1
  %v2569 = vpop.permute.xlu0 %2568
  %2570 = vrot.lane.b32.xlu0 %v2545, 1
  %v2571 = vpop.permute.xlu0 %2570
  %2572 = vrot.lane.b32.xlu0 %v2546, 1
  %v2573 = vpop.permute.xlu0 %2572
  %2574 = vrot.lane.b32.xlu0 %v2547, 1
  %v2575 = vpop.permute.xlu0 %2574
  %2576 = vrot.lane.b32.xlu0 %v2548, 1
  %v2577 = vpop.permute.xlu0 %2576
  %2578 = vrot.lane.b32.xlu0 %v2549, 1
  %v2579 = vpop.permute.xlu0 %2578
  %2580 = vrot.lane.b32.xlu0 %v2550, 1
  %v2581 = vpop.permute.xlu0 %2580
  %2582 = vrot.lane.b32.xlu0 %v2551, 1
  %v2583 = vpop.permute.xlu0 %2582
  %2584 = vrot.lane.b32.xlu0 %v2552, 1
  %v2585 = vpop.permute.xlu0 %2584
  %v2586 = vrot.slane %v2565, 4
  %v2587 = vrot.slane %v2567, 4
  %v2588 = vrot.slane %v2569, 4
  %v2589 = vrot.slane %v2571, 4
  %v2590 = vrot.slane %v2573, 4
  %v2591 = vrot.slane %v2575, 4
  %v2592 = vrot.slane %v2577, 4
  %v2593 = vrot.slane %v2579, 4
  %v2594 = vrot.slane %v2581, 4
  %v2595 = vrot.slane %v2583, 4
  %v2596 = vrot.slane %v2585, 4
  %v2597 = vsel %vm91, %v2586, %v2587
  %v2598 = vsel %vm381, %v2565, %v2597
  %v2599 = vsel %vm91, %v2587, %v2588
  %v2600 = vsel %vm381, %v2567, %v2599
  %v2601 = vsel %vm91, %v2588, %v2589
  %v2602 = vsel %vm381, %v2569, %v2601
  %v2603 = vsel %vm91, %v2589, %v2590
  %v2604 = vsel %vm381, %v2571, %v2603
  %v2605 = vsel %vm91, %v2590, %v2591
  %v2606 = vsel %vm381, %v2573, %v2605
  %v2607 = vsel %vm91, %v2591, %v2592
  %v2608 = vsel %vm381, %v2575, %v2607
  %v2609 = vsel %vm91, %v2592, %v2593
  %v2610 = vsel %vm381, %v2577, %v2609
  %v2611 = vsel %vm91, %v2593, %v2594
  %v2612 = vsel %vm381, %v2579, %v2611
  %v2613 = vsel %vm91, %v2594, %v2595
  %v2614 = vsel %vm381, %v2581, %v2613
  %v2615 = vsel %vm91, %v2595, %v2596
  %v2616 = vsel %vm381, %v2583, %v2615
  %2627 = vst [vmem:[#allocation2 + $0xf0] sm:$0xff] %v2598
  %2628 = vst [vmem:[#allocation2 + $0xf8] sm:$0xff] %v2600
  %2629 = vst [vmem:[#allocation2 + $0x100] sm:$0xff] %v2602
  %2630 = vst [vmem:[#allocation2 + $0x108] sm:$0xff] %v2604
  %2631 = vst [vmem:[#allocation2 + $0x110] sm:$0xff] %v2606
  %2632 = vst [vmem:[#allocation2 + $0x118] sm:$0xff] %v2608
  %2633 = vst [vmem:[#allocation2 + $0x120] sm:$0xff] %v2610
  %2634 = vst [vmem:[#allocation2 + $0x128] sm:$0xff] %v2612
  %2635 = vst [vmem:[#allocation2 + $0x130] sm:$0xff] %v2614
  %2636 = vst [vmem:[#allocation2 + $0x138] sm:$0xff] %v2616
  %v2637 = vld [vmem:[#allocation3 + $0x4] sm:$0xff]
  %v2638 = vld [vmem:[#allocation3 + $0xc] sm:$0xff]
  %v2639 = vld [vmem:[#allocation3 + $0x14] sm:$0xff]
  %v2640 = vld [vmem:[#allocation3 + $0x1c] sm:$0xff]
  %v2641 = vld [vmem:[#allocation3 + $0x24] sm:$0xff]
  %v2642 = vld [vmem:[#allocation3 + $0x2c] sm:$0xff]
  %v2643 = vld [vmem:[#allocation3 + $0x34] sm:$0xff]
  %v2644 = vld [vmem:[#allocation3 + $0x3c] sm:$0xff]
  %v2645 = vld [vmem:[#allocation3 + $0x44] sm:$0xff]
  %v2646 = vld [vmem:[#allocation3 + $0x4c] sm:$0xff]
  %2647 = vst [vmem:[#allocation2 + $0x140] sm:$0xff] %v2637
  %2648 = vst [vmem:[#allocation2 + $0x148] sm:$0xff] %v2638
  %2649 = vst [vmem:[#allocation2 + $0x150] sm:$0xff] %v2639
  %2650 = vst [vmem:[#allocation2 + $0x158] sm:$0xff] %v2640
  %2651 = vst [vmem:[#allocation2 + $0x160] sm:$0xff] %v2641
  %2652 = vst [vmem:[#allocation2 + $0x168] sm:$0xff] %v2642
  %2653 = vst [vmem:[#allocation2 + $0x170] sm:$0xff] %v2643
  %2654 = vst [vmem:[#allocation2 + $0x178] sm:$0xff] %v2644
  %2655 = vst [vmem:[#allocation2 + $0x180] sm:$0xff] %v2645
  %2656 = vst [vmem:[#allocation2 + $0x188] sm:$0xff] %v2646
  %v2657 = vld [vmem:[#allocation3 + $0x4] sm:$0xff]
  %v2658 = vld [vmem:[#allocation3 + $0xc] sm:$0xff]
  %v2659 = vld [vmem:[#allocation3 + $0x14] sm:$0xff]
  %v2660 = vld [vmem:[#allocation3 + $0x1c] sm:$0xff]
  %v2661 = vld [vmem:[#allocation3 + $0x24] sm:$0xff]
  %v2662 = vld [vmem:[#allocation3 + $0x2c] sm:$0xff]
  %v2663 = vld [vmem:[#allocation3 + $0x34] sm:$0xff]
  %v2664 = vld [vmem:[#allocation3 + $0x3c] sm:$0xff]
  %v2665 = vld [vmem:[#allocation3 + $0x44] sm:$0xff]
  %v2666 = vld [vmem:[#allocation3 + $0x4c] sm:$0xff]
  %v2667 = vld [vmem:[#allocation3 + $0x54] sm:$0xf]
  %2679 = vrot.lane.b32.xlu0 %v2657, 127
  %v2680 = vpop.permute.xlu0 %2679
  %2681 = vrot.lane.b32.xlu0 %v2658, 127
  %v2682 = vpop.permute.xlu0 %2681
  %2683 = vrot.lane.b32.xlu0 %v2659, 127
  %v2684 = vpop.permute.xlu0 %2683
  %2685 = vrot.lane.b32.xlu0 %v2660, 127
  %v2686 = vpop.permute.xlu0 %2685
  %2687 = vrot.lane.b32.xlu0 %v2661, 127
  %v2688 = vpop.permute.xlu0 %2687
  %2689 = vrot.lane.b32.xlu0 %v2662, 127
  %v2690 = vpop.permute.xlu0 %2689
  %2691 = vrot.lane.b32.xlu0 %v2663, 127
  %v2692 = vpop.permute.xlu0 %2691
  %2693 = vrot.lane.b32.xlu0 %v2664, 127
  %v2694 = vpop.permute.xlu0 %2693
  %2695 = vrot.lane.b32.xlu0 %v2665, 127
  %v2696 = vpop.permute.xlu0 %2695
  %2697 = vrot.lane.b32.xlu0 %v2666, 127
  %v2698 = vpop.permute.xlu0 %2697
  %2699 = vrot.lane.b32.xlu0 %v2667, 127
  %v2700 = vpop.permute.xlu0 %2699
  %v2701 = vrot.slane %v2680, 4
  %v2702 = vrot.slane %v2682, 4
  %v2703 = vrot.slane %v2684, 4
  %v2704 = vrot.slane %v2686, 4
  %v2705 = vrot.slane %v2688, 4
  %v2706 = vrot.slane %v2690, 4
  %v2707 = vrot.slane %v2692, 4
  %v2708 = vrot.slane %v2694, 4
  %v2709 = vrot.slane %v2696, 4
  %v2710 = vrot.slane %v2698, 4
  %v2711 = vrot.slane %v2700, 4
  %v2712 = vsel %vm91, %v2701, %v2702
  %v2713 = vsel %vm497, %v2680, %v2712
  %v2714 = vsel %vm91, %v2702, %v2703
  %v2715 = vsel %vm497, %v2682, %v2714
  %v2716 = vsel %vm91, %v2703, %v2704
  %v2717 = vsel %vm497, %v2684, %v2716
  %v2718 = vsel %vm91, %v2704, %v2705
  %v2719 = vsel %vm497, %v2686, %v2718
  %v2720 = vsel %vm91, %v2705, %v2706
  %v2721 = vsel %vm497, %v2688, %v2720
  %v2722 = vsel %vm91, %v2706, %v2707
  %v2723 = vsel %vm497, %v2690, %v2722
  %v2724 = vsel %vm91, %v2707, %v2708
  %v2725 = vsel %vm497, %v2692, %v2724
  %v2726 = vsel %vm91, %v2708, %v2709
  %v2727 = vsel %vm497, %v2694, %v2726
  %v2728 = vsel %vm91, %v2709, %v2710
  %v2729 = vsel %vm497, %v2696, %v2728
  %v2730 = vsel %vm91, %v2710, %v2711
  %v2731 = vsel %vm497, %v2698, %v2730
  %2742 = vst [vmem:[#allocation2 + $0x190] sm:$0xff] %v2713
  %2743 = vst [vmem:[#allocation2 + $0x198] sm:$0xff] %v2715
  %2744 = vst [vmem:[#allocation2 + $0x1a0] sm:$0xff] %v2717
  %2745 = vst [vmem:[#allocation2 + $0x1a8] sm:$0xff] %v2719
  %2746 = vst [vmem:[#allocation2 + $0x1b0] sm:$0xff] %v2721
  %2747 = vst [vmem:[#allocation2 + $0x1b8] sm:$0xff] %v2723
  %2748 = vst [vmem:[#allocation2 + $0x1c0] sm:$0xff] %v2725
  %2749 = vst [vmem:[#allocation2 + $0x1c8] sm:$0xff] %v2727
  %2750 = vst [vmem:[#allocation2 + $0x1d0] sm:$0xff] %v2729
  %2751 = vst [vmem:[#allocation2 + $0x1d8] sm:$0xff] %v2731
  %v2752 = vld [vmem:[#allocation3 + $0x4] sm:$0xff]
  %v2753 = vld [vmem:[#allocation3 + $0xc] sm:$0xff]
  %v2754 = vld [vmem:[#allocation3 + $0x14] sm:$0xff]
  %v2755 = vld [vmem:[#allocation3 + $0x1c] sm:$0xff]
  %v2756 = vld [vmem:[#allocation3 + $0x24] sm:$0xff]
  %v2757 = vld [vmem:[#allocation3 + $0x2c] sm:$0xff]
  %v2758 = vld [vmem:[#allocation3 + $0x34] sm:$0xff]
  %v2759 = vld [vmem:[#allocation3 + $0x3c] sm:$0xff]
  %v2760 = vld [vmem:[#allocation3 + $0x44] sm:$0xff]
  %v2761 = vld [vmem:[#allocation3 + $0x4c] sm:$0xff]
  %v2762 = vld [vmem:[#allocation3 + $0x54] sm:$0xf]
  %2774 = vrot.lane.b32.xlu0 %v2752, 95
  %v2775 = vpop.permute.xlu0 %2774
  %2776 = vrot.lane.b32.xlu0 %v2753, 95
  %v2777 = vpop.permute.xlu0 %2776
  %2778 = vrot.lane.b32.xlu0 %v2754, 95
  %v2779 = vpop.permute.xlu0 %2778
  %2780 = vrot.lane.b32.xlu0 %v2755, 95
  %v2781 = vpop.permute.xlu0 %2780
  %2782 = vrot.lane.b32.xlu0 %v2756, 95
  %v2783 = vpop.permute.xlu0 %2782
  %2784 = vrot.lane.b32.xlu0 %v2757, 95
  %v2785 = vpop.permute.xlu0 %2784
  %2786 = vrot.lane.b32.xlu0 %v2758, 95
  %v2787 = vpop.permute.xlu0 %2786
  %2788 = vrot.lane.b32.xlu0 %v2759, 95
  %v2789 = vpop.permute.xlu0 %2788
  %2790 = vrot.lane.b32.xlu0 %v2760, 95
  %v2791 = vpop.permute.xlu0 %2790
  %2792 = vrot.lane.b32.xlu0 %v2761, 95
  %v2793 = vpop.permute.xlu0 %2792
  %2794 = vrot.lane.b32.xlu0 %v2762, 95
  %v2795 = vpop.permute.xlu0 %2794
  %v2796 = vrot.slane %v2775, 4
  %v2797 = vrot.slane %v2777, 4
  %v2798 = vrot.slane %v2779, 4
  %v2799 = vrot.slane %v2781, 4
  %v2800 = vrot.slane %v2783, 4
  %v2801 = vrot.slane %v2785, 4
  %v2802 = vrot.slane %v2787, 4
  %v2803 = vrot.slane %v2789, 4
  %v2804 = vrot.slane %v2791, 4
  %v2805 = vrot.slane %v2793, 4
  %v2806 = vrot.slane %v2795, 4
  %v2807 = vsel %vm91, %v2796, %v2797
  %v2808 = vsel %vm593, %v2775, %v2807
  %v2809 = vsel %vm91, %v2797, %v2798
  %v2810 = vsel %vm593, %v2777, %v2809
  %v2811 = vsel %vm91, %v2798, %v2799
  %v2812 = vsel %vm593, %v2779, %v2811
  %v2813 = vsel %vm91, %v2799, %v2800
  %v2814 = vsel %vm593, %v2781, %v2813
  %v2815 = vsel %vm91, %v2800, %v2801
  %v2816 = vsel %vm593, %v2783, %v2815
  %v2817 = vsel %vm91, %v2801, %v2802
  %v2818 = vsel %vm593, %v2785, %v2817
  %v2819 = vsel %vm91, %v2802, %v2803
  %v2820 = vsel %vm593, %v2787, %v2819
  %v2821 = vsel %vm91, %v2803, %v2804
  %v2822 = vsel %vm593, %v2789, %v2821
  %v2823 = vsel %vm91, %v2804, %v2805
  %v2824 = vsel %vm593, %v2791, %v2823
  %v2825 = vsel %vm91, %v2805, %v2806
  %v2826 = vsel %vm593, %v2793, %v2825
  %2837 = vst [vmem:[#allocation2 + $0x1e0] sm:$0xff] %v2808
  %2838 = vst [vmem:[#allocation2 + $0x1e8] sm:$0xff] %v2810
  %2839 = vst [vmem:[#allocation2 + $0x1f0] sm:$0xff] %v2812
  %2840 = vst [vmem:[#allocation2 + $0x1f8] sm:$0xff] %v2814
  %2841 = vst [vmem:[#allocation2 + $0x200] sm:$0xff] %v2816
  %2842 = vst [vmem:[#allocation2 + $0x208] sm:$0xff] %v2818
  %2843 = vst [vmem:[#allocation2 + $0x210] sm:$0xff] %v2820
  %2844 = vst [vmem:[#allocation2 + $0x218] sm:$0xff] %v2822
  %2845 = vst [vmem:[#allocation2 + $0x220] sm:$0xff] %v2824
  %2846 = vst [vmem:[#allocation2 + $0x228] sm:$0xff] %v2826
  %v2847 = vld [vmem:[#allocation3 + $0x4] sm:$0xff]
  %v2848 = vld [vmem:[#allocation3 + $0xc] sm:$0xff]
  %v2849 = vld [vmem:[#allocation3 + $0x14] sm:$0xff]
  %v2850 = vld [vmem:[#allocation3 + $0x1c] sm:$0xff]
  %v2851 = vld [vmem:[#allocation3 + $0x24] sm:$0xff]
  %v2852 = vld [vmem:[#allocation3 + $0x2c] sm:$0xff]
  %v2853 = vld [vmem:[#allocation3 + $0x34] sm:$0xff]
  %v2854 = vld [vmem:[#allocation3 + $0x3c] sm:$0xff]
  %v2855 = vld [vmem:[#allocation3 + $0x44] sm:$0xff]
  %v2856 = vld [vmem:[#allocation3 + $0x4c] sm:$0xff]
  %v2857 = vld [vmem:[#allocation3 + $0x54] sm:$0xf]
  %2869 = vrot.lane.b32.xlu0 %v2847, 94
  %v2870 = vpop.permute.xlu0 %2869
  %2871 = vrot.lane.b32.xlu0 %v2848, 94
  %v2872 = vpop.permute.xlu0 %2871
  %2873 = vrot.lane.b32.xlu0 %v2849, 94
  %v2874 = vpop.permute.xlu0 %2873
  %2875 = vrot.lane.b32.xlu0 %v2850, 94
  %v2876 = vpop.permute.xlu0 %2875
  %2877 = vrot.lane.b32.xlu0 %v2851, 94
  %v2878 = vpop.permute.xlu0 %2877
  %2879 = vrot.lane.b32.xlu0 %v2852, 94
  %v2880 = vpop.permute.xlu0 %2879
  %2881 = vrot.lane.b32.xlu0 %v2853, 94
  %v2882 = vpop.permute.xlu0 %2881
  %2883 = vrot.lane.b32.xlu0 %v2854, 94
  %v2884 = vpop.permute.xlu0 %2883
  %2885 = vrot.lane.b32.xlu0 %v2855, 94
  %v2886 = vpop.permute.xlu0 %2885
  %2887 = vrot.lane.b32.xlu0 %v2856, 94
  %v2888 = vpop.permute.xlu0 %2887
  %2889 = vrot.lane.b32.xlu0 %v2857, 94
  %v2890 = vpop.permute.xlu0 %2889
  %v2891 = vrot.slane %v2870, 4
  %v2892 = vrot.slane %v2872, 4
  %v2893 = vrot.slane %v2874, 4
  %v2894 = vrot.slane %v2876, 4
  %v2895 = vrot.slane %v2878, 4
  %v2896 = vrot.slane %v2880, 4
  %v2897 = vrot.slane %v2882, 4
  %v2898 = vrot.slane %v2884, 4
  %v2899 = vrot.slane %v2886, 4
  %v2900 = vrot.slane %v2888, 4
  %v2901 = vrot.slane %v2890, 4
  %v2902 = vsel %vm91, %v2891, %v2892
  %v2903 = vsel %vm689, %v2870, %v2902
  %v2904 = vsel %vm91, %v2892, %v2893
  %v2905 = vsel %vm689, %v2872, %v2904
  %v2906 = vsel %vm91, %v2893, %v2894
  %v2907 = vsel %vm689, %v2874, %v2906
  %v2908 = vsel %vm91, %v2894, %v2895
  %v2909 = vsel %vm689, %v2876, %v2908
  %v2910 = vsel %vm91, %v2895, %v2896
  %v2911 = vsel %vm689, %v2878, %v2910
  %v2912 = vsel %vm91, %v2896, %v2897
  %v2913 = vsel %vm689, %v2880, %v2912
  %v2914 = vsel %vm91, %v2897, %v2898
  %v2915 = vsel %vm689, %v2882, %v2914
  %v2916 = vsel %vm91, %v2898, %v2899
  %v2917 = vsel %vm689, %v2884, %v2916
  %v2918 = vsel %vm91, %v2899, %v2900
  %v2919 = vsel %vm689, %v2886, %v2918
  %v2920 = vsel %vm91, %v2900, %v2901
  %v2921 = vsel %vm689, %v2888, %v2920
  %2932 = vst [vmem:[#allocation2 + $0x230] sm:$0xff] %v2903
  %2933 = vst [vmem:[#allocation2 + $0x238] sm:$0xff] %v2905
  %2934 = vst [vmem:[#allocation2 + $0x240] sm:$0xff] %v2907
  %2935 = vst [vmem:[#allocation2 + $0x248] sm:$0xff] %v2909
  %2936 = vst [vmem:[#allocation2 + $0x250] sm:$0xff] %v2911
  %2937 = vst [vmem:[#allocation2 + $0x258] sm:$0xff] %v2913
  %2938 = vst [vmem:[#allocation2 + $0x260] sm:$0xff] %v2915
  %2939 = vst [vmem:[#allocation2 + $0x268] sm:$0xff] %v2917
  %2940 = vst [vmem:[#allocation2 + $0x270] sm:$0xff] %v2919
  %2941 = vst [vmem:[#allocation2 + $0x278] sm:$0xff] %v2921
  %v2942 = vld [vmem:[#allocation3 + $0x4] sm:$0xff]
  %v2943 = vld [vmem:[#allocation3 + $0xc] sm:$0xff]
  %v2944 = vld [vmem:[#allocation3 + $0x14] sm:$0xff]
  %v2945 = vld [vmem:[#allocation3 + $0x1c] sm:$0xff]
  %v2946 = vld [vmem:[#allocation3 + $0x24] sm:$0xff]
  %v2947 = vld [vmem:[#allocation3 + $0x2c] sm:$0xff]
  %v2948 = vld [vmem:[#allocation3 + $0x34] sm:$0xff]
  %v2949 = vld [vmem:[#allocation3 + $0x3c] sm:$0xff]
  %v2950 = vld [vmem:[#allocation3 + $0x44] sm:$0xff]
  %v2951 = vld [vmem:[#allocation3 + $0x4c] sm:$0xff]
  %v2952 = vld [vmem:[#allocation3 + $0x54] sm:$0xf]
  %2964 = vrot.lane.b32.xlu0 %v2942, 93
  %v2965 = vpop.permute.xlu0 %2964
  %2966 = vrot.lane.b32.xlu0 %v2943, 93
  %v2967 = vpop.permute.xlu0 %2966
  %2968 = vrot.lane.b32.xlu0 %v2944, 93
  %v2969 = vpop.permute.xlu0 %2968
  %2970 = vrot.lane.b32.xlu0 %v2945, 93
  %v2971 = vpop.permute.xlu0 %2970
  %2972 = vrot.lane.b32.xlu0 %v2946, 93
  %v2973 = vpop.permute.xlu0 %2972
  %2974 = vrot.lane.b32.xlu0 %v2947, 93
  %v2975 = vpop.permute.xlu0 %2974
  %2976 = vrot.lane.b32.xlu0 %v2948, 93
  %v2977 = vpop.permute.xlu0 %2976
  %2978 = vrot.lane.b32.xlu0 %v2949, 93
  %v2979 = vpop.permute.xlu0 %2978
  %2980 = vrot.lane.b32.xlu0 %v2950, 93
  %v2981 = vpop.permute.xlu0 %2980
  %2982 = vrot.lane.b32.xlu0 %v2951, 93
  %v2983 = vpop.permute.xlu0 %2982
  %2984 = vrot.lane.b32.xlu0 %v2952, 93
  %v2985 = vpop.permute.xlu0 %2984
  %v2986 = vrot.slane %v2965, 4
  %v2987 = vrot.slane %v2967, 4
  %v2988 = vrot.slane %v2969, 4
  %v2989 = vrot.slane %v2971, 4
  %v2990 = vrot.slane %v2973, 4
  %v2991 = vrot.slane %v2975, 4
  %v2992 = vrot.slane %v2977, 4
  %v2993 = vrot.slane %v2979, 4
  %v2994 = vrot.slane %v2981, 4
  %v2995 = vrot.slane %v2983, 4
  %v2996 = vrot.slane %v2985, 4
  %v2997 = vsel %vm91, %v2986, %v2987
  %v2998 = vsel %vm785, %v2965, %v2997
  %v2999 = vsel %vm91, %v2987, %v2988
  %v3000 = vsel %vm785, %v2967, %v2999
  %v3001 = vsel %vm91, %v2988, %v2989
  %v3002 = vsel %vm785, %v2969, %v3001
  %v3003 = vsel %vm91, %v2989, %v2990
  %v3004 = vsel %vm785, %v2971, %v3003
  %v3005 = vsel %vm91, %v2990, %v2991
  %v3006 = vsel %vm785, %v2973, %v3005
  %v3007 = vsel %vm91, %v2991, %v2992
  %v3008 = vsel %vm785, %v2975, %v3007
  %v3009 = vsel %vm91, %v2992, %v2993
  %v3010 = vsel %vm785, %v2977, %v3009
  %v3011 = vsel %vm91, %v2993, %v2994
  %v3012 = vsel %vm785, %v2979, %v3011
  %v3013 = vsel %vm91, %v2994, %v2995
  %v3014 = vsel %vm785, %v2981, %v3013
  %v3015 = vsel %vm91, %v2995, %v2996
  %v3016 = vsel %vm785, %v2983, %v3015
  %3027 = vst [vmem:[#allocation2 + $0x280] sm:$0xff] %v2998
  %3028 = vst [vmem:[#allocation2 + $0x288] sm:$0xff] %v3000
  %3029 = vst [vmem:[#allocation2 + $0x290] sm:$0xff] %v3002
  %3030 = vst [vmem:[#allocation2 + $0x298] sm:$0xff] %v3004
  %3031 = vst [vmem:[#allocation2 + $0x2a0] sm:$0xff] %v3006
  %3032 = vst [vmem:[#allocation2 + $0x2a8] sm:$0xff] %v3008
  %3033 = vst [vmem:[#allocation2 + $0x2b0] sm:$0xff] %v3010
  %3034 = vst [vmem:[#allocation2 + $0x2b8] sm:$0xff] %v3012
  %3035 = vst [vmem:[#allocation2 + $0x2c0] sm:$0xff] %v3014
  %3036 = vst [vmem:[#allocation2 + $0x2c8] sm:$0xff] %v3016
  %v3037 = vld [vmem:[%s2] sm:$0xf]
  %v3038 = vld [vmem:[#allocation2] sm:$0xff]
  %v3039 = vld [vmem:[#allocation2 + $0x8] sm:$0xff]
  %v3040 = vld [vmem:[#allocation2 + $0x10] sm:$0xff]
  %v3041 = vld [vmem:[#allocation2 + $0x18] sm:$0xff]
  %v3042 = vld [vmem:[#allocation2 + $0x20] sm:$0xff]
  %v3043 = vld [vmem:[#allocation2 + $0x28] sm:$0xff]
  %v3044 = vld [vmem:[#allocation2 + $0x30] sm:$0xff]
  %v3045 = vld [vmem:[#allocation2 + $0x38] sm:$0xff]
  %v3046 = vld [vmem:[#allocation2 + $0x40] sm:$0xff]
  %v3047 = vld [vmem:[#allocation2 + $0x48] sm:$0xff]
  %v3048 = vld [vmem:[#allocation2 + $0x50] sm:$0xff]
  %v3049 = vld [vmem:[#allocation2 + $0x58] sm:$0xff]
  %v3050 = vld [vmem:[#allocation2 + $0x60] sm:$0xff]
  %v3051 = vld [vmem:[#allocation2 + $0x68] sm:$0xff]
  %v3052 = vld [vmem:[#allocation2 + $0x70] sm:$0xff]
  %v3053 = vld [vmem:[#allocation2 + $0x78] sm:$0xff]
  %v3054 = vld [vmem:[#allocation2 + $0x80] sm:$0xff]
  %v3055 = vld [vmem:[#allocation2 + $0x88] sm:$0xff]
  %v3056 = vld [vmem:[#allocation2 + $0x90] sm:$0xff]
  %v3057 = vld [vmem:[#allocation2 + $0x98] sm:$0xff]
  %v3058 = vld [vmem:[#allocation2 + $0xa0] sm:$0xff]
  %v3059 = vld [vmem:[#allocation2 + $0xa8] sm:$0xff]
  %v3060 = vld [vmem:[#allocation2 + $0xb0] sm:$0xff]
  %v3061 = vld [vmem:[#allocation2 + $0xb8] sm:$0xff]
  %v3062 = vld [vmem:[#allocation2 + $0xc0] sm:$0xff]
  %v3063 = vld [vmem:[#allocation2 + $0xc8] sm:$0xff]
  %v3064 = vld [vmem:[#allocation2 + $0xd0] sm:$0xff]
  %v3065 = vld [vmem:[#allocation2 + $0xd8] sm:$0xff]
  %v3066 = vld [vmem:[#allocation2 + $0xe0] sm:$0xff]
  %v3067 = vld [vmem:[#allocation2 + $0xe8] sm:$0xff]
  %v3068 = vld [vmem:[#allocation2 + $0xf0] sm:$0xff]
  %v3069 = vld [vmem:[#allocation2 + $0xf8] sm:$0xff]
  %v3070 = vld [vmem:[#allocation2 + $0x100] sm:$0xff]
  %v3071 = vld [vmem:[#allocation2 + $0x108] sm:$0xff]
  %v3072 = vld [vmem:[#allocation2 + $0x110] sm:$0xff]
  %v3073 = vld [vmem:[#allocation2 + $0x118] sm:$0xff]
  %v3074 = vld [vmem:[#allocation2 + $0x120] sm:$0xff]
  %v3075 = vld [vmem:[#allocation2 + $0x128] sm:$0xff]
  %v3076 = vld [vmem:[#allocation2 + $0x130] sm:$0xff]
  %v3077 = vld [vmem:[#allocation2 + $0x138] sm:$0xff]
  %v3078 = vld [vmem:[#allocation2 + $0x140] sm:$0xff]
  %v3079 = vld [vmem:[#allocation2 + $0x148] sm:$0xff]
  %v3080 = vld [vmem:[#allocation2 + $0x150] sm:$0xff]
  %v3081 = vld [vmem:[#allocation2 + $0x158] sm:$0xff]
  %v3082 = vld [vmem:[#allocation2 + $0x160] sm:$0xff]
  %v3083 = vld [vmem:[#allocation2 + $0x168] sm:$0xff]
  %v3084 = vld [vmem:[#allocation2 + $0x170] sm:$0xff]
  %v3085 = vld [vmem:[#allocation2 + $0x178] sm:$0xff]
  %v3086 = vld [vmem:[#allocation2 + $0x180] sm:$0xff]
  %v3087 = vld [vmem:[#allocation2 + $0x188] sm:$0xff]
  %v3088 = vld [vmem:[#allocation2 + $0x190] sm:$0xff]
  %v3089 = vld [vmem:[#allocation2 + $0x198] sm:$0xff]
  %v3090 = vld [vmem:[#allocation2 + $0x1a0] sm:$0xff]
  %v3091 = vld [vmem:[#allocation2 + $0x1a8] sm:$0xff]
  %v3092 = vld [vmem:[#allocation2 + $0x1b0] sm:$0xff]
  %v3093 = vld [vmem:[#allocation2 + $0x1b8] sm:$0xff]
  %v3094 = vld [vmem:[#allocation2 + $0x1c0] sm:$0xff]
  %v3095 = vld [vmem:[#allocation2 + $0x1c8] sm:$0xff]
  %v3096 = vld [vmem:[#allocation2 + $0x1d0] sm:$0xff]
  %v3097 = vld [vmem:[#allocation2 + $0x1d8] sm:$0xff]
  %v3098 = vld [vmem:[#allocation2 + $0x1e0] sm:$0xff]
  %v3099 = vld [vmem:[#allocation2 + $0x1e8] sm:$0xff]
  %v3100 = vld [vmem:[#allocation2 + $0x1f0] sm:$0xff]
  %v3101 = vld [vmem:[#allocation2 + $0x1f8] sm:$0xff]
  %v3102 = vld [vmem:[#allocation2 + $0x200] sm:$0xff]
  %v3103 = vld [vmem:[#allocation2 + $0x208] sm:$0xff]
  %v3104 = vld [vmem:[#allocation2 + $0x210] sm:$0xff]
  %v3105 = vld [vmem:[#allocation2 + $0x218] sm:$0xff]
  %v3106 = vld [vmem:[#allocation2 + $0x220] sm:$0xff]
  %v3107 = vld [vmem:[#allocation2 + $0x228] sm:$0xff]
  %v3108 = vld [vmem:[#allocation2 + $0x230] sm:$0xff]
  %v3109 = vld [vmem:[#allocation2 + $0x238] sm:$0xff]
  %v3110 = vld [vmem:[#allocation2 + $0x240] sm:$0xff]
  %v3111 = vld [vmem:[#allocation2 + $0x248] sm:$0xff]
  %v3112 = vld [vmem:[#allocation2 + $0x250] sm:$0xff]
  %v3113 = vld [vmem:[#allocation2 + $0x258] sm:$0xff]
  %v3114 = vld [vmem:[#allocation2 + $0x260] sm:$0xff]
  %v3115 = vld [vmem:[#allocation2 + $0x268] sm:$0xff]
  %v3116 = vld [vmem:[#allocation2 + $0x270] sm:$0xff]
  %v3117 = vld [vmem:[#allocation2 + $0x278] sm:$0xff]
  %v3118 = vld [vmem:[#allocation2 + $0x280] sm:$0xff]
  %v3119 = vld [vmem:[#allocation2 + $0x288] sm:$0xff]
  %v3120 = vld [vmem:[#allocation2 + $0x290] sm:$0xff]
  %v3121 = vld [vmem:[#allocation2 + $0x298] sm:$0xff]
  %v3122 = vld [vmem:[#allocation2 + $0x2a0] sm:$0xff]
  %v3123 = vld [vmem:[#allocation2 + $0x2a8] sm:$0xff]
  %v3124 = vld [vmem:[#allocation2 + $0x2b0] sm:$0xff]
  %v3125 = vld [vmem:[#allocation2 + $0x2b8] sm:$0xff]
  %v3126 = vld [vmem:[#allocation2 + $0x2c0] sm:$0xff]
  %v3127 = vld [vmem:[#allocation2 + $0x2c8] sm:$0xff]
  %v3218 = vunpack.c.l.b16 %v3038
  %v3219 = vunpack.c.h.b16 %v3038
  %v3220 = vunpack.c.l.b16 %v3039
  %v3221 = vunpack.c.h.b16 %v3039
  %v3222 = vunpack.c.l.b16 %v3040
  %v3223 = vunpack.c.h.b16 %v3040
  %v3224 = vunpack.c.l.b16 %v3041
  %v3225 = vunpack.c.h.b16 %v3041
  %v3226 = vunpack.c.l.b16 %v3042
  %v3227 = vunpack.c.h.b16 %v3042
  %v3228 = vunpack.c.l.b16 %v3043
  %v3229 = vunpack.c.h.b16 %v3043
  %v3230 = vunpack.c.l.b16 %v3044
  %v3231 = vunpack.c.h.b16 %v3044
  %v3232 = vunpack.c.l.b16 %v3045
  %v3233 = vunpack.c.h.b16 %v3045
  %v3234 = vunpack.c.l.b16 %v3046
  %v3235 = vunpack.c.h.b16 %v3046
  %v3236 = vunpack.c.l.b16 %v3047
  %v3237 = vunpack.c.h.b16 %v3047
  %v3238 = vunpack.c.l.b16 %v3048
  %v3239 = vunpack.c.h.b16 %v3048
  %v3240 = vunpack.c.l.b16 %v3049
  %v3241 = vunpack.c.h.b16 %v3049
  %v3242 = vunpack.c.l.b16 %v3050
  %v3243 = vunpack.c.h.b16 %v3050
  %v3244 = vunpack.c.l.b16 %v3051
  %v3245 = vunpack.c.h.b16 %v3051
  %v3246 = vunpack.c.l.b16 %v3052
  %v3247 = vunpack.c.h.b16 %v3052
  %v3248 = vunpack.c.l.b16 %v3053
  %v3249 = vunpack.c.h.b16 %v3053
  %v3250 = vunpack.c.l.b16 %v3054
  %v3251 = vunpack.c.h.b16 %v3054
  %v3252 = vunpack.c.l.b16 %v3055
  %v3253 = vunpack.c.h.b16 %v3055
  %v3254 = vunpack.c.l.b16 %v3056
  %v3255 = vunpack.c.h.b16 %v3056
  %v3256 = vunpack.c.l.b16 %v3057
  %v3257 = vunpack.c.h.b16 %v3057
  %v3258 = vunpack.c.l.b16 %v3058
  %v3259 = vunpack.c.h.b16 %v3058
  %v3260 = vunpack.c.l.b16 %v3059
  %v3261 = vunpack.c.h.b16 %v3059
  %v3262 = vunpack.c.l.b16 %v3060
  %v3263 = vunpack.c.h.b16 %v3060
  %v3264 = vunpack.c.l.b16 %v3061
  %v3265 = vunpack.c.h.b16 %v3061
  %v3266 = vunpack.c.l.b16 %v3062
  %v3267 = vunpack.c.h.b16 %v3062
  %v3268 = vunpack.c.l.b16 %v3063
  %v3269 = vunpack.c.h.b16 %v3063
  %v3270 = vunpack.c.l.b16 %v3064
  %v3271 = vunpack.c.h.b16 %v3064
  %v3272 = vunpack.c.l.b16 %v3065
  %v3273 = vunpack.c.h.b16 %v3065
  %v3274 = vunpack.c.l.b16 %v3066
  %v3275 = vunpack.c.h.b16 %v3066
  %v3276 = vunpack.c.l.b16 %v3067
  %v3277 = vunpack.c.h.b16 %v3067
  %v3278 = vunpack.c.l.b16 %v3068
  %v3279 = vunpack.c.h.b16 %v3068
  %v3280 = vunpack.c.l.b16 %v3069
  %v3281 = vunpack.c.h.b16 %v3069
  %v3282 = vunpack.c.l.b16 %v3070
  %v3283 = vunpack.c.h.b16 %v3070
  %v3284 = vunpack.c.l.b16 %v3071
  %v3285 = vunpack.c.h.b16 %v3071
  %v3286 = vunpack.c.l.b16 %v3072
  %v3287 = vunpack.c.h.b16 %v3072
  %v3288 = vunpack.c.l.b16 %v3073
  %v3289 = vunpack.c.h.b16 %v3073
  %v3290 = vunpack.c.l.b16 %v3074
  %v3291 = vunpack.c.h.b16 %v3074
  %v3292 = vunpack.c.l.b16 %v3075
  %v3293 = vunpack.c.h.b16 %v3075
  %v3294 = vunpack.c.l.b16 %v3076
  %v3295 = vunpack.c.h.b16 %v3076
  %v3296 = vunpack.c.l.b16 %v3077
  %v3297 = vunpack.c.h.b16 %v3077
  %v3298 = vunpack.c.l.b16 %v3078
  %v3299 = vunpack.c.h.b16 %v3078
  %v3300 = vunpack.c.l.b16 %v3079
  %v3301 = vunpack.c.h.b16 %v3079
  %v3302 = vunpack.c.l.b16 %v3080
  %v3303 = vunpack.c.h.b16 %v3080
  %v3304 = vunpack.c.l.b16 %v3081
  %v3305 = vunpack.c.h.b16 %v3081
  %v3306 = vunpack.c.l.b16 %v3082
  %v3307 = vunpack.c.h.b16 %v3082
  %v3308 = vunpack.c.l.b16 %v3083
  %v3309 = vunpack.c.h.b16 %v3083
  %v3310 = vunpack.c.l.b16 %v3084
  %v3311 = vunpack.c.h.b16 %v3084
  %v3312 = vunpack.c.l.b16 %v3085
  %v3313 = vunpack.c.h.b16 %v3085
  %v3314 = vunpack.c.l.b16 %v3086
  %v3315 = vunpack.c.h.b16 %v3086
  %v3316 = vunpack.c.l.b16 %v3087
  %v3317 = vunpack.c.h.b16 %v3087
  %v3318 = vunpack.c.l.b16 %v3088
  %v3319 = vunpack.c.h.b16 %v3088
  %v3320 = vunpack.c.l.b16 %v3089
  %v3321 = vunpack.c.h.b16 %v3089
  %v3322 = vunpack.c.l.b16 %v3090
  %v3323 = vunpack.c.h.b16 %v3090
  %v3324 = vunpack.c.l.b16 %v3091
  %v3325 = vunpack.c.h.b16 %v3091
  %v3326 = vunpack.c.l.b16 %v3092
  %v3327 = vunpack.c.h.b16 %v3092
  %v3328 = vunpack.c.l.b16 %v3093
  %v3329 = vunpack.c.h.b16 %v3093
  %v3330 = vunpack.c.l.b16 %v3094
  %v3331 = vunpack.c.h.b16 %v3094
  %v3332 = vunpack.c.l.b16 %v3095
  %v3333 = vunpack.c.h.b16 %v3095
  %v3334 = vunpack.c.l.b16 %v3096
  %v3335 = vunpack.c.h.b16 %v3096
  %v3336 = vunpack.c.l.b16 %v3097
  %v3337 = vunpack.c.h.b16 %v3097
  %v3338 = vunpack.c.l.b16 %v3098
  %v3339 = vunpack.c.h.b16 %v3098
  %v3340 = vunpack.c.l.b16 %v3099
  %v3341 = vunpack.c.h.b16 %v3099
  %v3342 = vunpack.c.l.b16 %v3100
  %v3343 = vunpack.c.h.b16 %v3100
  %v3344 = vunpack.c.l.b16 %v3101
  %v3345 = vunpack.c.h.b16 %v3101
  %v3346 = vunpack.c.l.b16 %v3102
  %v3347 = vunpack.c.h.b16 %v3102
  %v3348 = vunpack.c.l.b16 %v3103
  %v3349 = vunpack.c.h.b16 %v3103
  %v3350 = vunpack.c.l.b16 %v3104
  %v3351 = vunpack.c.h.b16 %v3104
  %v3352 = vunpack.c.l.b16 %v3105
  %v3353 = vunpack.c.h.b16 %v3105
  %v3354 = vunpack.c.l.b16 %v3106
  %v3355 = vunpack.c.h.b16 %v3106
  %v3356 = vunpack.c.l.b16 %v3107
  %v3357 = vunpack.c.h.b16 %v3107
  %v3358 = vunpack.c.l.b16 %v3108
  %v3359 = vunpack.c.h.b16 %v3108
  %v3360 = vunpack.c.l.b16 %v3109
  %v3361 = vunpack.c.h.b16 %v3109
  %v3362 = vunpack.c.l.b16 %v3110
  %v3363 = vunpack.c.h.b16 %v3110
  %v3364 = vunpack.c.l.b16 %v3111
  %v3365 = vunpack.c.h.b16 %v3111
  %v3366 = vunpack.c.l.b16 %v3112
  %v3367 = vunpack.c.h.b16 %v3112
  %v3368 = vunpack.c.l.b16 %v3113
  %v3369 = vunpack.c.h.b16 %v3113
  %v3370 = vunpack.c.l.b16 %v3114
  %v3371 = vunpack.c.h.b16 %v3114
  %v3372 = vunpack.c.l.b16 %v3115
  %v3373 = vunpack.c.h.b16 %v3115
  %v3374 = vunpack.c.l.b16 %v3116
  %v3375 = vunpack.c.h.b16 %v3116
  %v3376 = vunpack.c.l.b16 %v3117
  %v3377 = vunpack.c.h.b16 %v3117
  %v3378 = vunpack.c.l.b16 %v3118
  %v3379 = vunpack.c.h.b16 %v3118
  %v3380 = vunpack.c.l.b16 %v3119
  %v3381 = vunpack.c.h.b16 %v3119
  %v3382 = vunpack.c.l.b16 %v3120
  %v3383 = vunpack.c.h.b16 %v3120
  %v3384 = vunpack.c.l.b16 %v3121
  %v3385 = vunpack.c.h.b16 %v3121
  %v3386 = vunpack.c.l.b16 %v3122
  %v3387 = vunpack.c.h.b16 %v3122
  %v3388 = vunpack.c.l.b16 %v3123
  %v3389 = vunpack.c.h.b16 %v3123
  %v3390 = vunpack.c.l.b16 %v3124
  %v3391 = vunpack.c.h.b16 %v3124
  %v3392 = vunpack.c.l.b16 %v3125
  %v3393 = vunpack.c.h.b16 %v3125
  %v3394 = vunpack.c.l.b16 %v3126
  %v3395 = vunpack.c.h.b16 %v3126
  %v3396 = vunpack.c.l.b16 %v3127
  %v3397 = vunpack.c.h.b16 %v3127
  %v3398 = vpack.c.b16 %v3238, %v3218
  %v3399 = vpack.c.b16 %v3239, %v3219
  %v3400 = vpack.c.b16 %v3240, %v3220
  %v3401 = vpack.c.b16 %v3241, %v3221
  %v3402 = vpack.c.b16 %v3242, %v3222
  %v3403 = vpack.c.b16 %v3243, %v3223
  %v3404 = vpack.c.b16 %v3244, %v3224
  %v3405 = vpack.c.b16 %v3245, %v3225
  %v3406 = vpack.c.b16 %v3246, %v3226
  %v3407 = vpack.c.b16 %v3247, %v3227
  %v3408 = vpack.c.b16 %v3248, %v3228
  %v3409 = vpack.c.b16 %v3249, %v3229
  %v3410 = vpack.c.b16 %v3250, %v3230
  %v3411 = vpack.c.b16 %v3251, %v3231
  %v3412 = vpack.c.b16 %v3252, %v3232
  %v3413 = vpack.c.b16 %v3253, %v3233
  %v3414 = vpack.c.b16 %v3254, %v3234
  %v3415 = vpack.c.b16 %v3255, %v3235
  %v3416 = vpack.c.b16 %v3256, %v3236
  %v3417 = vpack.c.b16 %v3257, %v3237
  %v3418 = vpack.c.b16 %v3278, %v3258
  %v3419 = vpack.c.b16 %v3279, %v3259
  %v3420 = vpack.c.b16 %v3280, %v3260
  %v3421 = vpack.c.b16 %v3281, %v3261
  %v3422 = vpack.c.b16 %v3282, %v3262
  %v3423 = vpack.c.b16 %v3283, %v3263
  %v3424 = vpack.c.b16 %v3284, %v3264
  %v3425 = vpack.c.b16 %v3285, %v3265
  %v3426 = vpack.c.b16 %v3286, %v3266
  %v3427 = vpack.c.b16 %v3287, %v3267
  %v3428 = vpack.c.b16 %v3288, %v3268
  %v3429 = vpack.c.b16 %v3289, %v3269
  %v3430 = vpack.c.b16 %v3290, %v3270
  %v3431 = vpack.c.b16 %v3291, %v3271
  %v3432 = vpack.c.b16 %v3292, %v3272
  %v3433 = vpack.c.b16 %v3293, %v3273
  %v3434 = vpack.c.b16 %v3294, %v3274
  %v3435 = vpack.c.b16 %v3295, %v3275
  %v3436 = vpack.c.b16 %v3296, %v3276
  %v3437 = vpack.c.b16 %v3297, %v3277
  %v3438 = vpack.c.b16 %v3318, %v3298
  %v3439 = vpack.c.b16 %v3319, %v3299
  %v3440 = vpack.c.b16 %v3320, %v3300
  %v3441 = vpack.c.b16 %v3321, %v3301
  %v3442 = vpack.c.b16 %v3322, %v3302
  %v3443 = vpack.c.b16 %v3323, %v3303
  %v3444 = vpack.c.b16 %v3324, %v3304
  %v3445 = vpack.c.b16 %v3325, %v3305
  %v3446 = vpack.c.b16 %v3326, %v3306
  %v3447 = vpack.c.b16 %v3327, %v3307
  %v3448 = vpack.c.b16 %v3328, %v3308
  %v3449 = vpack.c.b16 %v3329, %v3309
  %v3450 = vpack.c.b16 %v3330, %v3310
  %v3451 = vpack.c.b16 %v3331, %v3311
  %v3452 = vpack.c.b16 %v3332, %v3312
  %v3453 = vpack.c.b16 %v3333, %v3313
  %v3454 = vpack.c.b16 %v3334, %v3314
  %v3455 = vpack.c.b16 %v3335, %v3315
  %v3456 = vpack.c.b16 %v3336, %v3316
  %v3457 = vpack.c.b16 %v3337, %v3317
  %v3458 = vpack.c.b16 %v3358, %v3338
  %v3459 = vpack.c.b16 %v3359, %v3339
  %v3460 = vpack.c.b16 %v3360, %v3340
  %v3461 = vpack.c.b16 %v3361, %v3341
  %v3462 = vpack.c.b16 %v3362, %v3342
  %v3463 = vpack.c.b16 %v3363, %v3343
  %v3464 = vpack.c.b16 %v3364, %v3344
  %v3465 = vpack.c.b16 %v3365, %v3345
  %v3466 = vpack.c.b16 %v3366, %v3346
  %v3467 = vpack.c.b16 %v3367, %v3347
  %v3468 = vpack.c.b16 %v3368, %v3348
  %v3469 = vpack.c.b16 %v3369, %v3349
  %v3470 = vpack.c.b16 %v3370, %v3350
  %v3471 = vpack.c.b16 %v3371, %v3351
  %v3472 = vpack.c.b16 %v3372, %v3352
  %v3473 = vpack.c.b16 %v3373, %v3353
  %v3474 = vpack.c.b16 %v3374, %v3354
  %v3475 = vpack.c.b16 %v3375, %v3355
  %v3476 = vpack.c.b16 %v3376, %v3356
  %v3477 = vpack.c.b16 %v3377, %v3357
  %v3478 = vpack.c.b16 %v3378, %v3378
  %v3479 = vpack.c.b16 %v3379, %v3379
  %v3480 = vpack.c.b16 %v3380, %v3380
  %v3481 = vpack.c.b16 %v3381, %v3381
  %v3482 = vpack.c.b16 %v3382, %v3382
  %v3483 = vpack.c.b16 %v3383, %v3383
  %v3484 = vpack.c.b16 %v3384, %v3384
  %v3485 = vpack.c.b16 %v3385, %v3385
  %v3486 = vpack.c.b16 %v3386, %v3386
  %v3487 = vpack.c.b16 %v3387, %v3387
  %v3488 = vpack.c.b16 %v3388, %v3388
  %v3489 = vpack.c.b16 %v3389, %v3389
  %v3490 = vpack.c.b16 %v3390, %v3390
  %v3491 = vpack.c.b16 %v3391, %v3391
  %v3492 = vpack.c.b16 %v3392, %v3392
  %v3493 = vpack.c.b16 %v3393, %v3393
  %v3494 = vpack.c.b16 %v3394, %v3394
  %v3495 = vpack.c.b16 %v3395, %v3395
  %v3496 = vpack.c.b16 %v3396, %v3396
  %v3497 = vpack.c.b16 %v3397, %v3397
  %v3579 = vsel %vm1366, %v3037, 0
  %v3582 = vsel %vm1370, %v3478, 0
  %v3585 = vsel %vm1370, %v3479, 0
  %v3588 = vsel %vm1370, %v3480, 0
  %v3591 = vsel %vm1370, %v3481, 0
  %v3594 = vsel %vm1370, %v3482, 0
  %v3597 = vsel %vm1370, %v3483, 0
  %v3600 = vsel %vm1370, %v3484, 0
  %v3603 = vsel %vm1370, %v3485, 0
  %v3606 = vsel %vm1370, %v3486, 0
  %v3609 = vsel %vm1370, %v3487, 0
  %v3612 = vsel %vm1370, %v3488, 0
  %v3615 = vsel %vm1370, %v3489, 0
  %v3618 = vsel %vm1370, %v3490, 0
  %v3621 = vsel %vm1370, %v3491, 0
  %v3624 = vsel %vm1370, %v3492, 0
  %v3627 = vsel %vm1370, %v3493, 0
  %v3630 = vsel %vm1370, %v3494, 0
  %v3633 = vsel %vm1370, %v3495, 0
  %v3636 = vsel %vm1370, %v3496, 0
  %v3639 = vsel %vm1370, %v3497, 0
  %3641 = vmatprep.subr.bf16.mxu0 %v3399
  %3642 = vmatpush1.bf16.msra.mxu0 %v3398
  %3643 = vmatprep.subr.bf16.mxu0 %v3419
  %3644 = vmatpush1.bf16.msra.mxu0 %v3418
  %3645 = vmatprep.subr.bf16.mxu0 %v3439
  %3646 = vmatpush1.bf16.msra.mxu0 %v3438
  %3647 = vmatprep.subr.bf16.mxu0 %v3459
  %3648 = vmatpush1.bf16.msra.mxu0 %v3458
  %3649 = vmatprep.subr.bf16.mxu0 %v3585
  %3650 = vmatpush1.bf16.msra.mxu0 %v3582
  %3651 = vmatprep.subr.bf16.mxu0 0
  %3652 = vmatpush1.bf16.msra.mxu0 0
  %3653 = vmatprep.subr.bf16.mxu0 0
  %3654 = vmatpush1.bf16.msra.mxu0 0
  %3655 = vmatprep.subr.bf16.mxu0 0
  %3656 = vmatpush1.bf16.msra.mxu0 0
  %3657 = vmatprep.subr.bf16.mxu0 0
  %3658 = vmatpush1.bf16.msra.mxu0 0
  %3659 = vmatprep.subr.bf16.mxu0 0
  %3660 = vmatpush1.bf16.msra.mxu0 0
  %3661 = vmatprep.subr.bf16.mxu0 0
  %3662 = vmatpush1.bf16.msra.mxu0 0
  %3663 = vmatprep.subr.bf16.mxu0 0
  %3664 = vmatpush1.bf16.msra.mxu0 0
  %3665 = vmatprep.subr.bf16.mxu0 0
  %3666 = vmatpush1.bf16.msra.mxu0 0
  %3667 = vmatprep.subr.bf16.mxu0 0
  %3668 = vmatpush1.bf16.msra.mxu0 0
  %3669 = vmatprep.subr.bf16.mxu0 0
  %3670 = vmatpush1.bf16.msra.mxu0 0
  %3671 = vmatprep.subr.bf16.mxu0 0
  %3672 = vmatpush1.bf16.msra.mxu0 0
  %3673 = vmatprep.mubr.bf16.mxu0 0
  %3674 = vmatmul.mubr.bf16.gmra.mrb[0].mxu0 %v3579
  %v3675 = vpop.f32.mrb[0].mxu0
  %v3676 = vadd.f32 0.0, %v3675
  %v3677 = vpop.f32.mrb[0].mxu0
  %v3678 = vadd.f32 0.0, %v3677
  %v3679 = vpop.f32.mrb[0].mxu0
  %v3680 = vpop.f32.mrb[0].mxu0
  %3681 = vdwg.mxu0
  %3682 = vmatprep.subr.bf16.mxu0 %v3401
  %3683 = vmatpush1.bf16.msra.mxu0 %v3400
  %3684 = vmatprep.subr.bf16.mxu0 %v3421
  %3685 = vmatpush1.bf16.msra.mxu0 %v3420
  %3686 = vmatprep.subr.bf16.mxu0 %v3441
  %3687 = vmatpush1.bf16.msra.mxu0 %v3440
  %3688 = vmatprep.subr.bf16.mxu0 %v3461
  %3689 = vmatpush1.bf16.msra.mxu0 %v3460
  %3690 = vmatprep.subr.bf16.mxu0 %v3591
  %3691 = vmatpush1.bf16.msra.mxu0 %v3588
  %3692 = vmatprep.subr.bf16.mxu0 0
  %3693 = vmatpush1.bf16.msra.mxu0 0
  %3694 = vmatprep.subr.bf16.mxu0 0
  %3695 = vmatpush1.bf16.msra.mxu0 0
  %3696 = vmatprep.subr.bf16.mxu0 0
  %3697 = vmatpush1.bf16.msra.mxu0 0
  %3698 = vmatprep.subr.bf16.mxu0 0
  %3699 = vmatpush1.bf16.msra.mxu0 0
  %3700 = vmatprep.subr.bf16.mxu0 0
  %3701 = vmatpush1.bf16.msra.mxu0 0
  %3702 = vmatprep.subr.bf16.mxu0 0
  %3703 = vmatpush1.bf16.msra.mxu0 0
  %3704 = vmatprep.subr.bf16.mxu0 0
  %3705 = vmatpush1.bf16.msra.mxu0 0
  %3706 = vmatprep.subr.bf16.mxu0 0
  %3707 = vmatpush1.bf16.msra.mxu0 0
  %3708 = vmatprep.subr.bf16.mxu0 0
  %3709 = vmatpush1.bf16.msra.mxu0 0
  %3710 = vmatprep.subr.bf16.mxu0 0
  %3711 = vmatpush1.bf16.msra.mxu0 0
  %3712 = vmatprep.subr.bf16.mxu0 0
  %3713 = vmatpush1.bf16.msra.mxu0 0
  %3714 = vmatprep.mubr.bf16.mxu0 0
  %3715 = vmatmul.mubr.bf16.gmra.mrb[0].mxu0 %v3579
  %v3716 = vpop.f32.mrb[0].mxu0
  %v3717 = vadd.f32 0.0, %v3716
  %v3718 = vpop.f32.mrb[0].mxu0
  %v3719 = vadd.f32 0.0, %v3718
  %v3720 = vpop.f32.mrb[0].mxu0
  %v3721 = vpop.f32.mrb[0].mxu0
  %3722 = vdwg.mxu0
  %3723 = vmatprep.subr.bf16.mxu0 %v3403
  %3724 = vmatpush1.bf16.msra.mxu0 %v3402
  %3725 = vmatprep.subr.bf16.mxu0 %v3423
  %3726 = vmatpush1.bf16.msra.mxu0 %v3422
  %3727 = vmatprep.subr.bf16.mxu0 %v3443
  %3728 = vmatpush1.bf16.msra.mxu0 %v3442
  %3729 = vmatprep.subr.bf16.mxu0 %v3463
  %3730 = vmatpush1.bf16.msra.mxu0 %v3462
  %3731 = vmatprep.subr.bf16.mxu0 %v3597
  %3732 = vmatpush1.bf16.msra.mxu0 %v3594
  %3733 = vmatprep.subr.bf16.mxu0 0
  %3734 = vmatpush1.bf16.msra.mxu0 0
  %3735 = vmatprep.subr.bf16.mxu0 0
  %3736 = vmatpush1.bf16.msra.mxu0 0
  %3737 = vmatprep.subr.bf16.mxu0 0
  %3738 = vmatpush1.bf16.msra.mxu0 0
  %3739 = vmatprep.subr.bf16.mxu0 0
  %3740 = vmatpush1.bf16.msra.mxu0 0
  %3741 = vmatprep.subr.bf16.mxu0 0
  %3742 = vmatpush1.bf16.msra.mxu0 0
  %3743 = vmatprep.subr.bf16.mxu0 0
  %3744 = vmatpush1.bf16.msra.mxu0 0
  %3745 = vmatprep.subr.bf16.mxu0 0
  %3746 = vmatpush1.bf16.msra.mxu0 0
  %3747 = vmatprep.subr.bf16.mxu0 0
  %3748 = vmatpush1.bf16.msra.mxu0 0
  %3749 = vmatprep.subr.bf16.mxu0 0
  %3750 = vmatpush1.bf16.msra.mxu0 0
  %3751 = vmatprep.subr.bf16.mxu0 0
  %3752 = vmatpush1.bf16.msra.mxu0 0
  %3753 = vmatprep.subr.bf16.mxu0 0
  %3754 = vmatpush1.bf16.msra.mxu0 0
  %3755 = vmatprep.mubr.bf16.mxu0 0
  %3756 = vmatmul.mubr.bf16.gmra.mrb[0].mxu0 %v3579
  %v3757 = vpop.f32.mrb[0].mxu0
  %v3758 = vadd.f32 0.0, %v3757
  %v3759 = vpop.f32.mrb[0].mxu0
  %v3760 = vadd.f32 0.0, %v3759
  %v3761 = vpop.f32.mrb[0].mxu0
  %v3762 = vpop.f32.mrb[0].mxu0
  %3763 = vdwg.mxu0
  %3764 = vmatprep.subr.bf16.mxu0 %v3405
  %3765 = vmatpush1.bf16.msra.mxu0 %v3404
  %3766 = vmatprep.subr.bf16.mxu0 %v3425
  %3767 = vmatpush1.bf16.msra.mxu0 %v3424
  %3768 = vmatprep.subr.bf16.mxu0 %v3445
  %3769 = vmatpush1.bf16.msra.mxu0 %v3444
  %3770 = vmatprep.subr.bf16.mxu0 %v3465
  %3771 = vmatpush1.bf16.msra.mxu0 %v3464
  %3772 = vmatprep.subr.bf16.mxu0 %v3603
  %3773 = vmatpush1.bf16.msra.mxu0 %v3600
  %3774 = vmatprep.subr.bf16.mxu0 0
  %3775 = vmatpush1.bf16.msra.mxu0 0
  %3776 = vmatprep.subr.bf16.mxu0 0
  %3777 = vmatpush1.bf16.msra.mxu0 0
  %3778 = vmatprep.subr.bf16.mxu0 0
  %3779 = vmatpush1.bf16.msra.mxu0 0
  %3780 = vmatprep.subr.bf16.mxu0 0
  %3781 = vmatpush1.bf16.msra.mxu0 0
  %3782 = vmatprep.subr.bf16.mxu0 0
  %3783 = vmatpush1.bf16.msra.mxu0 0
  %3784 = vmatprep.subr.bf16.mxu0 0
  %3785 = vmatpush1.bf16.msra.mxu0 0
  %3786 = vmatprep.subr.bf16.mxu0 0
  %3787 = vmatpush1.bf16.msra.mxu0 0
  %3788 = vmatprep.subr.bf16.mxu0 0
  %3789 = vmatpush1.bf16.msra.mxu0 0
  %3790 = vmatprep.subr.bf16.mxu0 0
  %3791 = vmatpush1.bf16.msra.mxu0 0
  %3792 = vmatprep.subr.bf16.mxu0 0
  %3793 = vmatpush1.bf16.msra.mxu0 0
  %3794 = vmatprep.subr.bf16.mxu0 0
  %3795 = vmatpush1.bf16.msra.mxu0 0
  %3796 = vmatprep.mubr.bf16.mxu0 0
  %3797 = vmatmul.mubr.bf16.gmra.mrb[0].mxu0 %v3579
  %v3798 = vpop.f32.mrb[0].mxu0
  %v3799 = vadd.f32 0.0, %v3798
  %v3800 = vpop.f32.mrb[0].mxu0
  %v3801 = vadd.f32 0.0, %v3800
  %v3802 = vpop.f32.mrb[0].mxu0
  %v3803 = vpop.f32.mrb[0].mxu0
  %3804 = vdwg.mxu0
  %3805 = vmatprep.subr.bf16.mxu0 %v3407
  %3806 = vmatpush1.bf16.msra.mxu0 %v3406
  %3807 = vmatprep.subr.bf16.mxu0 %v3427
  %3808 = vmatpush1.bf16.msra.mxu0 %v3426
  %3809 = vmatprep.subr.bf16.mxu0 %v3447
  %3810 = vmatpush1.bf16.msra.mxu0 %v3446
  %3811 = vmatprep.subr.bf16.mxu0 %v3467
  %3812 = vmatpush1.bf16.msra.mxu0 %v3466
  %3813 = vmatprep.subr.bf16.mxu0 %v3609
  %3814 = vmatpush1.bf16.msra.mxu0 %v3606
  %3815 = vmatprep.subr.bf16.mxu0 0
  %3816 = vmatpush1.bf16.msra.mxu0 0
  %3817 = vmatprep.subr.bf16.mxu0 0
  %3818 = vmatpush1.bf16.msra.mxu0 0
  %3819 = vmatprep.subr.bf16.mxu0 0
  %3820 = vmatpush1.bf16.msra.mxu0 0
  %3821 = vmatprep.subr.bf16.mxu0 0
  %3822 = vmatpush1.bf16.msra.mxu0 0
  %3823 = vmatprep.subr.bf16.mxu0 0
  %3824 = vmatpush1.bf16.msra.mxu0 0
  %3825 = vmatprep.subr.bf16.mxu0 0
  %3826 = vmatpush1.bf16.msra.mxu0 0
  %3827 = vmatprep.subr.bf16.mxu0 0
  %3828 = vmatpush1.bf16.msra.mxu0 0
  %3829 = vmatprep.subr.bf16.mxu0 0
  %3830 = vmatpush1.bf16.msra.mxu0 0
  %3831 = vmatprep.subr.bf16.mxu0 0
  %3832 = vmatpush1.bf16.msra.mxu0 0
  %3833 = vmatprep.subr.bf16.mxu0 0
  %3834 = vmatpush1.bf16.msra.mxu0 0
  %3835 = vmatprep.subr.bf16.mxu0 0
  %3836 = vmatpush1.bf16.msra.mxu0 0
  %3837 = vmatprep.mubr.bf16.mxu0 0
  %3838 = vmatmul.mubr.bf16.gmra.mrb[0].mxu0 %v3579
  %v3839 = vpop.f32.mrb[0].mxu0
  %v3840 = vadd.f32 0.0, %v3839
  %v3841 = vpop.f32.mrb[0].mxu0
  %v3842 = vadd.f32 0.0, %v3841
  %v3843 = vpop.f32.mrb[0].mxu0
  %v3844 = vpop.f32.mrb[0].mxu0
  %3845 = vdwg.mxu0
  %3846 = vmatprep.subr.bf16.mxu0 %v3409
  %3847 = vmatpush1.bf16.msra.mxu0 %v3408
  %3848 = vmatprep.subr.bf16.mxu0 %v3429
  %3849 = vmatpush1.bf16.msra.mxu0 %v3428
  %3850 = vmatprep.subr.bf16.mxu0 %v3449
  %3851 = vmatpush1.bf16.msra.mxu0 %v3448
  %3852 = vmatprep.subr.bf16.mxu0 %v3469
  %3853 = vmatpush1.bf16.msra.mxu0 %v3468
  %3854 = vmatprep.subr.bf16.mxu0 %v3615
  %3855 = vmatpush1.bf16.msra.mxu0 %v3612
  %3856 = vmatprep.subr.bf16.mxu0 0
  %3857 = vmatpush1.bf16.msra.mxu0 0
  %3858 = vmatprep.subr.bf16.mxu0 0
  %3859 = vmatpush1.bf16.msra.mxu0 0
  %3860 = vmatprep.subr.bf16.mxu0 0
  %3861 = vmatpush1.bf16.msra.mxu0 0
  %3862 = vmatprep.subr.bf16.mxu0 0
  %3863 = vmatpush1.bf16.msra.mxu0 0
  %3864 = vmatprep.subr.bf16.mxu0 0
  %3865 = vmatpush1.bf16.msra.mxu0 0
  %3866 = vmatprep.subr.bf16.mxu0 0
  %3867 = vmatpush1.bf16.msra.mxu0 0
  %3868 = vmatprep.subr.bf16.mxu0 0
  %3869 = vmatpush1.bf16.msra.mxu0 0
  %3870 = vmatprep.subr.bf16.mxu0 0
  %3871 = vmatpush1.bf16.msra.mxu0 0
  %3872 = vmatprep.subr.bf16.mxu0 0
  %3873 = vmatpush1.bf16.msra.mxu0 0
  %3874 = vmatprep.subr.bf16.mxu0 0
  %3875 = vmatpush1.bf16.msra.mxu0 0
  %3876 = vmatprep.subr.bf16.mxu0 0
  %3877 = vmatpush1.bf16.msra.mxu0 0
  %3878 = vmatprep.mubr.bf16.mxu0 0
  %3879 = vmatmul.mubr.bf16.gmra.mrb[0].mxu0 %v3579
  %v3880 = vpop.f32.mrb[0].mxu0
  %v3881 = vadd.f32 0.0, %v3880
  %v3882 = vpop.f32.mrb[0].mxu0
  %v3883 = vadd.f32 0.0, %v3882
  %v3884 = vpop.f32.mrb[0].mxu0
  %v3885 = vpop.f32.mrb[0].mxu0
  %3886 = vdwg.mxu0
  %3887 = vmatprep.subr.bf16.mxu0 %v3411
  %3888 = vmatpush1.bf16.msra.mxu0 %v3410
  %3889 = vmatprep.subr.bf16.mxu0 %v3431
  %3890 = vmatpush1.bf16.msra.mxu0 %v3430
  %3891 = vmatprep.subr.bf16.mxu0 %v3451
  %3892 = vmatpush1.bf16.msra.mxu0 %v3450
  %3893 = vmatprep.subr.bf16.mxu0 %v3471
  %3894 = vmatpush1.bf16.msra.mxu0 %v3470
  %3895 = vmatprep.subr.bf16.mxu0 %v3621
  %3896 = vmatpush1.bf16.msra.mxu0 %v3618
  %3897 = vmatprep.subr.bf16.mxu0 0
  %3898 = vmatpush1.bf16.msra.mxu0 0
  %3899 = vmatprep.subr.bf16.mxu0 0
  %3900 = vmatpush1.bf16.msra.mxu0 0
  %3901 = vmatprep.subr.bf16.mxu0 0
  %3902 = vmatpush1.bf16.msra.mxu0 0
  %3903 = vmatprep.subr.bf16.mxu0 0
  %3904 = vmatpush1.bf16.msra.mxu0 0
  %3905 = vmatprep.subr.bf16.mxu0 0
  %3906 = vmatpush1.bf16.msra.mxu0 0
  %3907 = vmatprep.subr.bf16.mxu0 0
  %3908 = vmatpush1.bf16.msra.mxu0 0
  %3909 = vmatprep.subr.bf16.mxu0 0
  %3910 = vmatpush1.bf16.msra.mxu0 0
  %3911 = vmatprep.subr.bf16.mxu0 0
  %3912 = vmatpush1.bf16.msra.mxu0 0
  %3913 = vmatprep.subr.bf16.mxu0 0
  %3914 = vmatpush1.bf16.msra.mxu0 0
  %3915 = vmatprep.subr.bf16.mxu0 0
  %3916 = vmatpush1.bf16.msra.mxu0 0
  %3917 = vmatprep.subr.bf16.mxu0 0
  %3918 = vmatpush1.bf16.msra.mxu0 0
  %3919 = vmatprep.mubr.bf16.mxu0 0
  %3920 = vmatmul.mubr.bf16.gmra.mrb[0].mxu0 %v3579
  %v3921 = vpop.f32.mrb[0].mxu0
  %v3922 = vadd.f32 0.0, %v3921
  %v3923 = vpop.f32.mrb[0].mxu0
  %v3924 = vadd.f32 0.0, %v3923
  %v3925 = vpop.f32.mrb[0].mxu0
  %v3926 = vpop.f32.mrb[0].mxu0
  %3927 = vdwg.mxu0
  %3928 = vmatprep.subr.bf16.mxu0 %v3413
  %3929 = vmatpush1.bf16.msra.mxu0 %v3412
  %3930 = vmatprep.subr.bf16.mxu0 %v3433
  %3931 = vmatpush1.bf16.msra.mxu0 %v3432
  %3932 = vmatprep.subr.bf16.mxu0 %v3453
  %3933 = vmatpush1.bf16.msra.mxu0 %v3452
  %3934 = vmatprep.subr.bf16.mxu0 %v3473
  %3935 = vmatpush1.bf16.msra.mxu0 %v3472
  %3936 = vmatprep.subr.bf16.mxu0 %v3627
  %3937 = vmatpush1.bf16.msra.mxu0 %v3624
  %3938 = vmatprep.subr.bf16.mxu0 0
  %3939 = vmatpush1.bf16.msra.mxu0 0
  %3940 = vmatprep.subr.bf16.mxu0 0
  %3941 = vmatpush1.bf16.msra.mxu0 0
  %3942 = vmatprep.subr.bf16.mxu0 0
  %3943 = vmatpush1.bf16.msra.mxu0 0
  %3944 = vmatprep.subr.bf16.mxu0 0
  %3945 = vmatpush1.bf16.msra.mxu0 0
  %3946 = vmatprep.subr.bf16.mxu0 0
  %3947 = vmatpush1.bf16.msra.mxu0 0
  %3948 = vmatprep.subr.bf16.mxu0 0
  %3949 = vmatpush1.bf16.msra.mxu0 0
  %3950 = vmatprep.subr.bf16.mxu0 0
  %3951 = vmatpush1.bf16.msra.mxu0 0
  %3952 = vmatprep.subr.bf16.mxu0 0
  %3953 = vmatpush1.bf16.msra.mxu0 0
  %3954 = vmatprep.subr.bf16.mxu0 0
  %3955 = vmatpush1.bf16.msra.mxu0 0
  %3956 = vmatprep.subr.bf16.mxu0 0
  %3957 = vmatpush1.bf16.msra.mxu0 0
  %3958 = vmatprep.subr.bf16.mxu0 0
  %3959 = vmatpush1.bf16.msra.mxu0 0
  %3960 = vmatprep.mubr.bf16.mxu0 0
  %3961 = vmatmul.mubr.bf16.gmra.mrb[0].mxu0 %v3579
  %v3962 = vpop.f32.mrb[0].mxu0
  %v3963 = vadd.f32 0.0, %v3962
  %v3964 = vpop.f32.mrb[0].mxu0
  %v3965 = vadd.f32 0.0, %v3964
  %v3966 = vpop.f32.mrb[0].mxu0
  %v3967 = vpop.f32.mrb[0].mxu0
  %3968 = vdwg.mxu0
  %3969 = vmatprep.subr.bf16.mxu0 %v3415
  %3970 = vmatpush1.bf16.msra.mxu0 %v3414
  %3971 = vmatprep.subr.bf16.mxu0 %v3435
  %3972 = vmatpush1.bf16.msra.mxu0 %v3434
  %3973 = vmatprep.subr.bf16.mxu0 %v3455
  %3974 = vmatpush1.bf16.msra.mxu0 %v3454
  %3975 = vmatprep.subr.bf16.mxu0 %v3475
  %3976 = vmatpush1.bf16.msra.mxu0 %v3474
  %3977 = vmatprep.subr.bf16.mxu0 %v3633
  %3978 = vmatpush1.bf16.msra.mxu0 %v3630
  %3979 = vmatprep.subr.bf16.mxu0 0
  %3980 = vmatpush1.bf16.msra.mxu0 0
  %3981 = vmatprep.subr.bf16.mxu0 0
  %3982 = vmatpush1.bf16.msra.mxu0 0
  %3983 = vmatprep.subr.bf16.mxu0 0
  %3984 = vmatpush1.bf16.msra.mxu0 0
  %3985 = vmatprep.subr.bf16.mxu0 0
  %3986 = vmatpush1.bf16.msra.mxu0 0
  %3987 = vmatprep.subr.bf16.mxu0 0
  %3988 = vmatpush1.bf16.msra.mxu0 0
  %3989 = vmatprep.subr.bf16.mxu0 0
  %3990 = vmatpush1.bf16.msra.mxu0 0
  %3991 = vmatprep.subr.bf16.mxu0 0
  %3992 = vmatpush1.bf16.msra.mxu0 0
  %3993 = vmatprep.subr.bf16.mxu0 0
  %3994 = vmatpush1.bf16.msra.mxu0 0
  %3995 = vmatprep.subr.bf16.mxu0 0
  %3996 = vmatpush1.bf16.msra.mxu0 0
  %3997 = vmatprep.subr.bf16.mxu0 0
  %3998 = vmatpush1.bf16.msra.mxu0 0
  %3999 = vmatprep.subr.bf16.mxu0 0
  %4000 = vmatpush1.bf16.msra.mxu0 0
  %4001 = vmatprep.mubr.bf16.mxu0 0
  %4002 = vmatmul.mubr.bf16.gmra.mrb[0].mxu0 %v3579
  %v4003 = vpop.f32.mrb[0].mxu0
  %v4004 = vadd.f32 0.0, %v4003
  %v4005 = vpop.f32.mrb[0].mxu0
  %v4006 = vadd.f32 0.0, %v4005
  %v4007 = vpop.f32.mrb[0].mxu0
  %v4008 = vpop.f32.mrb[0].mxu0
  %4009 = vdwg.mxu0
  %4010 = vmatprep.subr.bf16.mxu0 %v3417
  %4011 = vmatpush1.bf16.msra.mxu0 %v3416
  %4012 = vmatprep.subr.bf16.mxu0 %v3437
  %4013 = vmatpush1.bf16.msra.mxu0 %v3436
  %4014 = vmatprep.subr.bf16.mxu0 %v3457
  %4015 = vmatpush1.bf16.msra.mxu0 %v3456
  %4016 = vmatprep.subr.bf16.mxu0 %v3477
  %4017 = vmatpush1.bf16.msra.mxu0 %v3476
  %4018 = vmatprep.subr.bf16.mxu0 %v3639
  %4019 = vmatpush1.bf16.msra.mxu0 %v3636
  %4020 = vmatprep.subr.bf16.mxu0 0
  %4021 = vmatpush1.bf16.msra.mxu0 0
  %4022 = vmatprep.subr.bf16.mxu0 0
  %4023 = vmatpush1.bf16.msra.mxu0 0
  %4024 = vmatprep.subr.bf16.mxu0 0
  %4025 = vmatpush1.bf16.msra.mxu0 0
  %4026 = vmatprep.subr.bf16.mxu0 0
  %4027 = vmatpush1.bf16.msra.mxu0 0
  %4028 = vmatprep.subr.bf16.mxu0 0
  %4029 = vmatpush1.bf16.msra.mxu0 0
  %4030 = vmatprep.subr.bf16.mxu0 0
  %4031 = vmatpush1.bf16.msra.mxu0 0
  %4032 = vmatprep.subr.bf16.mxu0 0
  %4033 = vmatpush1.bf16.msra.mxu0 0
  %4034 = vmatprep.subr.bf16.mxu0 0
  %4035 = vmatpush1.bf16.msra.mxu0 0
  %4036 = vmatprep.subr.bf16.mxu0 0
  %4037 = vmatpush1.bf16.msra.mxu0 0
  %4038 = vmatprep.subr.bf16.mxu0 0
  %4039 = vmatpush1.bf16.msra.mxu0 0
  %4040 = vmatprep.subr.bf16.mxu0 0
  %4041 = vmatpush1.bf16.msra.mxu0 0
  %4042 = vmatprep.mubr.bf16.mxu0 0
  %4043 = vmatmul.mubr.bf16.gmra.mrb[0].mxu0 %v3579
  %v4044 = vpop.f32.mrb[0].mxu0
  %v4045 = vadd.f32 0.0, %v4044
  %v4046 = vpop.f32.mrb[0].mxu0
  %v4047 = vadd.f32 0.0, %v4046
  %v4048 = vpop.f32.mrb[0].mxu0
  %v4049 = vpop.f32.mrb[0].mxu0
  %4050 = vdwg.mxu0
  %v4051 = vmul.f32 %v3676, %v1847
  %v4052 = vmul.f32 %v3678, %v1851
  %v4053 = vmul.f32 %v3717, %v1855
  %v4054 = vmul.f32 %v3719, %v1859
  %v4055 = vmul.f32 %v3758, %v1863
  %v4056 = vmul.f32 %v3760, %v1867
  %v4057 = vmul.f32 %v3799, %v1871
  %v4058 = vmul.f32 %v3801, %v1875
  %v4059 = vmul.f32 %v3840, %v1879
  %v4060 = vmul.f32 %v3842, %v1883
  %v4061 = vmul.f32 %v3881, %v1887
  %v4062 = vmul.f32 %v3883, %v1891
  %v4063 = vmul.f32 %v3922, %v1895
  %v4064 = vmul.f32 %v3924, %v1899
  %v4065 = vmul.f32 %v3963, %v1903
  %v4066 = vmul.f32 %v3965, %v1907
  %v4067 = vmul.f32 %v4004, %v1911
  %v4068 = vmul.f32 %v4006, %v1915
  %v4069 = vmul.f32 %v4045, %v1919
  %v4070 = vmul.f32 %v4047, %v1923
  %v4071 = vadd.f32 %v4051, %v4052
  %v4072 = vadd.f32 %v4071, %v4053
  %v4073 = vadd.f32 %v4072, %v4054
  %v4074 = vadd.f32 %v4073, %v4055
  %v4075 = vadd.f32 %v4074, %v4056
  %v4076 = vadd.f32 %v4075, %v4057
  %v4077 = vadd.f32 %v4076, %v4058
  %v4078 = vadd.f32 %v4077, %v4059
  %v4079 = vadd.f32 %v4078, %v4060
  %v4080 = vadd.f32 %v4079, %v4061
  %v4081 = vadd.f32 %v4080, %v4062
  %v4082 = vadd.f32 %v4081, %v4063
  %v4083 = vadd.f32 %v4082, %v4064
  %v4084 = vadd.f32 %v4083, %v4065
  %v4085 = vadd.f32 %v4084, %v4066
  %v4086 = vadd.f32 %v4085, %v4067
  %v4087 = vadd.f32 %v4086, %v4068
  %v4088 = vadd.f32 %v4087, %v4069
  %v4089 = vadd.f32 %v4088, %v4070
  %4090 = vadd.xlane.f32.xlu0 %v4089
  %v4091 = vpop.xlane.xlu0 %4090
  %v4092 = vmul.f32 %v4091, 0.00048828125
  %v4093 = vsub.f32 %v3676, %v4092
  %v4094 = vsub.f32 %v3678, %v4092
  %v4095 = vsub.f32 %v3717, %v4092
  %v4096 = vsub.f32 %v3719, %v4092
  %v4097 = vsub.f32 %v3758, %v4092
  %v4098 = vsub.f32 %v3760, %v4092
  %v4099 = vsub.f32 %v3799, %v4092
  %v4100 = vsub.f32 %v3801, %v4092
  %v4101 = vsub.f32 %v3840, %v4092
  %v4102 = vsub.f32 %v3842, %v4092
  %v4103 = vsub.f32 %v3881, %v4092
  %v4104 = vsub.f32 %v3883, %v4092
  %v4105 = vsub.f32 %v3922, %v4092
  %v4106 = vsub.f32 %v3924, %v4092
  %v4107 = vsub.f32 %v3963, %v4092
  %v4108 = vsub.f32 %v3965, %v4092
  %v4109 = vsub.f32 %v4004, %v4092
  %v4110 = vsub.f32 %v4006, %v4092
  %v4111 = vsub.f32 %v4045, %v4092
  %v4112 = vsub.f32 %v4047, %v4092
  %v4113 = vmul.f32 %v4093, %v1847
  %v4114 = vmul.f32 %v4094, %v1851
  %v4115 = vmul.f32 %v4095, %v1855
  %v4116 = vmul.f32 %v4096, %v1859
  %v4117 = vmul.f32 %v4097, %v1863
  %v4118 = vmul.f32 %v4098, %v1867
  %v4119 = vmul.f32 %v4099, %v1871
  %v4120 = vmul.f32 %v4100, %v1875
  %v4121 = vmul.f32 %v4101, %v1879
  %v4122 = vmul.f32 %v4102, %v1883
  %v4123 = vmul.f32 %v4103, %v1887
  %v4124 = vmul.f32 %v4104, %v1891
  %v4125 = vmul.f32 %v4105, %v1895
  %v4126 = vmul.f32 %v4106, %v1899
  %v4127 = vmul.f32 %v4107, %v1903
  %v4128 = vmul.f32 %v4108, %v1907
  %v4129 = vmul.f32 %v4109, %v1911
  %v4130 = vmul.f32 %v4110, %v1915
  %v4131 = vmul.f32 %v4111, %v1919
  %v4132 = vmul.f32 %v4112, %v1923
  %v4133 = vmul.f32 %v4113, %v4113
  %v4134 = vmul.f32 %v4114, %v4114
  %v4135 = vmul.f32 %v4115, %v4115
  %v4136 = vmul.f32 %v4116, %v4116
  %v4137 = vmul.f32 %v4117, %v4117
  %v4138 = vmul.f32 %v4118, %v4118
  %v4139 = vmul.f32 %v4119, %v4119
  %v4140 = vmul.f32 %v4120, %v4120
  %v4141 = vmul.f32 %v4121, %v4121
  %v4142 = vmul.f32 %v4122, %v4122
  %v4143 = vmul.f32 %v4123, %v4123
  %v4144 = vmul.f32 %v4124, %v4124
  %v4145 = vmul.f32 %v4125, %v4125
  %v4146 = vmul.f32 %v4126, %v4126
  %v4147 = vmul.f32 %v4127, %v4127
  %v4148 = vmul.f32 %v4128, %v4128
  %v4149 = vmul.f32 %v4129, %v4129
  %v4150 = vmul.f32 %v4130, %v4130
  %v4151 = vmul.f32 %v4131, %v4131
  %v4152 = vmul.f32 %v4132, %v4132
  %v4153 = vadd.f32 %v4133, %v4134
  %v4154 = vadd.f32 %v4153, %v4135
  %v4155 = vadd.f32 %v4154, %v4136
  %v4156 = vadd.f32 %v4155, %v4137
  %v4157 = vadd.f32 %v4156, %v4138
  %v4158 = vadd.f32 %v4157, %v4139
  %v4159 = vadd.f32 %v4158, %v4140
  %v4160 = vadd.f32 %v4159, %v4141
  %v4161 = vadd.f32 %v4160, %v4142
  %v4162 = vadd.f32 %v4161, %v4143
  %v4163 = vadd.f32 %v4162, %v4144
  %v4164 = vadd.f32 %v4163, %v4145
  %v4165 = vadd.f32 %v4164, %v4146
  %v4166 = vadd.f32 %v4165, %v4147
  %v4167 = vadd.f32 %v4166, %v4148
  %v4168 = vadd.f32 %v4167, %v4149
  %v4169 = vadd.f32 %v4168, %v4150
  %v4170 = vadd.f32 %v4169, %v4151
  %v4171 = vadd.f32 %v4170, %v4152
  %4172 = vadd.xlane.f32.xlu0 %v4171
  %v4173 = vpop.xlane.xlu0 %4172
  %v4174 = vmul.f32 %v4173, 0.00048828125
  %v4175 = vld [vmem:[%s5] sm:$0xff]
  %v4176 = vadd.f32 %v4174, 1e-05
  %v4177 = vrsqrt.pop %v4176
  %v4178 = vmul.f32 %v4175, %v4177
  %vm4179 = vcmask 7168
  %4180 = vst.msk [vmem:[%s9] sm:$0xff] %vm4179, %v4178
  %v4181 = vld [vmem:[%s6] sm:$0xff]
  %v4182 = vmul.f32 %v4092, %v4178
  %v4183 = vsub.f32 %v4181, %v4182
  %4184 = vst.msk [vmem:[%s10] sm:$0xff] %vm4179, %v4183
  %4185 = vst [vmem:[%s8] sm:$0xff] %v3676
  %4186 = vst [vmem:[%s8 + $0x8] sm:$0xff] %v3678
  %4187 = vst [vmem:[%s8 + $0x10] sm:$0xff] %v3717
  %4188 = vst [vmem:[%s8 + $0x18] sm:$0xff] %v3719
  %4189 = vst [vmem:[%s8 + $0x20] sm:$0xff] %v3758
  %4190 = vst [vmem:[%s8 + $0x28] sm:$0xff] %v3760
  %4191 = vst [vmem:[%s8 + $0x30] sm:$0xff] %v3799
  %4192 = vst [vmem:[%s8 + $0x38] sm:$0xff] %v3801
  %4193 = vst [vmem:[%s8 + $0x40] sm:$0xff] %v3840
  %4194 = vst [vmem:[%s8 + $0x48] sm:$0xff] %v3842
  %4195 = vst [vmem:[%s8 + $0x50] sm:$0xff] %v3881
  %4196 = vst [vmem:[%s8 + $0x58] sm:$0xff] %v3883
  %4197 = vst [vmem:[%s8 + $0x60] sm:$0xff] %v3922
  %4198 = vst [vmem:[%s8 + $0x68] sm:$0xff] %v3924
  %4199 = vst [vmem:[%s8 + $0x70] sm:$0xff] %v3963
  %4200 = vst [vmem:[%s8 + $0x78] sm:$0xff] %v3965
  %4201 = vst [vmem:[%s8 + $0x80] sm:$0xff] %v4004
  %4202 = vst [vmem:[%s8 + $0x88] sm:$0xff] %v4006
  %4203 = vst [vmem:[%s8 + $0x90] sm:$0xff] %v4045
  %4204 = vst [vmem:[%s8 + $0x98] sm:$0xff] %v4047
  // Predicated region
  $region34: #{upsample_block.1} parent=0 // pred_check
    _
  $region35: #{upsample_block.1} parent=0 // pred_check_branch
    %4206 = sbr.rel (0) target = $region37
  $region36: #{upsample_block.1} parent=0 // pred_region
    _
  $region37: #{upsample_block.1} parent=0 // pred_fallthru
    _
  // Predicated region
  $region38: #{upsample_block.1} parent=0 // pred_check
    _
  $region39: #{upsample_block.1} parent=0 // pred_check_branch
    %4208 = sbr.rel (0) target = $region41
  $region40: #{upsample_block.1} parent=0 // pred_region
    _
  $region41: #{upsample_block.1} parent=0 // pred_fallthru
    _
  // Predicated region
  $region42: #{upsample_block.1} parent=0 // pred_check
    _
  $region43: #{upsample_block.1} parent=0 // pred_check_branch
    %4210 = sbr.rel (0) target = $region45
  $region44: #{upsample_block.1} parent=0 // pred_region
    _
  $region45: #{upsample_block.1} parent=0 // pred_fallthru
    _
  // Predicated region
  $region46: #{upsample_block.1} parent=0 // pred_check
    _
  $region47: #{upsample_block.1} parent=0 // pred_check_branch
    %4212 = sbr.rel (0) target = $region49
  $region48: #{upsample_block.1} parent=0 // pred_region
    _
  $region49: #{upsample_block.1} parent=0 // pred_fallthru
    _
  // Predicated region
  $region50: #{upsample_block.1} parent=0 // pred_check
    _
  $region51: #{upsample_block.1} parent=0 // pred_check_branch
    %4214 = sbr.rel (0) target = $region53
  $region52: #{upsample_block.1} parent=0 // pred_region
    _
  $region53: #{upsample_block.1} parent=0 // pred_fallthru
    _
  // Predicated region
  $region54: #{upsample_block.1} parent=0 // pred_check
    _
  $region55: #{upsample_block.1} parent=0 // pred_check_branch
    %4216 = sbr.rel (0) target = $region57
  $region56: #{upsample_block.1} parent=0 // pred_region
    _
  $region57: #{upsample_block.1} parent=0 // pred_fallthru
    _

</llo_original>
